<compile_context>
chip_gen: v7x
topology: tpu7x:2x2x1
jax: 0.10.0
libtpu: 0.0.40
codegen_flags: <defaults>
</compile_context>

<pallas_src>
import jax
import jax.numpy as jnp
import numpy as np
from jax import lax
from jax.experimental import pallas as pl
from jax.experimental.pallas import tpu as pltpu

# Problem sizes (small, consistent with the module's forward).
N, CIN, COUT, H, W = 2, 4, 4, 16, 16
K = 3
NITER = 12                         # solver iterations; the module applies f once more

HP, WP = H + 2, W + 2              # zero-padded spatial extents (18, 18)
LIMG = HP * WP                     # padded pixels per image, flattened on lanes (324)
LP = 384                           # lane extent padded up to a multiple of 128
NC = N * COUT                      # 8: batch*out-channel fused onto sublanes
NCI = N * CIN                      # 8: batch*in-channel fused onto sublanes
SHIFTS = [dh * WP + dw for dh in (-1, 0, 1) for dw in (-1, 0, 1)]   # per-tap lane shift

# TODO(synk): the backward hook (implicit-function gradient solve via autograd.grad)
# and the forward_res/backward_res bookkeeping are autograd machinery, not part of the
# returned forward value; they are not implemented.


def _deq_kernel(x_ref, wz_ref, wx_ref, mask_ref, o_ref):
    # x_ref:    (8, 384)  VMEM -- x, zero-padded spatially, (n*CIN+ci) on sublanes
    # wz_ref:   (8, 72)   VMEM -- im2col-folded, batch-block-diagonal Wz
    # wx_ref:   (8, 72)   VMEM -- im2col-folded, batch-block-diagonal Wx
    # mask_ref: (8, 384)  VMEM -- 1.0 at real (h, w) pixels, 0.0 on ring / lane pad
    # o_ref:    (8, 384)  VMEM -- output, same layout as z
    f32 = jnp.float32

    wz_big = wz_ref[...]                      # read weights ONCE, hoisted
    wx_big = wx_ref[...]
    mask = mask_ref[...]

    def im2col(v):
        # (8, LP) -> (72, LP): per-tap lane rotation on the XLU, stacked on sublanes.
        # Wrap-around values land only on ring/pad lanes, which are masked every step.
        return jnp.concatenate(
            [pltpu.roll(v, shift=(-s) % LP, axis=1) for s in SHIFTS], axis=0)

    # bias = conv3x3(x, Wx): one im2col dot, kept in vregs across the whole loop.
    bias = jnp.dot(wx_big, im2col(x_ref[...]), preferred_element_type=f32)

    # Fixed-point iteration  z <- tanh(conv3x3(z, Wz) + bias); the module's trailing
    # explicit f(z, x) is the (NITER+1)-th application.  z0 = ones at real pixels.
    def body(_, z):
        acc = bias + jnp.dot(wz_big, im2col(z), preferred_element_type=f32)
        return mask * jnp.tanh(acc)      # re-zero ring/pad so taps see true zero pad

    z = lax.fori_loop(0, NITER + 1, body, mask, unroll=True)
    o_ref[...] = z                        # single full unmasked (8, 384) store


def deq_fixed_point_conv(x, wz, wx):
    """x: (N, CIN, H, W) f32 NCHW; wz: (3,3,COUT,COUT) HWIO; wx: (3,3,CIN,COUT) HWIO."""
    n, cin, h, w = x.shape
    assert (n, cin, h, w) == (N, CIN, H, W)
    f32 = jnp.float32

    # x -> (N*CIN, 384): batch*channel on sublanes, zero-padded spatial flat on lanes.
    xp = jnp.pad(x.astype(f32), ((0, 0), (0, 0), (1, 1), (1, 1)))
    x_lanes = jnp.pad(xp.reshape(NCI, LIMG), ((0, 0), (0, LP - LIMG)))

    # HWIO (kh, kw, ci, co) -> one (8, 72) im2col weight, block-diagonal over batch:
    # output row n*COUT+co contracts stack row t*8 + n*C + ci with w[kh, kw, ci, co].
    wz_np = np.asarray(wz, np.float32)
    wx_np = np.asarray(wx, np.float32)
    wz_big = np.zeros((NC, K * K * NC), np.float32)
    wx_big = np.zeros((NC, K * K * NCI), np.float32)
    for t in range(K * K):
        kh, kw = divmod(t, K)
        for b in range(N):
            wz_big[b * COUT:(b + 1) * COUT,
                   t * NC + b * COUT:t * NC + (b + 1) * COUT] = wz_np[kh, kw].T
            wx_big[b * COUT:(b + 1) * COUT,
                   t * NCI + b * CIN:t * NCI + (b + 1) * CIN] = wx_np[kh, kw].T

    # Interior mask: 1 at real pixels, 0 on the zero-padding ring and the lane pad
    # (built host-side so the kernel needs no iota / integer div-mod).
    m = np.zeros((HP, WP), np.float32)
    m[1:H + 1, 1:W + 1] = 1.0
    m_flat = np.zeros((LP,), np.float32)
    m_flat[:LIMG] = m.reshape(-1)
    mask = np.ascontiguousarray(np.broadcast_to(m_flat, (NC, LP)))

    z_flat = pl.pallas_call(
        _deq_kernel,
        out_shape=jax.ShapeDtypeStruct((NC, LP), jnp.float32),
        in_specs=[
            pl.BlockSpec(memory_space=pltpu.MemorySpace.VMEM),   # x_lanes
            pl.BlockSpec(memory_space=pltpu.MemorySpace.VMEM),   # wz_big
            pl.BlockSpec(memory_space=pltpu.MemorySpace.VMEM),   # wx_big
            pl.BlockSpec(memory_space=pltpu.MemorySpace.VMEM),   # interior mask
        ],
        out_specs=pl.BlockSpec(memory_space=pltpu.MemorySpace.VMEM),
    )(x_lanes, jnp.asarray(wz_big), jnp.asarray(wx_big), jnp.asarray(mask))

    # (N*COUT, 384) -> (N, COUT, HP, WP) -> strip the padding ring -> NCHW.
    z = z_flat[:, :LIMG].reshape(N, COUT, HP, WP)[:, :, 1:H + 1, 1:W + 1]
    return z.astype(x.dtype)


# ---------------- pure-JAX reference (mirrors the PyTorch forward) ----------------
def _conv3x3_ref(inp, w_hwio):
    return lax.conv_general_dilated(
        inp, w_hwio, window_strides=(1, 1), padding="SAME",
        dimension_numbers=("NCHW", "HWIO", "NCHW"))


def _f_ref(z, x, wz, wx):
    return jnp.tanh(_conv3x3_ref(z, wz) + _conv3x3_ref(x, wx))


def _deq_ref(x, wz, wx):
    z = jnp.ones((x.shape[0], COUT, H, W), jnp.float32)
    for _ in range(NITER):          # solver: fixed-point (forward) iteration
        z = _f_ref(z, x, wz, wx)
    return _f_ref(z, x, wz, wx)     # the extra f(z, x) from the module's forward


if __name__ == "__main__":
    key = jax.random.PRNGKey(0)
    kx, kwz, kwx = jax.random.split(key, 3)

    x = jax.random.normal(kx, (N, CIN, H, W), dtype=jnp.float32)
    # Deterministic, contractive-ish weights so the fixed-point iteration converges.
    wz = 0.25 * jax.random.normal(kwz, (K, K, COUT, COUT), dtype=jnp.float32)
    wx = 0.50 * jax.random.normal(kwx, (K, K, CIN, COUT), dtype=jnp.float32)

    z = jax.block_until_ready(deq_fixed_point_conv(x, wz, wx))
    z_ref = jax.block_until_ready(_deq_ref(x, wz, wx))

    # Tolerance allows for MXU multi-pass f32 dot vs XLA conv accumulation differences
    # propagated through 13 dependent iterations; real layout/weight bugs are O(0.1-1).
    np.testing.assert_allclose(np.asarray(z), np.asarray(z_ref), rtol=1e-3, atol=1e-3)

    print("KERNEL_OK")
</pallas_src>

<mosaic_0001>
module attributes {stable_mosaic.version = 11 : i64} {
  func.func @_deq_kernel(%arg0: memref<8x384xf32, #tpu.memory_space<vmem>>, %arg1: memref<8x72xf32, #tpu.memory_space<vmem>>, %arg2: memref<8x72xf32, #tpu.memory_space<vmem>>, %arg3: memref<8x384xf32, #tpu.memory_space<vmem>>, %arg4: memref<8x384xf32, #tpu.memory_space<vmem>>) attributes {dimension_semantics = [], scalar_prefetch = 0 : i64, scratch_operands = 0 : i64, tpu.core_type = #tpu.core_type<tc>} {
    %c0 = arith.constant 0 : index
    %c0_0 = arith.constant 0 : index
    %0 = vector.load %arg1[%c0, %c0_0] : memref<8x72xf32, #tpu.memory_space<vmem>>, vector<8x72xf32>
    %c0_1 = arith.constant 0 : index
    %c0_2 = arith.constant 0 : index
    %1 = vector.load %arg2[%c0_1, %c0_2] : memref<8x72xf32, #tpu.memory_space<vmem>>, vector<8x72xf32>
    %c0_3 = arith.constant 0 : index
    %c0_4 = arith.constant 0 : index
    %2 = vector.load %arg3[%c0_3, %c0_4] : memref<8x384xf32, #tpu.memory_space<vmem>>, vector<8x384xf32>
    %c0_5 = arith.constant 0 : index
    %c0_6 = arith.constant 0 : index
    %3 = vector.load %arg0[%c0_5, %c0_6] : memref<8x384xf32, #tpu.memory_space<vmem>>, vector<8x384xf32>
    %c19_i32 = arith.constant 19 : i32
    %4 = tpu.dynamic_rotate %3 by %c19_i32 dim 1 : vector<8x384xf32>, i32 -> vector<8x384xf32>
    %c18_i32 = arith.constant 18 : i32
    %5 = tpu.dynamic_rotate %3 by %c18_i32 dim 1 : vector<8x384xf32>, i32 -> vector<8x384xf32>
    %c17_i32 = arith.constant 17 : i32
    %6 = tpu.dynamic_rotate %3 by %c17_i32 dim 1 : vector<8x384xf32>, i32 -> vector<8x384xf32>
    %c1_i32 = arith.constant 1 : i32
    %7 = tpu.dynamic_rotate %3 by %c1_i32 dim 1 : vector<8x384xf32>, i32 -> vector<8x384xf32>
    %c0_i32 = arith.constant 0 : i32
    %8 = tpu.dynamic_rotate %3 by %c0_i32 dim 1 : vector<8x384xf32>, i32 -> vector<8x384xf32>
    %c383_i32 = arith.constant 383 : i32
    %9 = tpu.dynamic_rotate %3 by %c383_i32 dim 1 : vector<8x384xf32>, i32 -> vector<8x384xf32>
    %c367_i32 = arith.constant 367 : i32
    %10 = tpu.dynamic_rotate %3 by %c367_i32 dim 1 : vector<8x384xf32>, i32 -> vector<8x384xf32>
    %c366_i32 = arith.constant 366 : i32
    %11 = tpu.dynamic_rotate %3 by %c366_i32 dim 1 : vector<8x384xf32>, i32 -> vector<8x384xf32>
    %c365_i32 = arith.constant 365 : i32
    %12 = tpu.dynamic_rotate %3 by %c365_i32 dim 1 : vector<8x384xf32>, i32 -> vector<8x384xf32>
    %13 = tpu.concatenate %4, %5, %6, %7, %8, %9, %10, %11, %12 in 0 : vector<8x384xf32>, vector<8x384xf32>, vector<8x384xf32>, vector<8x384xf32>, vector<8x384xf32>, vector<8x384xf32>, vector<8x384xf32>, vector<8x384xf32>, vector<8x384xf32> -> vector<72x384xf32>
    %cst = arith.constant dense<0.000000e+00> : vector<8x384xf32>
    %14 = tpu.matmul %1, %13, %cst {dimension_numbers = #tpu.dot_dimension_numbers<[1], [0], [0], [1], [0, 0, 1, 1], [], []>} : vector<8x72xf32>, vector<72x384xf32>, vector<8x384xf32> -> vector<8x384xf32>
    %c0_i32_7 = arith.constant 0 : i32
    %c19_i32_8 = arith.constant 19 : i32
    %15 = tpu.dynamic_rotate %2 by %c19_i32_8 dim 1 : vector<8x384xf32>, i32 -> vector<8x384xf32>
    %c18_i32_9 = arith.constant 18 : i32
    %16 = tpu.dynamic_rotate %2 by %c18_i32_9 dim 1 : vector<8x384xf32>, i32 -> vector<8x384xf32>
    %c17_i32_10 = arith.constant 17 : i32
    %17 = tpu.dynamic_rotate %2 by %c17_i32_10 dim 1 : vector<8x384xf32>, i32 -> vector<8x384xf32>
    %c1_i32_11 = arith.constant 1 : i32
    %18 = tpu.dynamic_rotate %2 by %c1_i32_11 dim 1 : vector<8x384xf32>, i32 -> vector<8x384xf32>
    %c0_i32_12 = arith.constant 0 : i32
    %19 = tpu.dynamic_rotate %2 by %c0_i32_12 dim 1 : vector<8x384xf32>, i32 -> vector<8x384xf32>
    %c383_i32_13 = arith.constant 383 : i32
    %20 = tpu.dynamic_rotate %2 by %c383_i32_13 dim 1 : vector<8x384xf32>, i32 -> vector<8x384xf32>
    %c367_i32_14 = arith.constant 367 : i32
    %21 = tpu.dynamic_rotate %2 by %c367_i32_14 dim 1 : vector<8x384xf32>, i32 -> vector<8x384xf32>
    %c366_i32_15 = arith.constant 366 : i32
    %22 = tpu.dynamic_rotate %2 by %c366_i32_15 dim 1 : vector<8x384xf32>, i32 -> vector<8x384xf32>
    %c365_i32_16 = arith.constant 365 : i32
    %23 = tpu.dynamic_rotate %2 by %c365_i32_16 dim 1 : vector<8x384xf32>, i32 -> vector<8x384xf32>
    %24 = tpu.concatenate %15, %16, %17, %18, %19, %20, %21, %22, %23 in 0 : vector<8x384xf32>, vector<8x384xf32>, vector<8x384xf32>, vector<8x384xf32>, vector<8x384xf32>, vector<8x384xf32>, vector<8x384xf32>, vector<8x384xf32>, vector<8x384xf32> -> vector<72x384xf32>
    %cst_17 = arith.constant dense<0.000000e+00> : vector<8x384xf32>
    %25 = tpu.matmul %0, %24, %cst_17 {dimension_numbers = #tpu.dot_dimension_numbers<[1], [0], [0], [1], [0, 0, 1, 1], [], []>} : vector<8x72xf32>, vector<72x384xf32>, vector<8x384xf32> -> vector<8x384xf32>
    %26 = arith.addf %14, %25 : vector<8x384xf32>
    %27 = math.tanh %26 : vector<8x384xf32>
    %28 = arith.mulf %2, %27 : vector<8x384xf32>
    %c1_i32_18 = arith.constant 1 : i32
    %c19_i32_19 = arith.constant 19 : i32
    %29 = tpu.dynamic_rotate %28 by %c19_i32_19 dim 1 : vector<8x384xf32>, i32 -> vector<8x384xf32>
    %c18_i32_20 = arith.constant 18 : i32
    %30 = tpu.dynamic_rotate %28 by %c18_i32_20 dim 1 : vector<8x384xf32>, i32 -> vector<8x384xf32>
    %c17_i32_21 = arith.constant 17 : i32
    %31 = tpu.dynamic_rotate %28 by %c17_i32_21 dim 1 : vector<8x384xf32>, i32 -> vector<8x384xf32>
    %c1_i32_22 = arith.constant 1 : i32
    %32 = tpu.dynamic_rotate %28 by %c1_i32_22 dim 1 : vector<8x384xf32>, i32 -> vector<8x384xf32>
    %c0_i32_23 = arith.constant 0 : i32
    %33 = tpu.dynamic_rotate %28 by %c0_i32_23 dim 1 : vector<8x384xf32>, i32 -> vector<8x384xf32>
    %c383_i32_24 = arith.constant 383 : i32
    %34 = tpu.dynamic_rotate %28 by %c383_i32_24 dim 1 : vector<8x384xf32>, i32 -> vector<8x384xf32>
    %c367_i32_25 = arith.constant 367 : i32
    %35 = tpu.dynamic_rotate %28 by %c367_i32_25 dim 1 : vector<8x384xf32>, i32 -> vector<8x384xf32>
    %c366_i32_26 = arith.constant 366 : i32
    %36 = tpu.dynamic_rotate %28 by %c366_i32_26 dim 1 : vector<8x384xf32>, i32 -> vector<8x384xf32>
    %c365_i32_27 = arith.constant 365 : i32
    %37 = tpu.dynamic_rotate %28 by %c365_i32_27 dim 1 : vector<8x384xf32>, i32 -> vector<8x384xf32>
    %38 = tpu.concatenate %29, %30, %31, %32, %33, %34, %35, %36, %37 in 0 : vector<8x384xf32>, vector<8x384xf32>, vector<8x384xf32>, vector<8x384xf32>, vector<8x384xf32>, vector<8x384xf32>, vector<8x384xf32>, vector<8x384xf32>, vector<8x384xf32> -> vector<72x384xf32>
    %cst_28 = arith.constant dense<0.000000e+00> : vector<8x384xf32>
    %39 = tpu.matmul %0, %38, %cst_28 {dimension_numbers = #tpu.dot_dimension_numbers<[1], [0], [0], [1], [0, 0, 1, 1], [], []>} : vector<8x72xf32>, vector<72x384xf32>, vector<8x384xf32> -> vector<8x384xf32>
    %40 = arith.addf %14, %39 : vector<8x384xf32>
    %41 = math.tanh %40 : vector<8x384xf32>
    %42 = arith.mulf %2, %41 : vector<8x384xf32>
    %c2_i32 = arith.constant 2 : i32
    %c19_i32_29 = arith.constant 19 : i32
    %43 = tpu.dynamic_rotate %42 by %c19_i32_29 dim 1 : vector<8x384xf32>, i32 -> vector<8x384xf32>
    %c18_i32_30 = arith.constant 18 : i32
    %44 = tpu.dynamic_rotate %42 by %c18_i32_30 dim 1 : vector<8x384xf32>, i32 -> vector<8x384xf32>
    %c17_i32_31 = arith.constant 17 : i32
    %45 = tpu.dynamic_rotate %42 by %c17_i32_31 dim 1 : vector<8x384xf32>, i32 -> vector<8x384xf32>
    %c1_i32_32 = arith.constant 1 : i32
    %46 = tpu.dynamic_rotate %42 by %c1_i32_32 dim 1 : vector<8x384xf32>, i32 -> vector<8x384xf32>
    %c0_i32_33 = arith.constant 0 : i32
    %47 = tpu.dynamic_rotate %42 by %c0_i32_33 dim 1 : vector<8x384xf32>, i32 -> vector<8x384xf32>
    %c383_i32_34 = arith.constant 383 : i32
    %48 = tpu.dynamic_rotate %42 by %c383_i32_34 dim 1 : vector<8x384xf32>, i32 -> vector<8x384xf32>
    %c367_i32_35 = arith.constant 367 : i32
    %49 = tpu.dynamic_rotate %42 by %c367_i32_35 dim 1 : vector<8x384xf32>, i32 -> vector<8x384xf32>
    %c366_i32_36 = arith.constant 366 : i32
    %50 = tpu.dynamic_rotate %42 by %c366_i32_36 dim 1 : vector<8x384xf32>, i32 -> vector<8x384xf32>
    %c365_i32_37 = arith.constant 365 : i32
    %51 = tpu.dynamic_rotate %42 by %c365_i32_37 dim 1 : vector<8x384xf32>, i32 -> vector<8x384xf32>
    %52 = tpu.concatenate %43, %44, %45, %46, %47, %48, %49, %50, %51 in 0 : vector<8x384xf32>, vector<8x384xf32>, vector<8x384xf32>, vector<8x384xf32>, vector<8x384xf32>, vector<8x384xf32>, vector<8x384xf32>, vector<8x384xf32>, vector<8x384xf32> -> vector<72x384xf32>
    %cst_38 = arith.constant dense<0.000000e+00> : vector<8x384xf32>
    %53 = tpu.matmul %0, %52, %cst_38 {dimension_numbers = #tpu.dot_dimension_numbers<[1], [0], [0], [1], [0, 0, 1, 1], [], []>} : vector<8x72xf32>, vector<72x384xf32>, vector<8x384xf32> -> vector<8x384xf32>
    %54 = arith.addf %14, %53 : vector<8x384xf32>
    %55 = math.tanh %54 : vector<8x384xf32>
    %56 = arith.mulf %2, %55 : vector<8x384xf32>
    %c3_i32 = arith.constant 3 : i32
    %c19_i32_39 = arith.constant 19 : i32
    %57 = tpu.dynamic_rotate %56 by %c19_i32_39 dim 1 : vector<8x384xf32>, i32 -> vector<8x384xf32>
    %c18_i32_40 = arith.constant 18 : i32
    %58 = tpu.dynamic_rotate %56 by %c18_i32_40 dim 1 : vector<8x384xf32>, i32 -> vector<8x384xf32>
    %c17_i32_41 = arith.constant 17 : i32
    %59 = tpu.dynamic_rotate %56 by %c17_i32_41 dim 1 : vector<8x384xf32>, i32 -> vector<8x384xf32>
    %c1_i32_42 = arith.constant 1 : i32
    %60 = tpu.dynamic_rotate %56 by %c1_i32_42 dim 1 : vector<8x384xf32>, i32 -> vector<8x384xf32>
    %c0_i32_43 = arith.constant 0 : i32
    %61 = tpu.dynamic_rotate %56 by %c0_i32_43 dim 1 : vector<8x384xf32>, i32 -> vector<8x384xf32>
    %c383_i32_44 = arith.constant 383 : i32
    %62 = tpu.dynamic_rotate %56 by %c383_i32_44 dim 1 : vector<8x384xf32>, i32 -> vector<8x384xf32>
    %c367_i32_45 = arith.constant 367 : i32
    %63 = tpu.dynamic_rotate %56 by %c367_i32_45 dim 1 : vector<8x384xf32>, i32 -> vector<8x384xf32>
    %c366_i32_46 = arith.constant 366 : i32
    %64 = tpu.dynamic_rotate %56 by %c366_i32_46 dim 1 : vector<8x384xf32>, i32 -> vector<8x384xf32>
    %c365_i32_47 = arith.constant 365 : i32
    %65 = tpu.dynamic_rotate %56 by %c365_i32_47 dim 1 : vector<8x384xf32>, i32 -> vector<8x384xf32>
    %66 = tpu.concatenate %57, %58, %59, %60, %61, %62, %63, %64, %65 in 0 : vector<8x384xf32>, vector<8x384xf32>, vector<8x384xf32>, vector<8x384xf32>, vector<8x384xf32>, vector<8x384xf32>, vector<8x384xf32>, vector<8x384xf32>, vector<8x384xf32> -> vector<72x384xf32>
    %cst_48 = arith.constant dense<0.000000e+00> : vector<8x384xf32>
    %67 = tpu.matmul %0, %66, %cst_48 {dimension_numbers = #tpu.dot_dimension_numbers<[1], [0], [0], [1], [0, 0, 1, 1], [], []>} : vector<8x72xf32>, vector<72x384xf32>, vector<8x384xf32> -> vector<8x384xf32>
    %68 = arith.addf %14, %67 : vector<8x384xf32>
    %69 = math.tanh %68 : vector<8x384xf32>
    %70 = arith.mulf %2, %69 : vector<8x384xf32>
    %c4_i32 = arith.constant 4 : i32
    %c19_i32_49 = arith.constant 19 : i32
    %71 = tpu.dynamic_rotate %70 by %c19_i32_49 dim 1 : vector<8x384xf32>, i32 -> vector<8x384xf32>
    %c18_i32_50 = arith.constant 18 : i32
    %72 = tpu.dynamic_rotate %70 by %c18_i32_50 dim 1 : vector<8x384xf32>, i32 -> vector<8x384xf32>
    %c17_i32_51 = arith.constant 17 : i32
    %73 = tpu.dynamic_rotate %70 by %c17_i32_51 dim 1 : vector<8x384xf32>, i32 -> vector<8x384xf32>
    %c1_i32_52 = arith.constant 1 : i32
    %74 = tpu.dynamic_rotate %70 by %c1_i32_52 dim 1 : vector<8x384xf32>, i32 -> vector<8x384xf32>
    %c0_i32_53 = arith.constant 0 : i32
    %75 = tpu.dynamic_rotate %70 by %c0_i32_53 dim 1 : vector<8x384xf32>, i32 -> vector<8x384xf32>
    %c383_i32_54 = arith.constant 383 : i32
    %76 = tpu.dynamic_rotate %70 by %c383_i32_54 dim 1 : vector<8x384xf32>, i32 -> vector<8x384xf32>
    %c367_i32_55 = arith.constant 367 : i32
    %77 = tpu.dynamic_rotate %70 by %c367_i32_55 dim 1 : vector<8x384xf32>, i32 -> vector<8x384xf32>
    %c366_i32_56 = arith.constant 366 : i32
    %78 = tpu.dynamic_rotate %70 by %c366_i32_56 dim 1 : vector<8x384xf32>, i32 -> vector<8x384xf32>
    %c365_i32_57 = arith.constant 365 : i32
    %79 = tpu.dynamic_rotate %70 by %c365_i32_57 dim 1 : vector<8x384xf32>, i32 -> vector<8x384xf32>
    %80 = tpu.concatenate %71, %72, %73, %74, %75, %76, %77, %78, %79 in 0 : vector<8x384xf32>, vector<8x384xf32>, vector<8x384xf32>, vector<8x384xf32>, vector<8x384xf32>, vector<8x384xf32>, vector<8x384xf32>, vector<8x384xf32>, vector<8x384xf32> -> vector<72x384xf32>
    %cst_58 = arith.constant dense<0.000000e+00> : vector<8x384xf32>
    %81 = tpu.matmul %0, %80, %cst_58 {dimension_numbers = #tpu.dot_dimension_numbers<[1], [0], [0], [1], [0, 0, 1, 1], [], []>} : vector<8x72xf32>, vector<72x384xf32>, vector<8x384xf32> -> vector<8x384xf32>
    %82 = arith.addf %14, %81 : vector<8x384xf32>
    %83 = math.tanh %82 : vector<8x384xf32>
    %84 = arith.mulf %2, %83 : vector<8x384xf32>
    %c5_i32 = arith.constant 5 : i32
    %c19_i32_59 = arith.constant 19 : i32
    %85 = tpu.dynamic_rotate %84 by %c19_i32_59 dim 1 : vector<8x384xf32>, i32 -> vector<8x384xf32>
    %c18_i32_60 = arith.constant 18 : i32
    %86 = tpu.dynamic_rotate %84 by %c18_i32_60 dim 1 : vector<8x384xf32>, i32 -> vector<8x384xf32>
    %c17_i32_61 = arith.constant 17 : i32
    %87 = tpu.dynamic_rotate %84 by %c17_i32_61 dim 1 : vector<8x384xf32>, i32 -> vector<8x384xf32>
    %c1_i32_62 = arith.constant 1 : i32
    %88 = tpu.dynamic_rotate %84 by %c1_i32_62 dim 1 : vector<8x384xf32>, i32 -> vector<8x384xf32>
    %c0_i32_63 = arith.constant 0 : i32
    %89 = tpu.dynamic_rotate %84 by %c0_i32_63 dim 1 : vector<8x384xf32>, i32 -> vector<8x384xf32>
    %c383_i32_64 = arith.constant 383 : i32
    %90 = tpu.dynamic_rotate %84 by %c383_i32_64 dim 1 : vector<8x384xf32>, i32 -> vector<8x384xf32>
    %c367_i32_65 = arith.constant 367 : i32
    %91 = tpu.dynamic_rotate %84 by %c367_i32_65 dim 1 : vector<8x384xf32>, i32 -> vector<8x384xf32>
    %c366_i32_66 = arith.constant 366 : i32
    %92 = tpu.dynamic_rotate %84 by %c366_i32_66 dim 1 : vector<8x384xf32>, i32 -> vector<8x384xf32>
    %c365_i32_67 = arith.constant 365 : i32
    %93 = tpu.dynamic_rotate %84 by %c365_i32_67 dim 1 : vector<8x384xf32>, i32 -> vector<8x384xf32>
    %94 = tpu.concatenate %85, %86, %87, %88, %89, %90, %91, %92, %93 in 0 : vector<8x384xf32>, vector<8x384xf32>, vector<8x384xf32>, vector<8x384xf32>, vector<8x384xf32>, vector<8x384xf32>, vector<8x384xf32>, vector<8x384xf32>, vector<8x384xf32> -> vector<72x384xf32>
    %cst_68 = arith.constant dense<0.000000e+00> : vector<8x384xf32>
    %95 = tpu.matmul %0, %94, %cst_68 {dimension_numbers = #tpu.dot_dimension_numbers<[1], [0], [0], [1], [0, 0, 1, 1], [], []>} : vector<8x72xf32>, vector<72x384xf32>, vector<8x384xf32> -> vector<8x384xf32>
    %96 = arith.addf %14, %95 : vector<8x384xf32>
    %97 = math.tanh %96 : vector<8x384xf32>
    %98 = arith.mulf %2, %97 : vector<8x384xf32>
    %c6_i32 = arith.constant 6 : i32
    %c19_i32_69 = arith.constant 19 : i32
    %99 = tpu.dynamic_rotate %98 by %c19_i32_69 dim 1 : vector<8x384xf32>, i32 -> vector<8x384xf32>
    %c18_i32_70 = arith.constant 18 : i32
    %100 = tpu.dynamic_rotate %98 by %c18_i32_70 dim 1 : vector<8x384xf32>, i32 -> vector<8x384xf32>
    %c17_i32_71 = arith.constant 17 : i32
    %101 = tpu.dynamic_rotate %98 by %c17_i32_71 dim 1 : vector<8x384xf32>, i32 -> vector<8x384xf32>
    %c1_i32_72 = arith.constant 1 : i32
    %102 = tpu.dynamic_rotate %98 by %c1_i32_72 dim 1 : vector<8x384xf32>, i32 -> vector<8x384xf32>
    %c0_i32_73 = arith.constant 0 : i32
    %103 = tpu.dynamic_rotate %98 by %c0_i32_73 dim 1 : vector<8x384xf32>, i32 -> vector<8x384xf32>
    %c383_i32_74 = arith.constant 383 : i32
    %104 = tpu.dynamic_rotate %98 by %c383_i32_74 dim 1 : vector<8x384xf32>, i32 -> vector<8x384xf32>
    %c367_i32_75 = arith.constant 367 : i32
    %105 = tpu.dynamic_rotate %98 by %c367_i32_75 dim 1 : vector<8x384xf32>, i32 -> vector<8x384xf32>
    %c366_i32_76 = arith.constant 366 : i32
    %106 = tpu.dynamic_rotate %98 by %c366_i32_76 dim 1 : vector<8x384xf32>, i32 -> vector<8x384xf32>
    %c365_i32_77 = arith.constant 365 : i32
    %107 = tpu.dynamic_rotate %98 by %c365_i32_77 dim 1 : vector<8x384xf32>, i32 -> vector<8x384xf32>
    %108 = tpu.concatenate %99, %100, %101, %102, %103, %104, %105, %106, %107 in 0 : vector<8x384xf32>, vector<8x384xf32>, vector<8x384xf32>, vector<8x384xf32>, vector<8x384xf32>, vector<8x384xf32>, vector<8x384xf32>, vector<8x384xf32>, vector<8x384xf32> -> vector<72x384xf32>
    %cst_78 = arith.constant dense<0.000000e+00> : vector<8x384xf32>
    %109 = tpu.matmul %0, %108, %cst_78 {dimension_numbers = #tpu.dot_dimension_numbers<[1], [0], [0], [1], [0, 0, 1, 1], [], []>} : vector<8x72xf32>, vector<72x384xf32>, vector<8x384xf32> -> vector<8x384xf32>
    %110 = arith.addf %14, %109 : vector<8x384xf32>
    %111 = math.tanh %110 : vector<8x384xf32>
    %112 = arith.mulf %2, %111 : vector<8x384xf32>
    %c7_i32 = arith.constant 7 : i32
    %c19_i32_79 = arith.constant 19 : i32
    %113 = tpu.dynamic_rotate %112 by %c19_i32_79 dim 1 : vector<8x384xf32>, i32 -> vector<8x384xf32>
    %c18_i32_80 = arith.constant 18 : i32
    %114 = tpu.dynamic_rotate %112 by %c18_i32_80 dim 1 : vector<8x384xf32>, i32 -> vector<8x384xf32>
    %c17_i32_81 = arith.constant 17 : i32
    %115 = tpu.dynamic_rotate %112 by %c17_i32_81 dim 1 : vector<8x384xf32>, i32 -> vector<8x384xf32>
    %c1_i32_82 = arith.constant 1 : i32
    %116 = tpu.dynamic_rotate %112 by %c1_i32_82 dim 1 : vector<8x384xf32>, i32 -> vector<8x384xf32>
    %c0_i32_83 = arith.constant 0 : i32
    %117 = tpu.dynamic_rotate %112 by %c0_i32_83 dim 1 : vector<8x384xf32>, i32 -> vector<8x384xf32>
    %c383_i32_84 = arith.constant 383 : i32
    %118 = tpu.dynamic_rotate %112 by %c383_i32_84 dim 1 : vector<8x384xf32>, i32 -> vector<8x384xf32>
    %c367_i32_85 = arith.constant 367 : i32
    %119 = tpu.dynamic_rotate %112 by %c367_i32_85 dim 1 : vector<8x384xf32>, i32 -> vector<8x384xf32>
    %c366_i32_86 = arith.constant 366 : i32
    %120 = tpu.dynamic_rotate %112 by %c366_i32_86 dim 1 : vector<8x384xf32>, i32 -> vector<8x384xf32>
    %c365_i32_87 = arith.constant 365 : i32
    %121 = tpu.dynamic_rotate %112 by %c365_i32_87 dim 1 : vector<8x384xf32>, i32 -> vector<8x384xf32>
    %122 = tpu.concatenate %113, %114, %115, %116, %117, %118, %119, %120, %121 in 0 : vector<8x384xf32>, vector<8x384xf32>, vector<8x384xf32>, vector<8x384xf32>, vector<8x384xf32>, vector<8x384xf32>, vector<8x384xf32>, vector<8x384xf32>, vector<8x384xf32> -> vector<72x384xf32>
    %cst_88 = arith.constant dense<0.000000e+00> : vector<8x384xf32>
    %123 = tpu.matmul %0, %122, %cst_88 {dimension_numbers = #tpu.dot_dimension_numbers<[1], [0], [0], [1], [0, 0, 1, 1], [], []>} : vector<8x72xf32>, vector<72x384xf32>, vector<8x384xf32> -> vector<8x384xf32>
    %124 = arith.addf %14, %123 : vector<8x384xf32>
    %125 = math.tanh %124 : vector<8x384xf32>
    %126 = arith.mulf %2, %125 : vector<8x384xf32>
    %c8_i32 = arith.constant 8 : i32
    %c19_i32_89 = arith.constant 19 : i32
    %127 = tpu.dynamic_rotate %126 by %c19_i32_89 dim 1 : vector<8x384xf32>, i32 -> vector<8x384xf32>
    %c18_i32_90 = arith.constant 18 : i32
    %128 = tpu.dynamic_rotate %126 by %c18_i32_90 dim 1 : vector<8x384xf32>, i32 -> vector<8x384xf32>
    %c17_i32_91 = arith.constant 17 : i32
    %129 = tpu.dynamic_rotate %126 by %c17_i32_91 dim 1 : vector<8x384xf32>, i32 -> vector<8x384xf32>
    %c1_i32_92 = arith.constant 1 : i32
    %130 = tpu.dynamic_rotate %126 by %c1_i32_92 dim 1 : vector<8x384xf32>, i32 -> vector<8x384xf32>
    %c0_i32_93 = arith.constant 0 : i32
    %131 = tpu.dynamic_rotate %126 by %c0_i32_93 dim 1 : vector<8x384xf32>, i32 -> vector<8x384xf32>
    %c383_i32_94 = arith.constant 383 : i32
    %132 = tpu.dynamic_rotate %126 by %c383_i32_94 dim 1 : vector<8x384xf32>, i32 -> vector<8x384xf32>
    %c367_i32_95 = arith.constant 367 : i32
    %133 = tpu.dynamic_rotate %126 by %c367_i32_95 dim 1 : vector<8x384xf32>, i32 -> vector<8x384xf32>
    %c366_i32_96 = arith.constant 366 : i32
    %134 = tpu.dynamic_rotate %126 by %c366_i32_96 dim 1 : vector<8x384xf32>, i32 -> vector<8x384xf32>
    %c365_i32_97 = arith.constant 365 : i32
    %135 = tpu.dynamic_rotate %126 by %c365_i32_97 dim 1 : vector<8x384xf32>, i32 -> vector<8x384xf32>
    %136 = tpu.concatenate %127, %128, %129, %130, %131, %132, %133, %134, %135 in 0 : vector<8x384xf32>, vector<8x384xf32>, vector<8x384xf32>, vector<8x384xf32>, vector<8x384xf32>, vector<8x384xf32>, vector<8x384xf32>, vector<8x384xf32>, vector<8x384xf32> -> vector<72x384xf32>
    %cst_98 = arith.constant dense<0.000000e+00> : vector<8x384xf32>
    %137 = tpu.matmul %0, %136, %cst_98 {dimension_numbers = #tpu.dot_dimension_numbers<[1], [0], [0], [1], [0, 0, 1, 1], [], []>} : vector<8x72xf32>, vector<72x384xf32>, vector<8x384xf32> -> vector<8x384xf32>
    %138 = arith.addf %14, %137 : vector<8x384xf32>
    %139 = math.tanh %138 : vector<8x384xf32>
    %140 = arith.mulf %2, %139 : vector<8x384xf32>
    %c9_i32 = arith.constant 9 : i32
    %c19_i32_99 = arith.constant 19 : i32
    %141 = tpu.dynamic_rotate %140 by %c19_i32_99 dim 1 : vector<8x384xf32>, i32 -> vector<8x384xf32>
    %c18_i32_100 = arith.constant 18 : i32
    %142 = tpu.dynamic_rotate %140 by %c18_i32_100 dim 1 : vector<8x384xf32>, i32 -> vector<8x384xf32>
    %c17_i32_101 = arith.constant 17 : i32
    %143 = tpu.dynamic_rotate %140 by %c17_i32_101 dim 1 : vector<8x384xf32>, i32 -> vector<8x384xf32>
    %c1_i32_102 = arith.constant 1 : i32
    %144 = tpu.dynamic_rotate %140 by %c1_i32_102 dim 1 : vector<8x384xf32>, i32 -> vector<8x384xf32>
    %c0_i32_103 = arith.constant 0 : i32
    %145 = tpu.dynamic_rotate %140 by %c0_i32_103 dim 1 : vector<8x384xf32>, i32 -> vector<8x384xf32>
    %c383_i32_104 = arith.constant 383 : i32
    %146 = tpu.dynamic_rotate %140 by %c383_i32_104 dim 1 : vector<8x384xf32>, i32 -> vector<8x384xf32>
    %c367_i32_105 = arith.constant 367 : i32
    %147 = tpu.dynamic_rotate %140 by %c367_i32_105 dim 1 : vector<8x384xf32>, i32 -> vector<8x384xf32>
    %c366_i32_106 = arith.constant 366 : i32
    %148 = tpu.dynamic_rotate %140 by %c366_i32_106 dim 1 : vector<8x384xf32>, i32 -> vector<8x384xf32>
    %c365_i32_107 = arith.constant 365 : i32
    %149 = tpu.dynamic_rotate %140 by %c365_i32_107 dim 1 : vector<8x384xf32>, i32 -> vector<8x384xf32>
    %150 = tpu.concatenate %141, %142, %143, %144, %145, %146, %147, %148, %149 in 0 : vector<8x384xf32>, vector<8x384xf32>, vector<8x384xf32>, vector<8x384xf32>, vector<8x384xf32>, vector<8x384xf32>, vector<8x384xf32>, vector<8x384xf32>, vector<8x384xf32> -> vector<72x384xf32>
    %cst_108 = arith.constant dense<0.000000e+00> : vector<8x384xf32>
    %151 = tpu.matmul %0, %150, %cst_108 {dimension_numbers = #tpu.dot_dimension_numbers<[1], [0], [0], [1], [0, 0, 1, 1], [], []>} : vector<8x72xf32>, vector<72x384xf32>, vector<8x384xf32> -> vector<8x384xf32>
    %152 = arith.addf %14, %151 : vector<8x384xf32>
    %153 = math.tanh %152 : vector<8x384xf32>
    %154 = arith.mulf %2, %153 : vector<8x384xf32>
    %c10_i32 = arith.constant 10 : i32
    %c19_i32_109 = arith.constant 19 : i32
    %155 = tpu.dynamic_rotate %154 by %c19_i32_109 dim 1 : vector<8x384xf32>, i32 -> vector<8x384xf32>
    %c18_i32_110 = arith.constant 18 : i32
    %156 = tpu.dynamic_rotate %154 by %c18_i32_110 dim 1 : vector<8x384xf32>, i32 -> vector<8x384xf32>
    %c17_i32_111 = arith.constant 17 : i32
    %157 = tpu.dynamic_rotate %154 by %c17_i32_111 dim 1 : vector<8x384xf32>, i32 -> vector<8x384xf32>
    %c1_i32_112 = arith.constant 1 : i32
    %158 = tpu.dynamic_rotate %154 by %c1_i32_112 dim 1 : vector<8x384xf32>, i32 -> vector<8x384xf32>
    %c0_i32_113 = arith.constant 0 : i32
    %159 = tpu.dynamic_rotate %154 by %c0_i32_113 dim 1 : vector<8x384xf32>, i32 -> vector<8x384xf32>
    %c383_i32_114 = arith.constant 383 : i32
    %160 = tpu.dynamic_rotate %154 by %c383_i32_114 dim 1 : vector<8x384xf32>, i32 -> vector<8x384xf32>
    %c367_i32_115 = arith.constant 367 : i32
    %161 = tpu.dynamic_rotate %154 by %c367_i32_115 dim 1 : vector<8x384xf32>, i32 -> vector<8x384xf32>
    %c366_i32_116 = arith.constant 366 : i32
    %162 = tpu.dynamic_rotate %154 by %c366_i32_116 dim 1 : vector<8x384xf32>, i32 -> vector<8x384xf32>
    %c365_i32_117 = arith.constant 365 : i32
    %163 = tpu.dynamic_rotate %154 by %c365_i32_117 dim 1 : vector<8x384xf32>, i32 -> vector<8x384xf32>
    %164 = tpu.concatenate %155, %156, %157, %158, %159, %160, %161, %162, %163 in 0 : vector<8x384xf32>, vector<8x384xf32>, vector<8x384xf32>, vector<8x384xf32>, vector<8x384xf32>, vector<8x384xf32>, vector<8x384xf32>, vector<8x384xf32>, vector<8x384xf32> -> vector<72x384xf32>
    %cst_118 = arith.constant dense<0.000000e+00> : vector<8x384xf32>
    %165 = tpu.matmul %0, %164, %cst_118 {dimension_numbers = #tpu.dot_dimension_numbers<[1], [0], [0], [1], [0, 0, 1, 1], [], []>} : vector<8x72xf32>, vector<72x384xf32>, vector<8x384xf32> -> vector<8x384xf32>
    %166 = arith.addf %14, %165 : vector<8x384xf32>
    %167 = math.tanh %166 : vector<8x384xf32>
    %168 = arith.mulf %2, %167 : vector<8x384xf32>
    %c11_i32 = arith.constant 11 : i32
    %c19_i32_119 = arith.constant 19 : i32
    %169 = tpu.dynamic_rotate %168 by %c19_i32_119 dim 1 : vector<8x384xf32>, i32 -> vector<8x384xf32>
    %c18_i32_120 = arith.constant 18 : i32
    %170 = tpu.dynamic_rotate %168 by %c18_i32_120 dim 1 : vector<8x384xf32>, i32 -> vector<8x384xf32>
    %c17_i32_121 = arith.constant 17 : i32
    %171 = tpu.dynamic_rotate %168 by %c17_i32_121 dim 1 : vector<8x384xf32>, i32 -> vector<8x384xf32>
    %c1_i32_122 = arith.constant 1 : i32
    %172 = tpu.dynamic_rotate %168 by %c1_i32_122 dim 1 : vector<8x384xf32>, i32 -> vector<8x384xf32>
    %c0_i32_123 = arith.constant 0 : i32
    %173 = tpu.dynamic_rotate %168 by %c0_i32_123 dim 1 : vector<8x384xf32>, i32 -> vector<8x384xf32>
    %c383_i32_124 = arith.constant 383 : i32
    %174 = tpu.dynamic_rotate %168 by %c383_i32_124 dim 1 : vector<8x384xf32>, i32 -> vector<8x384xf32>
    %c367_i32_125 = arith.constant 367 : i32
    %175 = tpu.dynamic_rotate %168 by %c367_i32_125 dim 1 : vector<8x384xf32>, i32 -> vector<8x384xf32>
    %c366_i32_126 = arith.constant 366 : i32
    %176 = tpu.dynamic_rotate %168 by %c366_i32_126 dim 1 : vector<8x384xf32>, i32 -> vector<8x384xf32>
    %c365_i32_127 = arith.constant 365 : i32
    %177 = tpu.dynamic_rotate %168 by %c365_i32_127 dim 1 : vector<8x384xf32>, i32 -> vector<8x384xf32>
    %178 = tpu.concatenate %169, %170, %171, %172, %173, %174, %175, %176, %177 in 0 : vector<8x384xf32>, vector<8x384xf32>, vector<8x384xf32>, vector<8x384xf32>, vector<8x384xf32>, vector<8x384xf32>, vector<8x384xf32>, vector<8x384xf32>, vector<8x384xf32> -> vector<72x384xf32>
    %cst_128 = arith.constant dense<0.000000e+00> : vector<8x384xf32>
    %179 = tpu.matmul %0, %178, %cst_128 {dimension_numbers = #tpu.dot_dimension_numbers<[1], [0], [0], [1], [0, 0, 1, 1], [], []>} : vector<8x72xf32>, vector<72x384xf32>, vector<8x384xf32> -> vector<8x384xf32>
    %180 = arith.addf %14, %179 : vector<8x384xf32>
    %181 = math.tanh %180 : vector<8x384xf32>
    %182 = arith.mulf %2, %181 : vector<8x384xf32>
    %c12_i32 = arith.constant 12 : i32
    %c19_i32_129 = arith.constant 19 : i32
    %183 = tpu.dynamic_rotate %182 by %c19_i32_129 dim 1 : vector<8x384xf32>, i32 -> vector<8x384xf32>
    %c18_i32_130 = arith.constant 18 : i32
    %184 = tpu.dynamic_rotate %182 by %c18_i32_130 dim 1 : vector<8x384xf32>, i32 -> vector<8x384xf32>
    %c17_i32_131 = arith.constant 17 : i32
    %185 = tpu.dynamic_rotate %182 by %c17_i32_131 dim 1 : vector<8x384xf32>, i32 -> vector<8x384xf32>
    %c1_i32_132 = arith.constant 1 : i32
    %186 = tpu.dynamic_rotate %182 by %c1_i32_132 dim 1 : vector<8x384xf32>, i32 -> vector<8x384xf32>
    %c0_i32_133 = arith.constant 0 : i32
    %187 = tpu.dynamic_rotate %182 by %c0_i32_133 dim 1 : vector<8x384xf32>, i32 -> vector<8x384xf32>
    %c383_i32_134 = arith.constant 383 : i32
    %188 = tpu.dynamic_rotate %182 by %c383_i32_134 dim 1 : vector<8x384xf32>, i32 -> vector<8x384xf32>
    %c367_i32_135 = arith.constant 367 : i32
    %189 = tpu.dynamic_rotate %182 by %c367_i32_135 dim 1 : vector<8x384xf32>, i32 -> vector<8x384xf32>
    %c366_i32_136 = arith.constant 366 : i32
    %190 = tpu.dynamic_rotate %182 by %c366_i32_136 dim 1 : vector<8x384xf32>, i32 -> vector<8x384xf32>
    %c365_i32_137 = arith.constant 365 : i32
    %191 = tpu.dynamic_rotate %182 by %c365_i32_137 dim 1 : vector<8x384xf32>, i32 -> vector<8x384xf32>
    %192 = tpu.concatenate %183, %184, %185, %186, %187, %188, %189, %190, %191 in 0 : vector<8x384xf32>, vector<8x384xf32>, vector<8x384xf32>, vector<8x384xf32>, vector<8x384xf32>, vector<8x384xf32>, vector<8x384xf32>, vector<8x384xf32>, vector<8x384xf32> -> vector<72x384xf32>
    %cst_138 = arith.constant dense<0.000000e+00> : vector<8x384xf32>
    %193 = tpu.matmul %0, %192, %cst_138 {dimension_numbers = #tpu.dot_dimension_numbers<[1], [0], [0], [1], [0, 0, 1, 1], [], []>} : vector<8x72xf32>, vector<72x384xf32>, vector<8x384xf32> -> vector<8x384xf32>
    %194 = arith.addf %14, %193 : vector<8x384xf32>
    %195 = math.tanh %194 : vector<8x384xf32>
    %196 = arith.mulf %2, %195 : vector<8x384xf32>
    %c0_139 = arith.constant 0 : index
    %c0_140 = arith.constant 0 : index
    %197 = vector.load %arg4[%c0_139, %c0_140] : memref<8x384xf32, #tpu.memory_space<vmem>>, vector<8x384xf32>
    tpu.vector_store %arg4[%c0_139, %c0_140], %196 {strides = array<i32>} : memref<8x384xf32, #tpu.memory_space<vmem>>, vector<8x384xf32>,
    return
  }
}

</mosaic_0001>

<llo_original>
// kernel: tpu_custom_call.1
$region0: #{tpu_custom_call.1}
  #allocation0 [shape = 'u32[]', space=smem, size = 0x4, offset = 0x4, fixed_abs, tag = 'smem constant byte address 0x4 - core index']
  #allocation1 [shape = 'u32[144,128]{1,0:T(1,128)}', space=vmem, size = 0x12000, scoped, tag = 'internal scratch']
  %s0 = inlined_call_operand.hbm [shape: f32[8,384], index: 0, kind: input, shape index: {}]
  %s1 = inlined_call_operand.hbm [shape: f32[8,72], index: 1, kind: input, shape index: {}]
  %s2 = inlined_call_operand.hbm [shape: f32[8,72], index: 2, kind: input, shape index: {}]
  %s3 = inlined_call_operand.hbm [shape: f32[8,384], index: 3, kind: input, shape index: {}]
  %s4 = inlined_call_operand.hbm [shape: f32[8,384], index: 4, kind: output, shape index: {}]
  %s5 = sld [smem:[#allocation0]]
  $region42: #{tpu_custom_call.1} parent=0
    _
  %s7 = ssub.s32 1, %s5
  %s8 = scalar_select 0, %s7, %s5
  $region1: #{tpu_custom_call.1} parent=0
    #allocation2 [shape = 'u8[12288]{0}', space=vmem, size = 0x3000, scoped, tag = 'input window, operand 0, single buffered']
    #allocation3 [shape = 's32[1]{0}', space=sflag, size = 0x4, scoped, tag = 'scoped memory for tpu_custom_call.1']
    #allocation4 [shape = 's32[1]{0}', space=sflag, size = 0x4, scoped, tag = 'scoped memory for tpu_custom_call.1']
    #allocation5 [shape = 'u8[4096]{0}', space=vmem, size = 0x1000, scoped, tag = 'input window, operand 1, single buffered']
    #allocation6 [shape = 's32[1]{0}', space=sflag, size = 0x4, scoped, tag = 'scoped memory for tpu_custom_call.1']
    #allocation7 [shape = 'u8[4096]{0}', space=vmem, size = 0x1000, scoped, tag = 'input window, operand 2, single buffered']
    #allocation8 [shape = 'u8[12288]{0}', space=vmem, size = 0x3000, scoped, tag = 'input window, operand 3, single buffered']
    #allocation9 [shape = 's32[1]{0}', space=sflag, size = 0x4, scoped, tag = 'scoped memory for tpu_custom_call.1']
    #allocation10 [shape = 'u8[12288]{0}', space=vmem, size = 0x3000, scoped, tag = 'output window, operand 0, single buffered']
    %9 = vsyncpa [#allocation3], 0
    %10 = vsyncpa [#allocation6], 0
    %11 = vsyncpa [#allocation9], 0
    %12 = vsyncpa [#allocation4], 0
    // Predicated region
    $region2: #{tpu_custom_call.1} parent=1 // pred_check
      _
    $region3: #{tpu_custom_call.1} parent=1 // pred_check_branch
      %14 = sbr.rel (0) target = $region5
    $region4: #{tpu_custom_call.1} parent=1 // pred_region
      %s16 = ssub.s32 384, 384
      %17 = vsyncadd [#allocation3], %s16
      %s19 = sshll.u32 [#allocation2], 4
      %s20 = int_to_ptr.vmem [resolvable:$true] %s19
      %22 = dma.hbm_to_vmem [thread:$0]  %s0, 384, %s20, [#allocation3]
    $region5: #{tpu_custom_call.1} parent=1 // pred_fallthru
      _
    // Predicated region
    $region6: #{tpu_custom_call.1} parent=1 // pred_check
      _
    $region7: #{tpu_custom_call.1} parent=1 // pred_check_branch
      %24 = sbr.rel (0) target = $region9
    $region8: #{tpu_custom_call.1} parent=1 // pred_region
      %s26 = ssub.s32 128, 128
      %27 = vsyncadd [#allocation6], %s26
      %s29 = sshll.u32 [#allocation5], 4
      %s30 = int_to_ptr.vmem [resolvable:$true] %s29
      %32 = dma.hbm_to_vmem [thread:$0]  %s1, 128, %s30, [#allocation6]
    $region9: #{tpu_custom_call.1} parent=1 // pred_fallthru
      _
    // Predicated region
    $region10: #{tpu_custom_call.1} parent=1 // pred_check
      _
    $region11: #{tpu_custom_call.1} parent=1 // pred_check_branch
      %34 = sbr.rel (0) target = $region13
    $region12: #{tpu_custom_call.1} parent=1 // pred_region
      %s36 = ssub.s32 128, 128
      %37 = vsyncadd [#allocation6], %s36
      %s39 = sshll.u32 [#allocation7], 4
      %s40 = int_to_ptr.vmem [resolvable:$true] %s39
      %42 = dma.hbm_to_vmem [thread:$0]  %s2, 128, %s40, [#allocation6]
    $region13: #{tpu_custom_call.1} parent=1 // pred_fallthru
      _
    // Predicated region
    $region14: #{tpu_custom_call.1} parent=1 // pred_check
      _
    $region15: #{tpu_custom_call.1} parent=1 // pred_check_branch
      %44 = sbr.rel (0) target = $region17
    $region16: #{tpu_custom_call.1} parent=1 // pred_region
      %s46 = ssub.s32 384, 384
      %47 = vsyncadd [#allocation9], %s46
      %s49 = sshll.u32 [#allocation8], 4
      %s50 = int_to_ptr.vmem [resolvable:$true] %s49
      %52 = dma.hbm_to_vmem [thread:$0]  %s3, 384, %s50, [#allocation9]
    $region17: #{tpu_custom_call.1} parent=1 // pred_fallthru
      _
    // Predicated region
    $region18: #{tpu_custom_call.1} parent=1 // pred_check
      _
    $region19: #{tpu_custom_call.1} parent=1 // pred_check_branch
      %54 = sbr.rel (0) target = $region21
    $region20: #{tpu_custom_call.1} parent=1 // pred_region
      %55 = dma.done [#allocation3], 384
    $region21: #{tpu_custom_call.1} parent=1 // pred_fallthru
      _
    // Predicated region
    $region22: #{tpu_custom_call.1} parent=1 // pred_check
      _
    $region23: #{tpu_custom_call.1} parent=1 // pred_check_branch
      %57 = sbr.rel (0) target = $region25
    $region24: #{tpu_custom_call.1} parent=1 // pred_region
      %58 = dma.done [#allocation6], 128
    $region25: #{tpu_custom_call.1} parent=1 // pred_fallthru
      _
    // Predicated region
    $region26: #{tpu_custom_call.1} parent=1 // pred_check
      _
    $region27: #{tpu_custom_call.1} parent=1 // pred_check_branch
      %60 = sbr.rel (0) target = $region29
    $region28: #{tpu_custom_call.1} parent=1 // pred_region
      %61 = dma.done [#allocation6], 128
    $region29: #{tpu_custom_call.1} parent=1 // pred_fallthru
      _
    // Predicated region
    $region30: #{tpu_custom_call.1} parent=1 // pred_check
      _
    $region31: #{tpu_custom_call.1} parent=1 // pred_check_branch
      %63 = sbr.rel (0) target = $region33
    $region32: #{tpu_custom_call.1} parent=1 // pred_region
      %64 = dma.done [#allocation9], 384
    $region33: #{tpu_custom_call.1} parent=1 // pred_fallthru
      _
    %v65 = vld [vmem:[#allocation5] sm:$0xff]
    %v66 = vld [vmem:[#allocation7] sm:$0xff]
    %v67 = vld [vmem:[#allocation8] sm:$0xff]
    %v68 = vld [vmem:[#allocation8 + $0x8] sm:$0xff]
    %v69 = vld [vmem:[#allocation8 + $0x10] sm:$0xff]
    %v70 = vld [vmem:[#allocation2] sm:$0xff]
    %v71 = vld [vmem:[#allocation2 + $0x8] sm:$0xff]
    %v72 = vld [vmem:[#allocation2 + $0x10] sm:$0xff]
    %73 = vrot.lane.b32.xlu0 %v70, 19
    %v74 = vpop.permute.xlu0 %73
    %75 = vrot.lane.b32.xlu0 %v71, 19
    %v76 = vpop.permute.xlu0 %75
    %77 = vrot.lane.b32.xlu0 %v72, 19
    %v78 = vpop.permute.xlu0 %77
    %v79 = vlaneseq
    %v80 = vand.u32 %v79, 127
    %vm81 = vcmp.lt.s32.totalorder %v80, 19
    %v82 = vsel %vm81, %v76, %v78
    %v83 = vsel %vm81, %v74, %v76
    %v84 = vsel %vm81, %v78, %v74
    %85 = vrot.lane.b32.xlu0 %v70, 18
    %v86 = vpop.permute.xlu0 %85
    %87 = vrot.lane.b32.xlu0 %v71, 18
    %v88 = vpop.permute.xlu0 %87
    %89 = vrot.lane.b32.xlu0 %v72, 18
    %v90 = vpop.permute.xlu0 %89
    %vm91 = vcmp.lt.s32.totalorder %v80, 18
    %v92 = vsel %vm91, %v88, %v90
    %v93 = vsel %vm91, %v86, %v88
    %v94 = vsel %vm91, %v90, %v86
    %95 = vrot.lane.b32.xlu0 %v70, 17
    %v96 = vpop.permute.xlu0 %95
    %97 = vrot.lane.b32.xlu0 %v71, 17
    %v98 = vpop.permute.xlu0 %97
    %99 = vrot.lane.b32.xlu0 %v72, 17
    %v100 = vpop.permute.xlu0 %99
    %vm101 = vcmp.lt.s32.totalorder %v80, 17
    %v102 = vsel %vm101, %v98, %v100
    %v103 = vsel %vm101, %v96, %v98
    %v104 = vsel %vm101, %v100, %v96
    %105 = vrot.lane.b32.xlu0 %v70, 1
    %v106 = vpop.permute.xlu0 %105
    %107 = vrot.lane.b32.xlu0 %v71, 1
    %v108 = vpop.permute.xlu0 %107
    %109 = vrot.lane.b32.xlu0 %v72, 1
    %v110 = vpop.permute.xlu0 %109
    %vm111 = vcmp.lt.s32.totalorder %v80, 1
    %v112 = vsel %vm111, %v108, %v110
    %v113 = vsel %vm111, %v106, %v108
    %v114 = vsel %vm111, %v110, %v106
    %115 = vrot.lane.b32.xlu0 %v70, 127
    %v116 = vpop.permute.xlu0 %115
    %117 = vrot.lane.b32.xlu0 %v71, 127
    %v118 = vpop.permute.xlu0 %117
    %119 = vrot.lane.b32.xlu0 %v72, 127
    %v120 = vpop.permute.xlu0 %119
    %vm121 = vcmp.lt.s32.totalorder %v80, 127
    %v122 = vsel %vm121, %v118, %v120
    %v123 = vsel %vm121, %v116, %v118
    %v124 = vsel %vm121, %v120, %v116
    %125 = vrot.lane.b32.xlu0 %v70, 111
    %v126 = vpop.permute.xlu0 %125
    %127 = vrot.lane.b32.xlu0 %v71, 111
    %v128 = vpop.permute.xlu0 %127
    %129 = vrot.lane.b32.xlu0 %v72, 111
    %v130 = vpop.permute.xlu0 %129
    %vm131 = vcmp.lt.s32.totalorder %v80, 111
    %v132 = vsel %vm131, %v128, %v130
    %v133 = vsel %vm131, %v126, %v128
    %v134 = vsel %vm131, %v130, %v126
    %135 = vrot.lane.b32.xlu0 %v70, 110
    %v136 = vpop.permute.xlu0 %135
    %137 = vrot.lane.b32.xlu0 %v71, 110
    %v138 = vpop.permute.xlu0 %137
    %139 = vrot.lane.b32.xlu0 %v72, 110
    %v140 = vpop.permute.xlu0 %139
    %vm141 = vcmp.lt.s32.totalorder %v80, 110
    %v142 = vsel %vm141, %v138, %v140
    %v143 = vsel %vm141, %v136, %v138
    %v144 = vsel %vm141, %v140, %v136
    %145 = vrot.lane.b32.xlu0 %v70, 109
    %v146 = vpop.permute.xlu0 %145
    %147 = vrot.lane.b32.xlu0 %v71, 109
    %v148 = vpop.permute.xlu0 %147
    %149 = vrot.lane.b32.xlu0 %v72, 109
    %v150 = vpop.permute.xlu0 %149
    %vm151 = vcmp.lt.s32.totalorder %v80, 109
    %v152 = vsel %vm151, %v148, %v150
    %v153 = vsel %vm151, %v146, %v148
    %v154 = vsel %vm151, %v150, %v146
    %vm155 = vcmask 588800
    %v157 = vsel %vm155, %v66, 0
    %159 = vmatprep.subr.mxu0 %v83
    %160 = vmatpush1.msra.mxu0 %v84
    %161 = vmatprep.subr.mxu0 %v93
    %162 = vmatpush1.msra.mxu0 %v94
    %163 = vmatprep.subr.mxu0 %v103
    %164 = vmatpush1.msra.mxu0 %v104
    %165 = vmatprep.subr.mxu0 %v113
    %166 = vmatpush1.msra.mxu0 %v114
    %167 = vmatprep.subr.mxu0 %v71
    %168 = vmatpush1.msra.mxu0 %v70
    %169 = vmatprep.subr.mxu0 %v122
    %170 = vmatpush1.msra.mxu0 %v123
    %171 = vmatprep.subr.mxu0 %v132
    %172 = vmatpush1.msra.mxu0 %v133
    %173 = vmatprep.subr.mxu0 %v142
    %174 = vmatpush1.msra.mxu0 %v143
    %175 = vmatprep.subr.mxu0 %v152
    %176 = vmatpush1.msra.mxu0 %v153
    %177 = vmatprep.subr.mxu0 0.0
    %178 = vmatpush1.msra.mxu0 0.0
    %179 = vmatprep.subr.mxu0 0.0
    %180 = vmatpush1.msra.mxu0 0.0
    %181 = vmatprep.subr.mxu0 0.0
    %182 = vmatpush1.msra.mxu0 0.0
    %183 = vmatprep.subr.mxu0 0.0
    %184 = vmatpush1.msra.mxu0 0.0
    %185 = vmatprep.subr.mxu0 0.0
    %186 = vmatpush1.msra.mxu0 0.0
    %187 = vmatprep.subr.mxu0 0.0
    %188 = vmatpush1.msra.mxu0 0.0
    %189 = vmatprep.subr.mxu0 0.0
    %190 = vmatpush1.msra.mxu0 0.0
    %191 = vmatprep.subr.mxu0 0.0
    %192 = vmatpush1.msra.mxu0 0.0
    %193 = vmatprep.subr.mxu0 0.0
    %194 = vmatpush1.msra.mxu0 0.0
    %195 = vmatprep.subr.mxu0 0.0
    %196 = vmatpush1.msra.mxu0 0.0
    %197 = vmatprep.subr.mxu0 0.0
    %198 = vmatpush1.msra.mxu0 0.0
    %199 = vmatprep.subr.mxu0 0.0
    %200 = vmatpush1.msra.mxu0 0.0
    %201 = vmatprep.subr.mxu0 0.0
    %202 = vmatpush1.msra.mxu0 0.0
    %203 = vmatprep.subr.mxu0 0.0
    %204 = vmatpush1.msra.mxu0 0.0
    %205 = vmatprep.subr.mxu0 0.0
    %206 = vmatpush1.msra.mxu0 0.0
    %207 = vmatprep.subr.mxu0 0.0
    %208 = vmatpush1.msra.mxu0 0.0
    %209 = vmatprep.subr.mxu0 0.0
    %210 = vmatpush1.msra.mxu0 0.0
    %211 = vmatprep.subr.mxu0 0.0
    %212 = vmatpush1.msra.mxu0 0.0
    %213 = vmatprep.subr.mxu0 0.0
    %214 = vmatpush1.msra.mxu0 0.0
    %215 = vmatprep.subr.mxu0 0.0
    %216 = vmatpush1.msra.mxu0 0.0
    %217 = vmatprep.subr.mxu0 0.0
    %218 = vmatpush1.msra.mxu0 0.0
    %219 = vmatprep.subr.mxu0 0.0
    %220 = vmatpush1.msra.mxu0 0.0
    %221 = vmatprep.subr.mxu0 0.0
    %222 = vmatpush1.msra.mxu0 0.0
    %223 = vmatprep.mubr.f32.mxu0 0.0
    %224 = vmatmul.mubr.f32.gmra.mrb[0].mxu0 %v157
    %v225 = vpop.f32.mrb[0].mxu0
    %v226 = vadd.f32 0.0, %v225
    %v227 = vpop.f32.mrb[0].mxu0
    %v228 = vadd.f32 0.0, %v227
    %229 = vdwg.mxu0
    %230 = vmatprep.subr.mxu0 0.0
    %231 = vmatpush1.msra.mxu0 %v82
    %232 = vmatprep.subr.mxu0 0.0
    %233 = vmatpush1.msra.mxu0 %v92
    %234 = vmatprep.subr.mxu0 0.0
    %235 = vmatpush1.msra.mxu0 %v102
    %236 = vmatprep.subr.mxu0 0.0
    %237 = vmatpush1.msra.mxu0 %v112
    %238 = vmatprep.subr.mxu0 0.0
    %239 = vmatpush1.msra.mxu0 %v72
    %240 = vmatprep.subr.mxu0 0.0
    %241 = vmatpush1.msra.mxu0 %v124
    %242 = vmatprep.subr.mxu0 0.0
    %243 = vmatpush1.msra.mxu0 %v134
    %244 = vmatprep.subr.mxu0 0.0
    %245 = vmatpush1.msra.mxu0 %v144
    %246 = vmatprep.subr.mxu0 0.0
    %247 = vmatpush1.msra.mxu0 %v154
    %248 = vmatprep.subr.mxu0 0.0
    %249 = vmatpush1.msra.mxu0 0.0
    %250 = vmatprep.subr.mxu0 0.0
    %251 = vmatpush1.msra.mxu0 0.0
    %252 = vmatprep.subr.mxu0 0.0
    %253 = vmatpush1.msra.mxu0 0.0
    %254 = vmatprep.subr.mxu0 0.0
    %255 = vmatpush1.msra.mxu0 0.0
    %256 = vmatprep.subr.mxu0 0.0
    %257 = vmatpush1.msra.mxu0 0.0
    %258 = vmatprep.subr.mxu0 0.0
    %259 = vmatpush1.msra.mxu0 0.0
    %260 = vmatprep.subr.mxu0 0.0
    %261 = vmatpush1.msra.mxu0 0.0
    %262 = vmatprep.subr.mxu0 0.0
    %263 = vmatpush1.msra.mxu0 0.0
    %264 = vmatprep.subr.mxu0 0.0
    %265 = vmatpush1.msra.mxu0 0.0
    %266 = vmatprep.subr.mxu0 0.0
    %267 = vmatpush1.msra.mxu0 0.0
    %268 = vmatprep.subr.mxu0 0.0
    %269 = vmatpush1.msra.mxu0 0.0
    %270 = vmatprep.subr.mxu0 0.0
    %271 = vmatpush1.msra.mxu0 0.0
    %272 = vmatprep.subr.mxu0 0.0
    %273 = vmatpush1.msra.mxu0 0.0
    %274 = vmatprep.subr.mxu0 0.0
    %275 = vmatpush1.msra.mxu0 0.0
    %276 = vmatprep.subr.mxu0 0.0
    %277 = vmatpush1.msra.mxu0 0.0
    %278 = vmatprep.subr.mxu0 0.0
    %279 = vmatpush1.msra.mxu0 0.0
    %280 = vmatprep.subr.mxu0 0.0
    %281 = vmatpush1.msra.mxu0 0.0
    %282 = vmatprep.subr.mxu0 0.0
    %283 = vmatpush1.msra.mxu0 0.0
    %284 = vmatprep.subr.mxu0 0.0
    %285 = vmatpush1.msra.mxu0 0.0
    %286 = vmatprep.subr.mxu0 0.0
    %287 = vmatpush1.msra.mxu0 0.0
    %288 = vmatprep.subr.mxu0 0.0
    %289 = vmatpush1.msra.mxu0 0.0
    %290 = vmatprep.subr.mxu0 0.0
    %291 = vmatpush1.msra.mxu0 0.0
    %292 = vmatprep.subr.mxu0 0.0
    %293 = vmatpush1.msra.mxu0 0.0
    %294 = vmatprep.mubr.f32.mxu0 0.0
    %295 = vmatmul.mubr.f32.gmra.mrb[0].mxu0 %v157
    %v296 = vpop.f32.mrb[0].mxu0
    %v297 = vadd.f32 0.0, %v296
    %v298 = vpop.f32.mrb[0].mxu0
    %299 = vdwg.mxu0
    %300 = vrot.lane.b32.xlu0 %v67, 19
    %v301 = vpop.permute.xlu0 %300
    %302 = vrot.lane.b32.xlu0 %v68, 19
    %v303 = vpop.permute.xlu0 %302
    %304 = vrot.lane.b32.xlu0 %v69, 19
    %v305 = vpop.permute.xlu0 %304
    %v306 = vsel %vm81, %v303, %v305
    %v307 = vsel %vm81, %v301, %v303
    %v308 = vsel %vm81, %v305, %v301
    %309 = vrot.lane.b32.xlu0 %v67, 18
    %v310 = vpop.permute.xlu0 %309
    %311 = vrot.lane.b32.xlu0 %v68, 18
    %v312 = vpop.permute.xlu0 %311
    %313 = vrot.lane.b32.xlu0 %v69, 18
    %v314 = vpop.permute.xlu0 %313
    %v315 = vsel %vm91, %v312, %v314
    %v316 = vsel %vm91, %v310, %v312
    %v317 = vsel %vm91, %v314, %v310
    %318 = vrot.lane.b32.xlu0 %v67, 17
    %v319 = vpop.permute.xlu0 %318
    %320 = vrot.lane.b32.xlu0 %v68, 17
    %v321 = vpop.permute.xlu0 %320
    %322 = vrot.lane.b32.xlu0 %v69, 17
    %v323 = vpop.permute.xlu0 %322
    %v324 = vsel %vm101, %v321, %v323
    %v325 = vsel %vm101, %v319, %v321
    %v326 = vsel %vm101, %v323, %v319
    %327 = vrot.lane.b32.xlu0 %v67, 1
    %v328 = vpop.permute.xlu0 %327
    %329 = vrot.lane.b32.xlu0 %v68, 1
    %v330 = vpop.permute.xlu0 %329
    %331 = vrot.lane.b32.xlu0 %v69, 1
    %v332 = vpop.permute.xlu0 %331
    %v333 = vsel %vm111, %v330, %v332
    %v334 = vsel %vm111, %v328, %v330
    %v335 = vsel %vm111, %v332, %v328
    %336 = vrot.lane.b32.xlu0 %v67, 127
    %v337 = vpop.permute.xlu0 %336
    %338 = vrot.lane.b32.xlu0 %v68, 127
    %v339 = vpop.permute.xlu0 %338
    %340 = vrot.lane.b32.xlu0 %v69, 127
    %v341 = vpop.permute.xlu0 %340
    %v342 = vsel %vm121, %v339, %v341
    %v343 = vsel %vm121, %v337, %v339
    %v344 = vsel %vm121, %v341, %v337
    %345 = vrot.lane.b32.xlu0 %v67, 111
    %v346 = vpop.permute.xlu0 %345
    %347 = vrot.lane.b32.xlu0 %v68, 111
    %v348 = vpop.permute.xlu0 %347
    %349 = vrot.lane.b32.xlu0 %v69, 111
    %v350 = vpop.permute.xlu0 %349
    %v351 = vsel %vm131, %v348, %v350
    %v352 = vsel %vm131, %v346, %v348
    %v353 = vsel %vm131, %v350, %v346
    %354 = vrot.lane.b32.xlu0 %v67, 110
    %v355 = vpop.permute.xlu0 %354
    %356 = vrot.lane.b32.xlu0 %v68, 110
    %v357 = vpop.permute.xlu0 %356
    %358 = vrot.lane.b32.xlu0 %v69, 110
    %v359 = vpop.permute.xlu0 %358
    %v360 = vsel %vm141, %v357, %v359
    %v361 = vsel %vm141, %v355, %v357
    %v362 = vsel %vm141, %v359, %v355
    %363 = vrot.lane.b32.xlu0 %v67, 109
    %v364 = vpop.permute.xlu0 %363
    %365 = vrot.lane.b32.xlu0 %v68, 109
    %v366 = vpop.permute.xlu0 %365
    %367 = vrot.lane.b32.xlu0 %v69, 109
    %v368 = vpop.permute.xlu0 %367
    %v369 = vsel %vm151, %v366, %v368
    %v370 = vsel %vm151, %v364, %v366
    %v371 = vsel %vm151, %v368, %v364
    %v373 = vsel %vm155, %v65, 0
    %375 = vmatprep.subr.mxu0 %v307
    %376 = vmatpush1.msra.mxu0 %v308
    %377 = vmatprep.subr.mxu0 %v316
    %378 = vmatpush1.msra.mxu0 %v317
    %379 = vmatprep.subr.mxu0 %v325
    %380 = vmatpush1.msra.mxu0 %v326
    %381 = vmatprep.subr.mxu0 %v334
    %382 = vmatpush1.msra.mxu0 %v335
    %383 = vmatprep.subr.mxu0 %v68
    %384 = vmatpush1.msra.mxu0 %v67
    %385 = vmatprep.subr.mxu0 %v342
    %386 = vmatpush1.msra.mxu0 %v343
    %387 = vmatprep.subr.mxu0 %v351
    %388 = vmatpush1.msra.mxu0 %v352
    %389 = vmatprep.subr.mxu0 %v360
    %390 = vmatpush1.msra.mxu0 %v361
    %391 = vmatprep.subr.mxu0 %v369
    %392 = vmatpush1.msra.mxu0 %v370
    %393 = vmatprep.subr.mxu0 0.0
    %394 = vmatpush1.msra.mxu0 0.0
    %395 = vmatprep.subr.mxu0 0.0
    %396 = vmatpush1.msra.mxu0 0.0
    %397 = vmatprep.subr.mxu0 0.0
    %398 = vmatpush1.msra.mxu0 0.0
    %399 = vmatprep.subr.mxu0 0.0
    %400 = vmatpush1.msra.mxu0 0.0
    %401 = vmatprep.subr.mxu0 0.0
    %402 = vmatpush1.msra.mxu0 0.0
    %403 = vmatprep.subr.mxu0 0.0
    %404 = vmatpush1.msra.mxu0 0.0
    %405 = vmatprep.subr.mxu0 0.0
    %406 = vmatpush1.msra.mxu0 0.0
    %407 = vmatprep.subr.mxu0 0.0
    %408 = vmatpush1.msra.mxu0 0.0
    %409 = vmatprep.subr.mxu0 0.0
    %410 = vmatpush1.msra.mxu0 0.0
    %411 = vmatprep.subr.mxu0 0.0
    %412 = vmatpush1.msra.mxu0 0.0
    %413 = vmatprep.subr.mxu0 0.0
    %414 = vmatpush1.msra.mxu0 0.0
    %415 = vmatprep.subr.mxu0 0.0
    %416 = vmatpush1.msra.mxu0 0.0
    %417 = vmatprep.subr.mxu0 0.0
    %418 = vmatpush1.msra.mxu0 0.0
    %419 = vmatprep.subr.mxu0 0.0
    %420 = vmatpush1.msra.mxu0 0.0
    %421 = vmatprep.subr.mxu0 0.0
    %422 = vmatpush1.msra.mxu0 0.0
    %423 = vmatprep.subr.mxu0 0.0
    %424 = vmatpush1.msra.mxu0 0.0
    %425 = vmatprep.subr.mxu0 0.0
    %426 = vmatpush1.msra.mxu0 0.0
    %427 = vmatprep.subr.mxu0 0.0
    %428 = vmatpush1.msra.mxu0 0.0
    %429 = vmatprep.subr.mxu0 0.0
    %430 = vmatpush1.msra.mxu0 0.0
    %431 = vmatprep.subr.mxu0 0.0
    %432 = vmatpush1.msra.mxu0 0.0
    %433 = vmatprep.subr.mxu0 0.0
    %434 = vmatpush1.msra.mxu0 0.0
    %435 = vmatprep.subr.mxu0 0.0
    %436 = vmatpush1.msra.mxu0 0.0
    %437 = vmatprep.subr.mxu0 0.0
    %438 = vmatpush1.msra.mxu0 0.0
    %439 = vmatprep.mubr.f32.mxu0 0.0
    %440 = vmatmul.mubr.f32.gmra.mrb[0].mxu0 %v373
    %v441 = vpop.f32.mrb[0].mxu0
    %v442 = vadd.f32 0.0, %v441
    %v443 = vpop.f32.mrb[0].mxu0
    %v444 = vadd.f32 0.0, %v443
    %445 = vdwg.mxu0
    %446 = vmatprep.subr.mxu0 0.0
    %447 = vmatpush1.msra.mxu0 %v306
    %448 = vmatprep.subr.mxu0 0.0
    %449 = vmatpush1.msra.mxu0 %v315
    %450 = vmatprep.subr.mxu0 0.0
    %451 = vmatpush1.msra.mxu0 %v324
    %452 = vmatprep.subr.mxu0 0.0
    %453 = vmatpush1.msra.mxu0 %v333
    %454 = vmatprep.subr.mxu0 0.0
    %455 = vmatpush1.msra.mxu0 %v69
    %456 = vmatprep.subr.mxu0 0.0
    %457 = vmatpush1.msra.mxu0 %v344
    %458 = vmatprep.subr.mxu0 0.0
    %459 = vmatpush1.msra.mxu0 %v353
    %460 = vmatprep.subr.mxu0 0.0
    %461 = vmatpush1.msra.mxu0 %v362
    %462 = vmatprep.subr.mxu0 0.0
    %463 = vmatpush1.msra.mxu0 %v371
    %464 = vmatprep.subr.mxu0 0.0
    %465 = vmatpush1.msra.mxu0 0.0
    %466 = vmatprep.subr.mxu0 0.0
    %467 = vmatpush1.msra.mxu0 0.0
    %468 = vmatprep.subr.mxu0 0.0
    %469 = vmatpush1.msra.mxu0 0.0
    %470 = vmatprep.subr.mxu0 0.0
    %471 = vmatpush1.msra.mxu0 0.0
    %472 = vmatprep.subr.mxu0 0.0
    %473 = vmatpush1.msra.mxu0 0.0
    %474 = vmatprep.subr.mxu0 0.0
    %475 = vmatpush1.msra.mxu0 0.0
    %476 = vmatprep.subr.mxu0 0.0
    %477 = vmatpush1.msra.mxu0 0.0
    %478 = vmatprep.subr.mxu0 0.0
    %479 = vmatpush1.msra.mxu0 0.0
    %480 = vmatprep.subr.mxu0 0.0
    %481 = vmatpush1.msra.mxu0 0.0
    %482 = vmatprep.subr.mxu0 0.0
    %483 = vmatpush1.msra.mxu0 0.0
    %484 = vmatprep.subr.mxu0 0.0
    %485 = vmatpush1.msra.mxu0 0.0
    %486 = vmatprep.subr.mxu0 0.0
    %487 = vmatpush1.msra.mxu0 0.0
    %488 = vmatprep.subr.mxu0 0.0
    %489 = vmatpush1.msra.mxu0 0.0
    %490 = vmatprep.subr.mxu0 0.0
    %491 = vmatpush1.msra.mxu0 0.0
    %492 = vmatprep.subr.mxu0 0.0
    %493 = vmatpush1.msra.mxu0 0.0
    %494 = vmatprep.subr.mxu0 0.0
    %495 = vmatpush1.msra.mxu0 0.0
    %496 = vmatprep.subr.mxu0 0.0
    %497 = vmatpush1.msra.mxu0 0.0
    %498 = vmatprep.subr.mxu0 0.0
    %499 = vmatpush1.msra.mxu0 0.0
    %500 = vmatprep.subr.mxu0 0.0
    %501 = vmatpush1.msra.mxu0 0.0
    %502 = vmatprep.subr.mxu0 0.0
    %503 = vmatpush1.msra.mxu0 0.0
    %504 = vmatprep.subr.mxu0 0.0
    %505 = vmatpush1.msra.mxu0 0.0
    %506 = vmatprep.subr.mxu0 0.0
    %507 = vmatpush1.msra.mxu0 0.0
    %508 = vmatprep.subr.mxu0 0.0
    %509 = vmatpush1.msra.mxu0 0.0
    %510 = vmatprep.mubr.f32.mxu0 0.0
    %511 = vmatmul.mubr.f32.gmra.mrb[0].mxu0 %v373
    %v512 = vpop.f32.mrb[0].mxu0
    %v513 = vadd.f32 0.0, %v512
    %v514 = vpop.f32.mrb[0].mxu0
    %515 = vdwg.mxu0
    %v516 = vadd.f32 %v226, %v442
    %v517 = vadd.f32 %v228, %v444
    %v518 = vadd.f32 %v297, %v513
    %v519 = vtanh.pop %v516
    %v520 = vtanh.pop %v517
    %v521 = vtanh.pop %v518
    %v522 = vmul.f32 %v67, %v519
    %v523 = vmul.f32 %v68, %v520
    %v524 = vmul.f32 %v69, %v521
    %525 = vrot.lane.b32.xlu0 %v522, 19
    %v526 = vpop.permute.xlu0 %525
    %527 = vrot.lane.b32.xlu0 %v523, 19
    %v528 = vpop.permute.xlu0 %527
    %529 = vrot.lane.b32.xlu0 %v524, 19
    %v530 = vpop.permute.xlu0 %529
    %v531 = vsel %vm81, %v528, %v530
    %v532 = vsel %vm81, %v526, %v528
    %v533 = vsel %vm81, %v530, %v526
    %534 = vrot.lane.b32.xlu0 %v522, 18
    %v535 = vpop.permute.xlu0 %534
    %536 = vrot.lane.b32.xlu0 %v523, 18
    %v537 = vpop.permute.xlu0 %536
    %538 = vrot.lane.b32.xlu0 %v524, 18
    %v539 = vpop.permute.xlu0 %538
    %v540 = vsel %vm91, %v537, %v539
    %v541 = vsel %vm91, %v535, %v537
    %v542 = vsel %vm91, %v539, %v535
    %543 = vrot.lane.b32.xlu0 %v522, 17
    %v544 = vpop.permute.xlu0 %543
    %545 = vrot.lane.b32.xlu0 %v523, 17
    %v546 = vpop.permute.xlu0 %545
    %547 = vrot.lane.b32.xlu0 %v524, 17
    %v548 = vpop.permute.xlu0 %547
    %v549 = vsel %vm101, %v546, %v548
    %v550 = vsel %vm101, %v544, %v546
    %v551 = vsel %vm101, %v548, %v544
    %552 = vrot.lane.b32.xlu0 %v522, 1
    %v553 = vpop.permute.xlu0 %552
    %554 = vrot.lane.b32.xlu0 %v523, 1
    %v555 = vpop.permute.xlu0 %554
    %556 = vrot.lane.b32.xlu0 %v524, 1
    %v557 = vpop.permute.xlu0 %556
    %v558 = vsel %vm111, %v555, %v557
    %v559 = vsel %vm111, %v553, %v555
    %v560 = vsel %vm111, %v557, %v553
    %561 = vrot.lane.b32.xlu0 %v522, 127
    %v562 = vpop.permute.xlu0 %561
    %563 = vrot.lane.b32.xlu0 %v523, 127
    %v564 = vpop.permute.xlu0 %563
    %565 = vrot.lane.b32.xlu0 %v524, 127
    %v566 = vpop.permute.xlu0 %565
    %v567 = vsel %vm121, %v564, %v566
    %v568 = vsel %vm121, %v562, %v564
    %v569 = vsel %vm121, %v566, %v562
    %570 = vrot.lane.b32.xlu0 %v522, 111
    %v571 = vpop.permute.xlu0 %570
    %572 = vrot.lane.b32.xlu0 %v523, 111
    %v573 = vpop.permute.xlu0 %572
    %574 = vrot.lane.b32.xlu0 %v524, 111
    %v575 = vpop.permute.xlu0 %574
    %v576 = vsel %vm131, %v573, %v575
    %v577 = vsel %vm131, %v571, %v573
    %v578 = vsel %vm131, %v575, %v571
    %579 = vrot.lane.b32.xlu0 %v522, 110
    %v580 = vpop.permute.xlu0 %579
    %581 = vrot.lane.b32.xlu0 %v523, 110
    %v582 = vpop.permute.xlu0 %581
    %583 = vrot.lane.b32.xlu0 %v524, 110
    %v584 = vpop.permute.xlu0 %583
    %v585 = vsel %vm141, %v582, %v584
    %v586 = vsel %vm141, %v580, %v582
    %v587 = vsel %vm141, %v584, %v580
    %588 = vrot.lane.b32.xlu0 %v522, 109
    %v589 = vpop.permute.xlu0 %588
    %590 = vrot.lane.b32.xlu0 %v523, 109
    %v591 = vpop.permute.xlu0 %590
    %592 = vrot.lane.b32.xlu0 %v524, 109
    %v593 = vpop.permute.xlu0 %592
    %v594 = vsel %vm151, %v591, %v593
    %v595 = vsel %vm151, %v589, %v591
    %v596 = vsel %vm151, %v593, %v589
    %597 = vmatprep.subr.mxu0 %v532
    %598 = vmatpush1.msra.mxu0 %v533
    %599 = vmatprep.subr.mxu0 %v541
    %600 = vmatpush1.msra.mxu0 %v542
    %601 = vmatprep.subr.mxu0 %v550
    %602 = vmatpush1.msra.mxu0 %v551
    %603 = vmatprep.subr.mxu0 %v559
    %604 = vmatpush1.msra.mxu0 %v560
    %605 = vmatprep.subr.mxu0 %v523
    %606 = vmatpush1.msra.mxu0 %v522
    %607 = vmatprep.subr.mxu0 %v567
    %608 = vmatpush1.msra.mxu0 %v568
    %609 = vmatprep.subr.mxu0 %v576
    %610 = vmatpush1.msra.mxu0 %v577
    %611 = vmatprep.subr.mxu0 %v585
    %612 = vmatpush1.msra.mxu0 %v586
    %613 = vmatprep.subr.mxu0 %v594
    %614 = vmatpush1.msra.mxu0 %v595
    %615 = vmatprep.subr.mxu0 0.0
    %616 = vmatpush1.msra.mxu0 0.0
    %617 = vmatprep.subr.mxu0 0.0
    %618 = vmatpush1.msra.mxu0 0.0
    %619 = vmatprep.subr.mxu0 0.0
    %620 = vmatpush1.msra.mxu0 0.0
    %621 = vmatprep.subr.mxu0 0.0
    %622 = vmatpush1.msra.mxu0 0.0
    %623 = vmatprep.subr.mxu0 0.0
    %624 = vmatpush1.msra.mxu0 0.0
    %625 = vmatprep.subr.mxu0 0.0
    %626 = vmatpush1.msra.mxu0 0.0
    %627 = vmatprep.subr.mxu0 0.0
    %628 = vmatpush1.msra.mxu0 0.0
    %629 = vmatprep.subr.mxu0 0.0
    %630 = vmatpush1.msra.mxu0 0.0
    %631 = vmatprep.subr.mxu0 0.0
    %632 = vmatpush1.msra.mxu0 0.0
    %633 = vmatprep.subr.mxu0 0.0
    %634 = vmatpush1.msra.mxu0 0.0
    %635 = vmatprep.subr.mxu0 0.0
    %636 = vmatpush1.msra.mxu0 0.0
    %637 = vmatprep.subr.mxu0 0.0
    %638 = vmatpush1.msra.mxu0 0.0
    %639 = vmatprep.subr.mxu0 0.0
    %640 = vmatpush1.msra.mxu0 0.0
    %641 = vmatprep.subr.mxu0 0.0
    %642 = vmatpush1.msra.mxu0 0.0
    %643 = vmatprep.subr.mxu0 0.0
    %644 = vmatpush1.msra.mxu0 0.0
    %645 = vmatprep.subr.mxu0 0.0
    %646 = vmatpush1.msra.mxu0 0.0
    %647 = vmatprep.subr.mxu0 0.0
    %648 = vmatpush1.msra.mxu0 0.0
    %649 = vmatprep.subr.mxu0 0.0
    %650 = vmatpush1.msra.mxu0 0.0
    %651 = vmatprep.subr.mxu0 0.0
    %652 = vmatpush1.msra.mxu0 0.0
    %653 = vmatprep.subr.mxu0 0.0
    %654 = vmatpush1.msra.mxu0 0.0
    %655 = vmatprep.subr.mxu0 0.0
    %656 = vmatpush1.msra.mxu0 0.0
    %657 = vmatprep.subr.mxu0 0.0
    %658 = vmatpush1.msra.mxu0 0.0
    %659 = vmatprep.subr.mxu0 0.0
    %660 = vmatpush1.msra.mxu0 0.0
    %661 = vmatprep.mubr.f32.mxu0 0.0
    %662 = vmatmul.mubr.f32.gmra.mrb[0].mxu0 %v373
    %v663 = vpop.f32.mrb[0].mxu0
    %v664 = vadd.f32 0.0, %v663
    %v665 = vpop.f32.mrb[0].mxu0
    %v666 = vadd.f32 0.0, %v665
    %667 = vdwg.mxu0
    %668 = vmatprep.subr.mxu0 0.0
    %669 = vmatpush1.msra.mxu0 %v531
    %670 = vmatprep.subr.mxu0 0.0
    %671 = vmatpush1.msra.mxu0 %v540
    %672 = vmatprep.subr.mxu0 0.0
    %673 = vmatpush1.msra.mxu0 %v549
    %674 = vmatprep.subr.mxu0 0.0
    %675 = vmatpush1.msra.mxu0 %v558
    %676 = vmatprep.subr.mxu0 0.0
    %677 = vmatpush1.msra.mxu0 %v524
    %678 = vmatprep.subr.mxu0 0.0
    %679 = vmatpush1.msra.mxu0 %v569
    %680 = vmatprep.subr.mxu0 0.0
    %681 = vmatpush1.msra.mxu0 %v578
    %682 = vmatprep.subr.mxu0 0.0
    %683 = vmatpush1.msra.mxu0 %v587
    %684 = vmatprep.subr.mxu0 0.0
    %685 = vmatpush1.msra.mxu0 %v596
    %686 = vmatprep.subr.mxu0 0.0
    %687 = vmatpush1.msra.mxu0 0.0
    %688 = vmatprep.subr.mxu0 0.0
    %689 = vmatpush1.msra.mxu0 0.0
    %690 = vmatprep.subr.mxu0 0.0
    %691 = vmatpush1.msra.mxu0 0.0
    %692 = vmatprep.subr.mxu0 0.0
    %693 = vmatpush1.msra.mxu0 0.0
    %694 = vmatprep.subr.mxu0 0.0
    %695 = vmatpush1.msra.mxu0 0.0
    %696 = vmatprep.subr.mxu0 0.0
    %697 = vmatpush1.msra.mxu0 0.0
    %698 = vmatprep.subr.mxu0 0.0
    %699 = vmatpush1.msra.mxu0 0.0
    %700 = vmatprep.subr.mxu0 0.0
    %701 = vmatpush1.msra.mxu0 0.0
    %702 = vmatprep.subr.mxu0 0.0
    %703 = vmatpush1.msra.mxu0 0.0
    %704 = vmatprep.subr.mxu0 0.0
    %705 = vmatpush1.msra.mxu0 0.0
    %706 = vmatprep.subr.mxu0 0.0
    %707 = vmatpush1.msra.mxu0 0.0
    %708 = vmatprep.subr.mxu0 0.0
    %709 = vmatpush1.msra.mxu0 0.0
    %710 = vmatprep.subr.mxu0 0.0
    %711 = vmatpush1.msra.mxu0 0.0
    %712 = vmatprep.subr.mxu0 0.0
    %713 = vmatpush1.msra.mxu0 0.0
    %714 = vmatprep.subr.mxu0 0.0
    %715 = vmatpush1.msra.mxu0 0.0
    %716 = vmatprep.subr.mxu0 0.0
    %717 = vmatpush1.msra.mxu0 0.0
    %718 = vmatprep.subr.mxu0 0.0
    %719 = vmatpush1.msra.mxu0 0.0
    %720 = vmatprep.subr.mxu0 0.0
    %721 = vmatpush1.msra.mxu0 0.0
    %722 = vmatprep.subr.mxu0 0.0
    %723 = vmatpush1.msra.mxu0 0.0
    %724 = vmatprep.subr.mxu0 0.0
    %725 = vmatpush1.msra.mxu0 0.0
    %726 = vmatprep.subr.mxu0 0.0
    %727 = vmatpush1.msra.mxu0 0.0
    %728 = vmatprep.subr.mxu0 0.0
    %729 = vmatpush1.msra.mxu0 0.0
    %730 = vmatprep.subr.mxu0 0.0
    %731 = vmatpush1.msra.mxu0 0.0
    %732 = vmatprep.mubr.f32.mxu0 0.0
    %733 = vmatmul.mubr.f32.gmra.mrb[0].mxu0 %v373
    %v734 = vpop.f32.mrb[0].mxu0
    %v735 = vadd.f32 0.0, %v734
    %v736 = vpop.f32.mrb[0].mxu0
    %737 = vdwg.mxu0
    %v738 = vadd.f32 %v226, %v664
    %v739 = vadd.f32 %v228, %v666
    %v740 = vadd.f32 %v297, %v735
    %v741 = vtanh.pop %v738
    %v742 = vtanh.pop %v739
    %v743 = vtanh.pop %v740
    %v744 = vmul.f32 %v67, %v741
    %v745 = vmul.f32 %v68, %v742
    %v746 = vmul.f32 %v69, %v743
    %747 = vrot.lane.b32.xlu0 %v744, 19
    %v748 = vpop.permute.xlu0 %747
    %749 = vrot.lane.b32.xlu0 %v745, 19
    %v750 = vpop.permute.xlu0 %749
    %751 = vrot.lane.b32.xlu0 %v746, 19
    %v752 = vpop.permute.xlu0 %751
    %v753 = vsel %vm81, %v750, %v752
    %v754 = vsel %vm81, %v748, %v750
    %v755 = vsel %vm81, %v752, %v748
    %756 = vrot.lane.b32.xlu0 %v744, 18
    %v757 = vpop.permute.xlu0 %756
    %758 = vrot.lane.b32.xlu0 %v745, 18
    %v759 = vpop.permute.xlu0 %758
    %760 = vrot.lane.b32.xlu0 %v746, 18
    %v761 = vpop.permute.xlu0 %760
    %v762 = vsel %vm91, %v759, %v761
    %v763 = vsel %vm91, %v757, %v759
    %v764 = vsel %vm91, %v761, %v757
    %765 = vrot.lane.b32.xlu0 %v744, 17
    %v766 = vpop.permute.xlu0 %765
    %767 = vrot.lane.b32.xlu0 %v745, 17
    %v768 = vpop.permute.xlu0 %767
    %769 = vrot.lane.b32.xlu0 %v746, 17
    %v770 = vpop.permute.xlu0 %769
    %v771 = vsel %vm101, %v768, %v770
    %v772 = vsel %vm101, %v766, %v768
    %v773 = vsel %vm101, %v770, %v766
    %774 = vrot.lane.b32.xlu0 %v744, 1
    %v775 = vpop.permute.xlu0 %774
    %776 = vrot.lane.b32.xlu0 %v745, 1
    %v777 = vpop.permute.xlu0 %776
    %778 = vrot.lane.b32.xlu0 %v746, 1
    %v779 = vpop.permute.xlu0 %778
    %v780 = vsel %vm111, %v777, %v779
    %v781 = vsel %vm111, %v775, %v777
    %v782 = vsel %vm111, %v779, %v775
    %783 = vrot.lane.b32.xlu0 %v744, 127
    %v784 = vpop.permute.xlu0 %783
    %785 = vrot.lane.b32.xlu0 %v745, 127
    %v786 = vpop.permute.xlu0 %785
    %787 = vrot.lane.b32.xlu0 %v746, 127
    %v788 = vpop.permute.xlu0 %787
    %v789 = vsel %vm121, %v786, %v788
    %v790 = vsel %vm121, %v784, %v786
    %v791 = vsel %vm121, %v788, %v784
    %792 = vrot.lane.b32.xlu0 %v744, 111
    %v793 = vpop.permute.xlu0 %792
    %794 = vrot.lane.b32.xlu0 %v745, 111
    %v795 = vpop.permute.xlu0 %794
    %796 = vrot.lane.b32.xlu0 %v746, 111
    %v797 = vpop.permute.xlu0 %796
    %v798 = vsel %vm131, %v795, %v797
    %v799 = vsel %vm131, %v793, %v795
    %v800 = vsel %vm131, %v797, %v793
    %801 = vrot.lane.b32.xlu0 %v744, 110
    %v802 = vpop.permute.xlu0 %801
    %803 = vrot.lane.b32.xlu0 %v745, 110
    %v804 = vpop.permute.xlu0 %803
    %805 = vrot.lane.b32.xlu0 %v746, 110
    %v806 = vpop.permute.xlu0 %805
    %v807 = vsel %vm141, %v804, %v806
    %v808 = vsel %vm141, %v802, %v804
    %v809 = vsel %vm141, %v806, %v802
    %810 = vrot.lane.b32.xlu0 %v744, 109
    %v811 = vpop.permute.xlu0 %810
    %812 = vrot.lane.b32.xlu0 %v745, 109
    %v813 = vpop.permute.xlu0 %812
    %814 = vrot.lane.b32.xlu0 %v746, 109
    %v815 = vpop.permute.xlu0 %814
    %v816 = vsel %vm151, %v813, %v815
    %v817 = vsel %vm151, %v811, %v813
    %v818 = vsel %vm151, %v815, %v811
    %819 = vmatprep.subr.mxu0 %v754
    %820 = vmatpush1.msra.mxu0 %v755
    %821 = vmatprep.subr.mxu0 %v763
    %822 = vmatpush1.msra.mxu0 %v764
    %823 = vmatprep.subr.mxu0 %v772
    %824 = vmatpush1.msra.mxu0 %v773
    %825 = vmatprep.subr.mxu0 %v781
    %826 = vmatpush1.msra.mxu0 %v782
    %827 = vmatprep.subr.mxu0 %v745
    %828 = vmatpush1.msra.mxu0 %v744
    %829 = vmatprep.subr.mxu0 %v789
    %830 = vmatpush1.msra.mxu0 %v790
    %831 = vmatprep.subr.mxu0 %v798
    %832 = vmatpush1.msra.mxu0 %v799
    %833 = vmatprep.subr.mxu0 %v807
    %834 = vmatpush1.msra.mxu0 %v808
    %835 = vmatprep.subr.mxu0 %v816
    %836 = vmatpush1.msra.mxu0 %v817
    %837 = vmatprep.subr.mxu0 0.0
    %838 = vmatpush1.msra.mxu0 0.0
    %839 = vmatprep.subr.mxu0 0.0
    %840 = vmatpush1.msra.mxu0 0.0
    %841 = vmatprep.subr.mxu0 0.0
    %842 = vmatpush1.msra.mxu0 0.0
    %843 = vmatprep.subr.mxu0 0.0
    %844 = vmatpush1.msra.mxu0 0.0
    %845 = vmatprep.subr.mxu0 0.0
    %846 = vmatpush1.msra.mxu0 0.0
    %847 = vmatprep.subr.mxu0 0.0
    %848 = vmatpush1.msra.mxu0 0.0
    %849 = vmatprep.subr.mxu0 0.0
    %850 = vmatpush1.msra.mxu0 0.0
    %851 = vmatprep.subr.mxu0 0.0
    %852 = vmatpush1.msra.mxu0 0.0
    %853 = vmatprep.subr.mxu0 0.0
    %854 = vmatpush1.msra.mxu0 0.0
    %855 = vmatprep.subr.mxu0 0.0
    %856 = vmatpush1.msra.mxu0 0.0
    %857 = vmatprep.subr.mxu0 0.0
    %858 = vmatpush1.msra.mxu0 0.0
    %859 = vmatprep.subr.mxu0 0.0
    %860 = vmatpush1.msra.mxu0 0.0
    %861 = vmatprep.subr.mxu0 0.0
    %862 = vmatpush1.msra.mxu0 0.0
    %863 = vmatprep.subr.mxu0 0.0
    %864 = vmatpush1.msra.mxu0 0.0
    %865 = vmatprep.subr.mxu0 0.0
    %866 = vmatpush1.msra.mxu0 0.0
    %867 = vmatprep.subr.mxu0 0.0
    %868 = vmatpush1.msra.mxu0 0.0
    %869 = vmatprep.subr.mxu0 0.0
    %870 = vmatpush1.msra.mxu0 0.0
    %871 = vmatprep.subr.mxu0 0.0
    %872 = vmatpush1.msra.mxu0 0.0
    %873 = vmatprep.subr.mxu0 0.0
    %874 = vmatpush1.msra.mxu0 0.0
    %875 = vmatprep.subr.mxu0 0.0
    %876 = vmatpush1.msra.mxu0 0.0
    %877 = vmatprep.subr.mxu0 0.0
    %878 = vmatpush1.msra.mxu0 0.0
    %879 = vmatprep.subr.mxu0 0.0
    %880 = vmatpush1.msra.mxu0 0.0
    %881 = vmatprep.subr.mxu0 0.0
    %882 = vmatpush1.msra.mxu0 0.0
    %883 = vmatprep.mubr.f32.mxu0 0.0
    %884 = vmatmul.mubr.f32.gmra.mrb[0].mxu0 %v373
    %v885 = vpop.f32.mrb[0].mxu0
    %v886 = vadd.f32 0.0, %v885
    %v887 = vpop.f32.mrb[0].mxu0
    %v888 = vadd.f32 0.0, %v887
    %889 = vdwg.mxu0
    %890 = vmatprep.subr.mxu0 0.0
    %891 = vmatpush1.msra.mxu0 %v753
    %892 = vmatprep.subr.mxu0 0.0
    %893 = vmatpush1.msra.mxu0 %v762
    %894 = vmatprep.subr.mxu0 0.0
    %895 = vmatpush1.msra.mxu0 %v771
    %896 = vmatprep.subr.mxu0 0.0
    %897 = vmatpush1.msra.mxu0 %v780
    %898 = vmatprep.subr.mxu0 0.0
    %899 = vmatpush1.msra.mxu0 %v746
    %900 = vmatprep.subr.mxu0 0.0
    %901 = vmatpush1.msra.mxu0 %v791
    %902 = vmatprep.subr.mxu0 0.0
    %903 = vmatpush1.msra.mxu0 %v800
    %904 = vmatprep.subr.mxu0 0.0
    %905 = vmatpush1.msra.mxu0 %v809
    %906 = vmatprep.subr.mxu0 0.0
    %907 = vmatpush1.msra.mxu0 %v818
    %908 = vmatprep.subr.mxu0 0.0
    %909 = vmatpush1.msra.mxu0 0.0
    %910 = vmatprep.subr.mxu0 0.0
    %911 = vmatpush1.msra.mxu0 0.0
    %912 = vmatprep.subr.mxu0 0.0
    %913 = vmatpush1.msra.mxu0 0.0
    %914 = vmatprep.subr.mxu0 0.0
    %915 = vmatpush1.msra.mxu0 0.0
    %916 = vmatprep.subr.mxu0 0.0
    %917 = vmatpush1.msra.mxu0 0.0
    %918 = vmatprep.subr.mxu0 0.0
    %919 = vmatpush1.msra.mxu0 0.0
    %920 = vmatprep.subr.mxu0 0.0
    %921 = vmatpush1.msra.mxu0 0.0
    %922 = vmatprep.subr.mxu0 0.0
    %923 = vmatpush1.msra.mxu0 0.0
    %924 = vmatprep.subr.mxu0 0.0
    %925 = vmatpush1.msra.mxu0 0.0
    %926 = vmatprep.subr.mxu0 0.0
    %927 = vmatpush1.msra.mxu0 0.0
    %928 = vmatprep.subr.mxu0 0.0
    %929 = vmatpush1.msra.mxu0 0.0
    %930 = vmatprep.subr.mxu0 0.0
    %931 = vmatpush1.msra.mxu0 0.0
    %932 = vmatprep.subr.mxu0 0.0
    %933 = vmatpush1.msra.mxu0 0.0
    %934 = vmatprep.subr.mxu0 0.0
    %935 = vmatpush1.msra.mxu0 0.0
    %936 = vmatprep.subr.mxu0 0.0
    %937 = vmatpush1.msra.mxu0 0.0
    %938 = vmatprep.subr.mxu0 0.0
    %939 = vmatpush1.msra.mxu0 0.0
    %940 = vmatprep.subr.mxu0 0.0
    %941 = vmatpush1.msra.mxu0 0.0
    %942 = vmatprep.subr.mxu0 0.0
    %943 = vmatpush1.msra.mxu0 0.0
    %944 = vmatprep.subr.mxu0 0.0
    %945 = vmatpush1.msra.mxu0 0.0
    %946 = vmatprep.subr.mxu0 0.0
    %947 = vmatpush1.msra.mxu0 0.0
    %948 = vmatprep.subr.mxu0 0.0
    %949 = vmatpush1.msra.mxu0 0.0
    %950 = vmatprep.subr.mxu0 0.0
    %951 = vmatpush1.msra.mxu0 0.0
    %952 = vmatprep.subr.mxu0 0.0
    %953 = vmatpush1.msra.mxu0 0.0
    %954 = vmatprep.mubr.f32.mxu0 0.0
    %955 = vmatmul.mubr.f32.gmra.mrb[0].mxu0 %v373
    %v956 = vpop.f32.mrb[0].mxu0
    %v957 = vadd.f32 0.0, %v956
    %v958 = vpop.f32.mrb[0].mxu0
    %959 = vdwg.mxu0
    %v960 = vadd.f32 %v226, %v886
    %v961 = vadd.f32 %v228, %v888
    %v962 = vadd.f32 %v297, %v957
    %v963 = vtanh.pop %v960
    %v964 = vtanh.pop %v961
    %v965 = vtanh.pop %v962
    %v966 = vmul.f32 %v67, %v963
    %v967 = vmul.f32 %v68, %v964
    %v968 = vmul.f32 %v69, %v965
    %969 = vrot.lane.b32.xlu0 %v966, 19
    %v970 = vpop.permute.xlu0 %969
    %971 = vrot.lane.b32.xlu0 %v967, 19
    %v972 = vpop.permute.xlu0 %971
    %973 = vrot.lane.b32.xlu0 %v968, 19
    %v974 = vpop.permute.xlu0 %973
    %v975 = vsel %vm81, %v972, %v974
    %v976 = vsel %vm81, %v970, %v972
    %v977 = vsel %vm81, %v974, %v970
    %978 = vrot.lane.b32.xlu0 %v966, 18
    %v979 = vpop.permute.xlu0 %978
    %980 = vrot.lane.b32.xlu0 %v967, 18
    %v981 = vpop.permute.xlu0 %980
    %982 = vrot.lane.b32.xlu0 %v968, 18
    %v983 = vpop.permute.xlu0 %982
    %v984 = vsel %vm91, %v981, %v983
    %v985 = vsel %vm91, %v979, %v981
    %v986 = vsel %vm91, %v983, %v979
    %987 = vrot.lane.b32.xlu0 %v966, 17
    %v988 = vpop.permute.xlu0 %987
    %989 = vrot.lane.b32.xlu0 %v967, 17
    %v990 = vpop.permute.xlu0 %989
    %991 = vrot.lane.b32.xlu0 %v968, 17
    %v992 = vpop.permute.xlu0 %991
    %v993 = vsel %vm101, %v990, %v992
    %v994 = vsel %vm101, %v988, %v990
    %v995 = vsel %vm101, %v992, %v988
    %996 = vrot.lane.b32.xlu0 %v966, 1
    %v997 = vpop.permute.xlu0 %996
    %998 = vrot.lane.b32.xlu0 %v967, 1
    %v999 = vpop.permute.xlu0 %998
    %1000 = vrot.lane.b32.xlu0 %v968, 1
    %v1001 = vpop.permute.xlu0 %1000
    %v1002 = vsel %vm111, %v999, %v1001
    %v1003 = vsel %vm111, %v997, %v999
    %v1004 = vsel %vm111, %v1001, %v997
    %1005 = vrot.lane.b32.xlu0 %v966, 127
    %v1006 = vpop.permute.xlu0 %1005
    %1007 = vrot.lane.b32.xlu0 %v967, 127
    %v1008 = vpop.permute.xlu0 %1007
    %1009 = vrot.lane.b32.xlu0 %v968, 127
    %v1010 = vpop.permute.xlu0 %1009
    %v1011 = vsel %vm121, %v1008, %v1010
    %v1012 = vsel %vm121, %v1006, %v1008
    %v1013 = vsel %vm121, %v1010, %v1006
    %1014 = vrot.lane.b32.xlu0 %v966, 111
    %v1015 = vpop.permute.xlu0 %1014
    %1016 = vrot.lane.b32.xlu0 %v967, 111
    %v1017 = vpop.permute.xlu0 %1016
    %1018 = vrot.lane.b32.xlu0 %v968, 111
    %v1019 = vpop.permute.xlu0 %1018
    %v1020 = vsel %vm131, %v1017, %v1019
    %v1021 = vsel %vm131, %v1015, %v1017
    %v1022 = vsel %vm131, %v1019, %v1015
    %1023 = vrot.lane.b32.xlu0 %v966, 110
    %v1024 = vpop.permute.xlu0 %1023
    %1025 = vrot.lane.b32.xlu0 %v967, 110
    %v1026 = vpop.permute.xlu0 %1025
    %1027 = vrot.lane.b32.xlu0 %v968, 110
    %v1028 = vpop.permute.xlu0 %1027
    %v1029 = vsel %vm141, %v1026, %v1028
    %v1030 = vsel %vm141, %v1024, %v1026
    %v1031 = vsel %vm141, %v1028, %v1024
    %1032 = vrot.lane.b32.xlu0 %v966, 109
    %v1033 = vpop.permute.xlu0 %1032
    %1034 = vrot.lane.b32.xlu0 %v967, 109
    %v1035 = vpop.permute.xlu0 %1034
    %1036 = vrot.lane.b32.xlu0 %v968, 109
    %v1037 = vpop.permute.xlu0 %1036
    %v1038 = vsel %vm151, %v1035, %v1037
    %v1039 = vsel %vm151, %v1033, %v1035
    %v1040 = vsel %vm151, %v1037, %v1033
    %1041 = vmatprep.subr.mxu0 %v976
    %1042 = vmatpush1.msra.mxu0 %v977
    %1043 = vmatprep.subr.mxu0 %v985
    %1044 = vmatpush1.msra.mxu0 %v986
    %1045 = vmatprep.subr.mxu0 %v994
    %1046 = vmatpush1.msra.mxu0 %v995
    %1047 = vmatprep.subr.mxu0 %v1003
    %1048 = vmatpush1.msra.mxu0 %v1004
    %1049 = vmatprep.subr.mxu0 %v967
    %1050 = vmatpush1.msra.mxu0 %v966
    %1051 = vmatprep.subr.mxu0 %v1011
    %1052 = vmatpush1.msra.mxu0 %v1012
    %1053 = vmatprep.subr.mxu0 %v1020
    %1054 = vmatpush1.msra.mxu0 %v1021
    %1055 = vmatprep.subr.mxu0 %v1029
    %1056 = vmatpush1.msra.mxu0 %v1030
    %1057 = vmatprep.subr.mxu0 %v1038
    %1058 = vmatpush1.msra.mxu0 %v1039
    %1059 = vmatprep.subr.mxu0 0.0
    %1060 = vmatpush1.msra.mxu0 0.0
    %1061 = vmatprep.subr.mxu0 0.0
    %1062 = vmatpush1.msra.mxu0 0.0
    %1063 = vmatprep.subr.mxu0 0.0
    %1064 = vmatpush1.msra.mxu0 0.0
    %1065 = vmatprep.subr.mxu0 0.0
    %1066 = vmatpush1.msra.mxu0 0.0
    %1067 = vmatprep.subr.mxu0 0.0
    %1068 = vmatpush1.msra.mxu0 0.0
    %1069 = vmatprep.subr.mxu0 0.0
    %1070 = vmatpush1.msra.mxu0 0.0
    %1071 = vmatprep.subr.mxu0 0.0
    %1072 = vmatpush1.msra.mxu0 0.0
    %1073 = vmatprep.subr.mxu0 0.0
    %1074 = vmatpush1.msra.mxu0 0.0
    %1075 = vmatprep.subr.mxu0 0.0
    %1076 = vmatpush1.msra.mxu0 0.0
    %1077 = vmatprep.subr.mxu0 0.0
    %1078 = vmatpush1.msra.mxu0 0.0
    %1079 = vmatprep.subr.mxu0 0.0
    %1080 = vmatpush1.msra.mxu0 0.0
    %1081 = vmatprep.subr.mxu0 0.0
    %1082 = vmatpush1.msra.mxu0 0.0
    %1083 = vmatprep.subr.mxu0 0.0
    %1084 = vmatpush1.msra.mxu0 0.0
    %1085 = vmatprep.subr.mxu0 0.0
    %1086 = vmatpush1.msra.mxu0 0.0
    %1087 = vmatprep.subr.mxu0 0.0
    %1088 = vmatpush1.msra.mxu0 0.0
    %1089 = vmatprep.subr.mxu0 0.0
    %1090 = vmatpush1.msra.mxu0 0.0
    %1091 = vmatprep.subr.mxu0 0.0
    %1092 = vmatpush1.msra.mxu0 0.0
    %1093 = vmatprep.subr.mxu0 0.0
    %1094 = vmatpush1.msra.mxu0 0.0
    %1095 = vmatprep.subr.mxu0 0.0
    %1096 = vmatpush1.msra.mxu0 0.0
    %1097 = vmatprep.subr.mxu0 0.0
    %1098 = vmatpush1.msra.mxu0 0.0
    %1099 = vmatprep.subr.mxu0 0.0
    %1100 = vmatpush1.msra.mxu0 0.0
    %1101 = vmatprep.subr.mxu0 0.0
    %1102 = vmatpush1.msra.mxu0 0.0
    %1103 = vmatprep.subr.mxu0 0.0
    %1104 = vmatpush1.msra.mxu0 0.0
    %1105 = vmatprep.mubr.f32.mxu0 0.0
    %1106 = vmatmul.mubr.f32.gmra.mrb[0].mxu0 %v373
    %v1107 = vpop.f32.mrb[0].mxu0
    %v1108 = vadd.f32 0.0, %v1107
    %v1109 = vpop.f32.mrb[0].mxu0
    %v1110 = vadd.f32 0.0, %v1109
    %1111 = vdwg.mxu0
    %1112 = vmatprep.subr.mxu0 0.0
    %1113 = vmatpush1.msra.mxu0 %v975
    %1114 = vmatprep.subr.mxu0 0.0
    %1115 = vmatpush1.msra.mxu0 %v984
    %1116 = vmatprep.subr.mxu0 0.0
    %1117 = vmatpush1.msra.mxu0 %v993
    %1118 = vmatprep.subr.mxu0 0.0
    %1119 = vmatpush1.msra.mxu0 %v1002
    %1120 = vmatprep.subr.mxu0 0.0
    %1121 = vmatpush1.msra.mxu0 %v968
    %1122 = vmatprep.subr.mxu0 0.0
    %1123 = vmatpush1.msra.mxu0 %v1013
    %1124 = vmatprep.subr.mxu0 0.0
    %1125 = vmatpush1.msra.mxu0 %v1022
    %1126 = vmatprep.subr.mxu0 0.0
    %1127 = vmatpush1.msra.mxu0 %v1031
    %1128 = vmatprep.subr.mxu0 0.0
    %1129 = vmatpush1.msra.mxu0 %v1040
    %1130 = vmatprep.subr.mxu0 0.0
    %1131 = vmatpush1.msra.mxu0 0.0
    %1132 = vmatprep.subr.mxu0 0.0
    %1133 = vmatpush1.msra.mxu0 0.0
    %1134 = vmatprep.subr.mxu0 0.0
    %1135 = vmatpush1.msra.mxu0 0.0
    %1136 = vmatprep.subr.mxu0 0.0
    %1137 = vmatpush1.msra.mxu0 0.0
    %1138 = vmatprep.subr.mxu0 0.0
    %1139 = vmatpush1.msra.mxu0 0.0
    %1140 = vmatprep.subr.mxu0 0.0
    %1141 = vmatpush1.msra.mxu0 0.0
    %1142 = vmatprep.subr.mxu0 0.0
    %1143 = vmatpush1.msra.mxu0 0.0
    %1144 = vmatprep.subr.mxu0 0.0
    %1145 = vmatpush1.msra.mxu0 0.0
    %1146 = vmatprep.subr.mxu0 0.0
    %1147 = vmatpush1.msra.mxu0 0.0
    %1148 = vmatprep.subr.mxu0 0.0
    %1149 = vmatpush1.msra.mxu0 0.0
    %1150 = vmatprep.subr.mxu0 0.0
    %1151 = vmatpush1.msra.mxu0 0.0
    %1152 = vmatprep.subr.mxu0 0.0
    %1153 = vmatpush1.msra.mxu0 0.0
    %1154 = vmatprep.subr.mxu0 0.0
    %1155 = vmatpush1.msra.mxu0 0.0
    %1156 = vmatprep.subr.mxu0 0.0
    %1157 = vmatpush1.msra.mxu0 0.0
    %1158 = vmatprep.subr.mxu0 0.0
    %1159 = vmatpush1.msra.mxu0 0.0
    %1160 = vmatprep.subr.mxu0 0.0
    %1161 = vmatpush1.msra.mxu0 0.0
    %1162 = vmatprep.subr.mxu0 0.0
    %1163 = vmatpush1.msra.mxu0 0.0
    %1164 = vmatprep.subr.mxu0 0.0
    %1165 = vmatpush1.msra.mxu0 0.0
    %1166 = vmatprep.subr.mxu0 0.0
    %1167 = vmatpush1.msra.mxu0 0.0
    %1168 = vmatprep.subr.mxu0 0.0
    %1169 = vmatpush1.msra.mxu0 0.0
    %1170 = vmatprep.subr.mxu0 0.0
    %1171 = vmatpush1.msra.mxu0 0.0
    %1172 = vmatprep.subr.mxu0 0.0
    %1173 = vmatpush1.msra.mxu0 0.0
    %1174 = vmatprep.subr.mxu0 0.0
    %1175 = vmatpush1.msra.mxu0 0.0
    %1176 = vmatprep.mubr.f32.mxu0 0.0
    %1177 = vmatmul.mubr.f32.gmra.mrb[0].mxu0 %v373
    %v1178 = vpop.f32.mrb[0].mxu0
    %v1179 = vadd.f32 0.0, %v1178
    %v1180 = vpop.f32.mrb[0].mxu0
    %1181 = vdwg.mxu0
    %v1182 = vadd.f32 %v226, %v1108
    %v1183 = vadd.f32 %v228, %v1110
    %v1184 = vadd.f32 %v297, %v1179
    %v1185 = vtanh.pop %v1182
    %v1186 = vtanh.pop %v1183
    %v1187 = vtanh.pop %v1184
    %v1188 = vmul.f32 %v67, %v1185
    %v1189 = vmul.f32 %v68, %v1186
    %v1190 = vmul.f32 %v69, %v1187
    %1191 = vrot.lane.b32.xlu0 %v1188, 19
    %v1192 = vpop.permute.xlu0 %1191
    %1193 = vrot.lane.b32.xlu0 %v1189, 19
    %v1194 = vpop.permute.xlu0 %1193
    %1195 = vrot.lane.b32.xlu0 %v1190, 19
    %v1196 = vpop.permute.xlu0 %1195
    %v1197 = vsel %vm81, %v1194, %v1196
    %v1198 = vsel %vm81, %v1192, %v1194
    %v1199 = vsel %vm81, %v1196, %v1192
    %1200 = vrot.lane.b32.xlu0 %v1188, 18
    %v1201 = vpop.permute.xlu0 %1200
    %1202 = vrot.lane.b32.xlu0 %v1189, 18
    %v1203 = vpop.permute.xlu0 %1202
    %1204 = vrot.lane.b32.xlu0 %v1190, 18
    %v1205 = vpop.permute.xlu0 %1204
    %v1206 = vsel %vm91, %v1203, %v1205
    %v1207 = vsel %vm91, %v1201, %v1203
    %v1208 = vsel %vm91, %v1205, %v1201
    %1209 = vrot.lane.b32.xlu0 %v1188, 17
    %v1210 = vpop.permute.xlu0 %1209
    %1211 = vrot.lane.b32.xlu0 %v1189, 17
    %v1212 = vpop.permute.xlu0 %1211
    %1213 = vrot.lane.b32.xlu0 %v1190, 17
    %v1214 = vpop.permute.xlu0 %1213
    %v1215 = vsel %vm101, %v1212, %v1214
    %v1216 = vsel %vm101, %v1210, %v1212
    %v1217 = vsel %vm101, %v1214, %v1210
    %1218 = vrot.lane.b32.xlu0 %v1188, 1
    %v1219 = vpop.permute.xlu0 %1218
    %1220 = vrot.lane.b32.xlu0 %v1189, 1
    %v1221 = vpop.permute.xlu0 %1220
    %1222 = vrot.lane.b32.xlu0 %v1190, 1
    %v1223 = vpop.permute.xlu0 %1222
    %v1224 = vsel %vm111, %v1221, %v1223
    %v1225 = vsel %vm111, %v1219, %v1221
    %v1226 = vsel %vm111, %v1223, %v1219
    %1227 = vrot.lane.b32.xlu0 %v1188, 127
    %v1228 = vpop.permute.xlu0 %1227
    %1229 = vrot.lane.b32.xlu0 %v1189, 127
    %v1230 = vpop.permute.xlu0 %1229
    %1231 = vrot.lane.b32.xlu0 %v1190, 127
    %v1232 = vpop.permute.xlu0 %1231
    %v1233 = vsel %vm121, %v1230, %v1232
    %v1234 = vsel %vm121, %v1228, %v1230
    %v1235 = vsel %vm121, %v1232, %v1228
    %1236 = vrot.lane.b32.xlu0 %v1188, 111
    %v1237 = vpop.permute.xlu0 %1236
    %1238 = vrot.lane.b32.xlu0 %v1189, 111
    %v1239 = vpop.permute.xlu0 %1238
    %1240 = vrot.lane.b32.xlu0 %v1190, 111
    %v1241 = vpop.permute.xlu0 %1240
    %v1242 = vsel %vm131, %v1239, %v1241
    %v1243 = vsel %vm131, %v1237, %v1239
    %v1244 = vsel %vm131, %v1241, %v1237
    %1245 = vrot.lane.b32.xlu0 %v1188, 110
    %v1246 = vpop.permute.xlu0 %1245
    %1247 = vrot.lane.b32.xlu0 %v1189, 110
    %v1248 = vpop.permute.xlu0 %1247
    %1249 = vrot.lane.b32.xlu0 %v1190, 110
    %v1250 = vpop.permute.xlu0 %1249
    %v1251 = vsel %vm141, %v1248, %v1250
    %v1252 = vsel %vm141, %v1246, %v1248
    %v1253 = vsel %vm141, %v1250, %v1246
    %1254 = vrot.lane.b32.xlu0 %v1188, 109
    %v1255 = vpop.permute.xlu0 %1254
    %1256 = vrot.lane.b32.xlu0 %v1189, 109
    %v1257 = vpop.permute.xlu0 %1256
    %1258 = vrot.lane.b32.xlu0 %v1190, 109
    %v1259 = vpop.permute.xlu0 %1258
    %v1260 = vsel %vm151, %v1257, %v1259
    %v1261 = vsel %vm151, %v1255, %v1257
    %v1262 = vsel %vm151, %v1259, %v1255
    %1263 = vmatprep.subr.mxu0 %v1198
    %1264 = vmatpush1.msra.mxu0 %v1199
    %1265 = vmatprep.subr.mxu0 %v1207
    %1266 = vmatpush1.msra.mxu0 %v1208
    %1267 = vmatprep.subr.mxu0 %v1216
    %1268 = vmatpush1.msra.mxu0 %v1217
    %1269 = vmatprep.subr.mxu0 %v1225
    %1270 = vmatpush1.msra.mxu0 %v1226
    %1271 = vmatprep.subr.mxu0 %v1189
    %1272 = vmatpush1.msra.mxu0 %v1188
    %1273 = vmatprep.subr.mxu0 %v1233
    %1274 = vmatpush1.msra.mxu0 %v1234
    %1275 = vmatprep.subr.mxu0 %v1242
    %1276 = vmatpush1.msra.mxu0 %v1243
    %1277 = vmatprep.subr.mxu0 %v1251
    %1278 = vmatpush1.msra.mxu0 %v1252
    %1279 = vmatprep.subr.mxu0 %v1260
    %1280 = vmatpush1.msra.mxu0 %v1261
    %1281 = vmatprep.subr.mxu0 0.0
    %1282 = vmatpush1.msra.mxu0 0.0
    %1283 = vmatprep.subr.mxu0 0.0
    %1284 = vmatpush1.msra.mxu0 0.0
    %1285 = vmatprep.subr.mxu0 0.0
    %1286 = vmatpush1.msra.mxu0 0.0
    %1287 = vmatprep.subr.mxu0 0.0
    %1288 = vmatpush1.msra.mxu0 0.0
    %1289 = vmatprep.subr.mxu0 0.0
    %1290 = vmatpush1.msra.mxu0 0.0
    %1291 = vmatprep.subr.mxu0 0.0
    %1292 = vmatpush1.msra.mxu0 0.0
    %1293 = vmatprep.subr.mxu0 0.0
    %1294 = vmatpush1.msra.mxu0 0.0
    %1295 = vmatprep.subr.mxu0 0.0
    %1296 = vmatpush1.msra.mxu0 0.0
    %1297 = vmatprep.subr.mxu0 0.0
    %1298 = vmatpush1.msra.mxu0 0.0
    %1299 = vmatprep.subr.mxu0 0.0
    %1300 = vmatpush1.msra.mxu0 0.0
    %1301 = vmatprep.subr.mxu0 0.0
    %1302 = vmatpush1.msra.mxu0 0.0
    %1303 = vmatprep.subr.mxu0 0.0
    %1304 = vmatpush1.msra.mxu0 0.0
    %1305 = vmatprep.subr.mxu0 0.0
    %1306 = vmatpush1.msra.mxu0 0.0
    %1307 = vmatprep.subr.mxu0 0.0
    %1308 = vmatpush1.msra.mxu0 0.0
    %1309 = vmatprep.subr.mxu0 0.0
    %1310 = vmatpush1.msra.mxu0 0.0
    %1311 = vmatprep.subr.mxu0 0.0
    %1312 = vmatpush1.msra.mxu0 0.0
    %1313 = vmatprep.subr.mxu0 0.0
    %1314 = vmatpush1.msra.mxu0 0.0
    %1315 = vmatprep.subr.mxu0 0.0
    %1316 = vmatpush1.msra.mxu0 0.0
    %1317 = vmatprep.subr.mxu0 0.0
    %1318 = vmatpush1.msra.mxu0 0.0
    %1319 = vmatprep.subr.mxu0 0.0
    %1320 = vmatpush1.msra.mxu0 0.0
    %1321 = vmatprep.subr.mxu0 0.0
    %1322 = vmatpush1.msra.mxu0 0.0
    %1323 = vmatprep.subr.mxu0 0.0
    %1324 = vmatpush1.msra.mxu0 0.0
    %1325 = vmatprep.subr.mxu0 0.0
    %1326 = vmatpush1.msra.mxu0 0.0
    %1327 = vmatprep.mubr.f32.mxu0 0.0
    %1328 = vmatmul.mubr.f32.gmra.mrb[0].mxu0 %v373
    %v1329 = vpop.f32.mrb[0].mxu0
    %v1330 = vadd.f32 0.0, %v1329
    %v1331 = vpop.f32.mrb[0].mxu0
    %v1332 = vadd.f32 0.0, %v1331
    %1333 = vdwg.mxu0
    %1334 = vmatprep.subr.mxu0 0.0
    %1335 = vmatpush1.msra.mxu0 %v1197
    %1336 = vmatprep.subr.mxu0 0.0
    %1337 = vmatpush1.msra.mxu0 %v1206
    %1338 = vmatprep.subr.mxu0 0.0
    %1339 = vmatpush1.msra.mxu0 %v1215
    %1340 = vmatprep.subr.mxu0 0.0
    %1341 = vmatpush1.msra.mxu0 %v1224
    %1342 = vmatprep.subr.mxu0 0.0
    %1343 = vmatpush1.msra.mxu0 %v1190
    %1344 = vmatprep.subr.mxu0 0.0
    %1345 = vmatpush1.msra.mxu0 %v1235
    %1346 = vmatprep.subr.mxu0 0.0
    %1347 = vmatpush1.msra.mxu0 %v1244
    %1348 = vmatprep.subr.mxu0 0.0
    %1349 = vmatpush1.msra.mxu0 %v1253
    %1350 = vmatprep.subr.mxu0 0.0
    %1351 = vmatpush1.msra.mxu0 %v1262
    %1352 = vmatprep.subr.mxu0 0.0
    %1353 = vmatpush1.msra.mxu0 0.0
    %1354 = vmatprep.subr.mxu0 0.0
    %1355 = vmatpush1.msra.mxu0 0.0
    %1356 = vmatprep.subr.mxu0 0.0
    %1357 = vmatpush1.msra.mxu0 0.0
    %1358 = vmatprep.subr.mxu0 0.0
    %1359 = vmatpush1.msra.mxu0 0.0
    %1360 = vmatprep.subr.mxu0 0.0
    %1361 = vmatpush1.msra.mxu0 0.0
    %1362 = vmatprep.subr.mxu0 0.0
    %1363 = vmatpush1.msra.mxu0 0.0
    %1364 = vmatprep.subr.mxu0 0.0
    %1365 = vmatpush1.msra.mxu0 0.0
    %1366 = vmatprep.subr.mxu0 0.0
    %1367 = vmatpush1.msra.mxu0 0.0
    %1368 = vmatprep.subr.mxu0 0.0
    %1369 = vmatpush1.msra.mxu0 0.0
    %1370 = vmatprep.subr.mxu0 0.0
    %1371 = vmatpush1.msra.mxu0 0.0
    %1372 = vmatprep.subr.mxu0 0.0
    %1373 = vmatpush1.msra.mxu0 0.0
    %1374 = vmatprep.subr.mxu0 0.0
    %1375 = vmatpush1.msra.mxu0 0.0
    %1376 = vmatprep.subr.mxu0 0.0
    %1377 = vmatpush1.msra.mxu0 0.0
    %1378 = vmatprep.subr.mxu0 0.0
    %1379 = vmatpush1.msra.mxu0 0.0
    %1380 = vmatprep.subr.mxu0 0.0
    %1381 = vmatpush1.msra.mxu0 0.0
    %1382 = vmatprep.subr.mxu0 0.0
    %1383 = vmatpush1.msra.mxu0 0.0
    %1384 = vmatprep.subr.mxu0 0.0
    %1385 = vmatpush1.msra.mxu0 0.0
    %1386 = vmatprep.subr.mxu0 0.0
    %1387 = vmatpush1.msra.mxu0 0.0
    %1388 = vmatprep.subr.mxu0 0.0
    %1389 = vmatpush1.msra.mxu0 0.0
    %1390 = vmatprep.subr.mxu0 0.0
    %1391 = vmatpush1.msra.mxu0 0.0
    %1392 = vmatprep.subr.mxu0 0.0
    %1393 = vmatpush1.msra.mxu0 0.0
    %1394 = vmatprep.subr.mxu0 0.0
    %1395 = vmatpush1.msra.mxu0 0.0
    %1396 = vmatprep.subr.mxu0 0.0
    %1397 = vmatpush1.msra.mxu0 0.0
    %1398 = vmatprep.mubr.f32.mxu0 0.0
    %1399 = vmatmul.mubr.f32.gmra.mrb[0].mxu0 %v373
    %v1400 = vpop.f32.mrb[0].mxu0
    %v1401 = vadd.f32 0.0, %v1400
    %v1402 = vpop.f32.mrb[0].mxu0
    %1403 = vdwg.mxu0
    %v1404 = vadd.f32 %v226, %v1330
    %v1405 = vadd.f32 %v228, %v1332
    %v1406 = vadd.f32 %v297, %v1401
    %v1407 = vtanh.pop %v1404
    %v1408 = vtanh.pop %v1405
    %v1409 = vtanh.pop %v1406
    %v1410 = vmul.f32 %v67, %v1407
    %v1411 = vmul.f32 %v68, %v1408
    %v1412 = vmul.f32 %v69, %v1409
    %1413 = vrot.lane.b32.xlu0 %v1410, 19
    %v1414 = vpop.permute.xlu0 %1413
    %1415 = vrot.lane.b32.xlu0 %v1411, 19
    %v1416 = vpop.permute.xlu0 %1415
    %1417 = vrot.lane.b32.xlu0 %v1412, 19
    %v1418 = vpop.permute.xlu0 %1417
    %v1419 = vsel %vm81, %v1416, %v1418
    %v1420 = vsel %vm81, %v1414, %v1416
    %v1421 = vsel %vm81, %v1418, %v1414
    %1422 = vrot.lane.b32.xlu0 %v1410, 18
    %v1423 = vpop.permute.xlu0 %1422
    %1424 = vrot.lane.b32.xlu0 %v1411, 18
    %v1425 = vpop.permute.xlu0 %1424
    %1426 = vrot.lane.b32.xlu0 %v1412, 18
    %v1427 = vpop.permute.xlu0 %1426
    %v1428 = vsel %vm91, %v1425, %v1427
    %v1429 = vsel %vm91, %v1423, %v1425
    %v1430 = vsel %vm91, %v1427, %v1423
    %1431 = vrot.lane.b32.xlu0 %v1410, 17
    %v1432 = vpop.permute.xlu0 %1431
    %1433 = vrot.lane.b32.xlu0 %v1411, 17
    %v1434 = vpop.permute.xlu0 %1433
    %1435 = vrot.lane.b32.xlu0 %v1412, 17
    %v1436 = vpop.permute.xlu0 %1435
    %v1437 = vsel %vm101, %v1434, %v1436
    %v1438 = vsel %vm101, %v1432, %v1434
    %v1439 = vsel %vm101, %v1436, %v1432
    %1440 = vrot.lane.b32.xlu0 %v1410, 1
    %v1441 = vpop.permute.xlu0 %1440
    %1442 = vrot.lane.b32.xlu0 %v1411, 1
    %v1443 = vpop.permute.xlu0 %1442
    %1444 = vrot.lane.b32.xlu0 %v1412, 1
    %v1445 = vpop.permute.xlu0 %1444
    %v1446 = vsel %vm111, %v1443, %v1445
    %v1447 = vsel %vm111, %v1441, %v1443
    %v1448 = vsel %vm111, %v1445, %v1441
    %1449 = vrot.lane.b32.xlu0 %v1410, 127
    %v1450 = vpop.permute.xlu0 %1449
    %1451 = vrot.lane.b32.xlu0 %v1411, 127
    %v1452 = vpop.permute.xlu0 %1451
    %1453 = vrot.lane.b32.xlu0 %v1412, 127
    %v1454 = vpop.permute.xlu0 %1453
    %v1455 = vsel %vm121, %v1452, %v1454
    %v1456 = vsel %vm121, %v1450, %v1452
    %v1457 = vsel %vm121, %v1454, %v1450
    %1458 = vrot.lane.b32.xlu0 %v1410, 111
    %v1459 = vpop.permute.xlu0 %1458
    %1460 = vrot.lane.b32.xlu0 %v1411, 111
    %v1461 = vpop.permute.xlu0 %1460
    %1462 = vrot.lane.b32.xlu0 %v1412, 111
    %v1463 = vpop.permute.xlu0 %1462
    %v1464 = vsel %vm131, %v1461, %v1463
    %v1465 = vsel %vm131, %v1459, %v1461
    %v1466 = vsel %vm131, %v1463, %v1459
    %1467 = vrot.lane.b32.xlu0 %v1410, 110
    %v1468 = vpop.permute.xlu0 %1467
    %1469 = vrot.lane.b32.xlu0 %v1411, 110
    %v1470 = vpop.permute.xlu0 %1469
    %1471 = vrot.lane.b32.xlu0 %v1412, 110
    %v1472 = vpop.permute.xlu0 %1471
    %v1473 = vsel %vm141, %v1470, %v1472
    %v1474 = vsel %vm141, %v1468, %v1470
    %v1475 = vsel %vm141, %v1472, %v1468
    %1476 = vrot.lane.b32.xlu0 %v1410, 109
    %v1477 = vpop.permute.xlu0 %1476
    %1478 = vrot.lane.b32.xlu0 %v1411, 109
    %v1479 = vpop.permute.xlu0 %1478
    %1480 = vrot.lane.b32.xlu0 %v1412, 109
    %v1481 = vpop.permute.xlu0 %1480
    %v1482 = vsel %vm151, %v1479, %v1481
    %v1483 = vsel %vm151, %v1477, %v1479
    %v1484 = vsel %vm151, %v1481, %v1477
    %1485 = vmatprep.subr.mxu0 %v1420
    %1486 = vmatpush1.msra.mxu0 %v1421
    %1487 = vmatprep.subr.mxu0 %v1429
    %1488 = vmatpush1.msra.mxu0 %v1430
    %1489 = vmatprep.subr.mxu0 %v1438
    %1490 = vmatpush1.msra.mxu0 %v1439
    %1491 = vmatprep.subr.mxu0 %v1447
    %1492 = vmatpush1.msra.mxu0 %v1448
    %1493 = vmatprep.subr.mxu0 %v1411
    %1494 = vmatpush1.msra.mxu0 %v1410
    %1495 = vmatprep.subr.mxu0 %v1455
    %1496 = vmatpush1.msra.mxu0 %v1456
    %1497 = vmatprep.subr.mxu0 %v1464
    %1498 = vmatpush1.msra.mxu0 %v1465
    %1499 = vmatprep.subr.mxu0 %v1473
    %1500 = vmatpush1.msra.mxu0 %v1474
    %1501 = vmatprep.subr.mxu0 %v1482
    %1502 = vmatpush1.msra.mxu0 %v1483
    %1503 = vmatprep.subr.mxu0 0.0
    %1504 = vmatpush1.msra.mxu0 0.0
    %1505 = vmatprep.subr.mxu0 0.0
    %1506 = vmatpush1.msra.mxu0 0.0
    %1507 = vmatprep.subr.mxu0 0.0
    %1508 = vmatpush1.msra.mxu0 0.0
    %1509 = vmatprep.subr.mxu0 0.0
    %1510 = vmatpush1.msra.mxu0 0.0
    %1511 = vmatprep.subr.mxu0 0.0
    %1512 = vmatpush1.msra.mxu0 0.0
    %1513 = vmatprep.subr.mxu0 0.0
    %1514 = vmatpush1.msra.mxu0 0.0
    %1515 = vmatprep.subr.mxu0 0.0
    %1516 = vmatpush1.msra.mxu0 0.0
    %1517 = vmatprep.subr.mxu0 0.0
    %1518 = vmatpush1.msra.mxu0 0.0
    %1519 = vmatprep.subr.mxu0 0.0
    %1520 = vmatpush1.msra.mxu0 0.0
    %1521 = vmatprep.subr.mxu0 0.0
    %1522 = vmatpush1.msra.mxu0 0.0
    %1523 = vmatprep.subr.mxu0 0.0
    %1524 = vmatpush1.msra.mxu0 0.0
    %1525 = vmatprep.subr.mxu0 0.0
    %1526 = vmatpush1.msra.mxu0 0.0
    %1527 = vmatprep.subr.mxu0 0.0
    %1528 = vmatpush1.msra.mxu0 0.0
    %1529 = vmatprep.subr.mxu0 0.0
    %1530 = vmatpush1.msra.mxu0 0.0
    %1531 = vmatprep.subr.mxu0 0.0
    %1532 = vmatpush1.msra.mxu0 0.0
    %1533 = vmatprep.subr.mxu0 0.0
    %1534 = vmatpush1.msra.mxu0 0.0
    %1535 = vmatprep.subr.mxu0 0.0
    %1536 = vmatpush1.msra.mxu0 0.0
    %1537 = vmatprep.subr.mxu0 0.0
    %1538 = vmatpush1.msra.mxu0 0.0
    %1539 = vmatprep.subr.mxu0 0.0
    %1540 = vmatpush1.msra.mxu0 0.0
    %1541 = vmatprep.subr.mxu0 0.0
    %1542 = vmatpush1.msra.mxu0 0.0
    %1543 = vmatprep.subr.mxu0 0.0
    %1544 = vmatpush1.msra.mxu0 0.0
    %1545 = vmatprep.subr.mxu0 0.0
    %1546 = vmatpush1.msra.mxu0 0.0
    %1547 = vmatprep.subr.mxu0 0.0
    %1548 = vmatpush1.msra.mxu0 0.0
    %1549 = vmatprep.mubr.f32.mxu0 0.0
    %1550 = vmatmul.mubr.f32.gmra.mrb[0].mxu0 %v373
    %v1551 = vpop.f32.mrb[0].mxu0
    %v1552 = vadd.f32 0.0, %v1551
    %v1553 = vpop.f32.mrb[0].mxu0
    %v1554 = vadd.f32 0.0, %v1553
    %1555 = vdwg.mxu0
    %1556 = vmatprep.subr.mxu0 0.0
    %1557 = vmatpush1.msra.mxu0 %v1419
    %1558 = vmatprep.subr.mxu0 0.0
    %1559 = vmatpush1.msra.mxu0 %v1428
    %1560 = vmatprep.subr.mxu0 0.0
    %1561 = vmatpush1.msra.mxu0 %v1437
    %1562 = vmatprep.subr.mxu0 0.0
    %1563 = vmatpush1.msra.mxu0 %v1446
    %1564 = vmatprep.subr.mxu0 0.0
    %1565 = vmatpush1.msra.mxu0 %v1412
    %1566 = vmatprep.subr.mxu0 0.0
    %1567 = vmatpush1.msra.mxu0 %v1457
    %1568 = vmatprep.subr.mxu0 0.0
    %1569 = vmatpush1.msra.mxu0 %v1466
    %1570 = vmatprep.subr.mxu0 0.0
    %1571 = vmatpush1.msra.mxu0 %v1475
    %1572 = vmatprep.subr.mxu0 0.0
    %1573 = vmatpush1.msra.mxu0 %v1484
    %1574 = vmatprep.subr.mxu0 0.0
    %1575 = vmatpush1.msra.mxu0 0.0
    %1576 = vmatprep.subr.mxu0 0.0
    %1577 = vmatpush1.msra.mxu0 0.0
    %1578 = vmatprep.subr.mxu0 0.0
    %1579 = vmatpush1.msra.mxu0 0.0
    %1580 = vmatprep.subr.mxu0 0.0
    %1581 = vmatpush1.msra.mxu0 0.0
    %1582 = vmatprep.subr.mxu0 0.0
    %1583 = vmatpush1.msra.mxu0 0.0
    %1584 = vmatprep.subr.mxu0 0.0
    %1585 = vmatpush1.msra.mxu0 0.0
    %1586 = vmatprep.subr.mxu0 0.0
    %1587 = vmatpush1.msra.mxu0 0.0
    %1588 = vmatprep.subr.mxu0 0.0
    %1589 = vmatpush1.msra.mxu0 0.0
    %1590 = vmatprep.subr.mxu0 0.0
    %1591 = vmatpush1.msra.mxu0 0.0
    %1592 = vmatprep.subr.mxu0 0.0
    %1593 = vmatpush1.msra.mxu0 0.0
    %1594 = vmatprep.subr.mxu0 0.0
    %1595 = vmatpush1.msra.mxu0 0.0
    %1596 = vmatprep.subr.mxu0 0.0
    %1597 = vmatpush1.msra.mxu0 0.0
    %1598 = vmatprep.subr.mxu0 0.0
    %1599 = vmatpush1.msra.mxu0 0.0
    %1600 = vmatprep.subr.mxu0 0.0
    %1601 = vmatpush1.msra.mxu0 0.0
    %1602 = vmatprep.subr.mxu0 0.0
    %1603 = vmatpush1.msra.mxu0 0.0
    %1604 = vmatprep.subr.mxu0 0.0
    %1605 = vmatpush1.msra.mxu0 0.0
    %1606 = vmatprep.subr.mxu0 0.0
    %1607 = vmatpush1.msra.mxu0 0.0
    %1608 = vmatprep.subr.mxu0 0.0
    %1609 = vmatpush1.msra.mxu0 0.0
    %1610 = vmatprep.subr.mxu0 0.0
    %1611 = vmatpush1.msra.mxu0 0.0
    %1612 = vmatprep.subr.mxu0 0.0
    %1613 = vmatpush1.msra.mxu0 0.0
    %1614 = vmatprep.subr.mxu0 0.0
    %1615 = vmatpush1.msra.mxu0 0.0
    %1616 = vmatprep.subr.mxu0 0.0
    %1617 = vmatpush1.msra.mxu0 0.0
    %1618 = vmatprep.subr.mxu0 0.0
    %1619 = vmatpush1.msra.mxu0 0.0
    %1620 = vmatprep.mubr.f32.mxu0 0.0
    %1621 = vmatmul.mubr.f32.gmra.mrb[0].mxu0 %v373
    %v1622 = vpop.f32.mrb[0].mxu0
    %v1623 = vadd.f32 0.0, %v1622
    %v1624 = vpop.f32.mrb[0].mxu0
    %1625 = vdwg.mxu0
    %v1626 = vadd.f32 %v226, %v1552
    %v1627 = vadd.f32 %v228, %v1554
    %v1628 = vadd.f32 %v297, %v1623
    %v1629 = vtanh.pop %v1626
    %v1630 = vtanh.pop %v1627
    %v1631 = vtanh.pop %v1628
    %v1632 = vmul.f32 %v67, %v1629
    %v1633 = vmul.f32 %v68, %v1630
    %v1634 = vmul.f32 %v69, %v1631
    %1635 = vrot.lane.b32.xlu0 %v1632, 19
    %v1636 = vpop.permute.xlu0 %1635
    %1637 = vrot.lane.b32.xlu0 %v1633, 19
    %v1638 = vpop.permute.xlu0 %1637
    %1639 = vrot.lane.b32.xlu0 %v1634, 19
    %v1640 = vpop.permute.xlu0 %1639
    %v1641 = vsel %vm81, %v1638, %v1640
    %v1642 = vsel %vm81, %v1636, %v1638
    %v1643 = vsel %vm81, %v1640, %v1636
    %1644 = vrot.lane.b32.xlu0 %v1632, 18
    %v1645 = vpop.permute.xlu0 %1644
    %1646 = vrot.lane.b32.xlu0 %v1633, 18
    %v1647 = vpop.permute.xlu0 %1646
    %1648 = vrot.lane.b32.xlu0 %v1634, 18
    %v1649 = vpop.permute.xlu0 %1648
    %v1650 = vsel %vm91, %v1647, %v1649
    %v1651 = vsel %vm91, %v1645, %v1647
    %v1652 = vsel %vm91, %v1649, %v1645
    %1653 = vrot.lane.b32.xlu0 %v1632, 17
    %v1654 = vpop.permute.xlu0 %1653
    %1655 = vrot.lane.b32.xlu0 %v1633, 17
    %v1656 = vpop.permute.xlu0 %1655
    %1657 = vrot.lane.b32.xlu0 %v1634, 17
    %v1658 = vpop.permute.xlu0 %1657
    %v1659 = vsel %vm101, %v1656, %v1658
    %v1660 = vsel %vm101, %v1654, %v1656
    %v1661 = vsel %vm101, %v1658, %v1654
    %1662 = vrot.lane.b32.xlu0 %v1632, 1
    %v1663 = vpop.permute.xlu0 %1662
    %1664 = vrot.lane.b32.xlu0 %v1633, 1
    %v1665 = vpop.permute.xlu0 %1664
    %1666 = vrot.lane.b32.xlu0 %v1634, 1
    %v1667 = vpop.permute.xlu0 %1666
    %v1668 = vsel %vm111, %v1665, %v1667
    %v1669 = vsel %vm111, %v1663, %v1665
    %v1670 = vsel %vm111, %v1667, %v1663
    %1671 = vrot.lane.b32.xlu0 %v1632, 127
    %v1672 = vpop.permute.xlu0 %1671
    %1673 = vrot.lane.b32.xlu0 %v1633, 127
    %v1674 = vpop.permute.xlu0 %1673
    %1675 = vrot.lane.b32.xlu0 %v1634, 127
    %v1676 = vpop.permute.xlu0 %1675
    %v1677 = vsel %vm121, %v1674, %v1676
    %v1678 = vsel %vm121, %v1672, %v1674
    %v1679 = vsel %vm121, %v1676, %v1672
    %1680 = vrot.lane.b32.xlu0 %v1632, 111
    %v1681 = vpop.permute.xlu0 %1680
    %1682 = vrot.lane.b32.xlu0 %v1633, 111
    %v1683 = vpop.permute.xlu0 %1682
    %1684 = vrot.lane.b32.xlu0 %v1634, 111
    %v1685 = vpop.permute.xlu0 %1684
    %v1686 = vsel %vm131, %v1683, %v1685
    %v1687 = vsel %vm131, %v1681, %v1683
    %v1688 = vsel %vm131, %v1685, %v1681
    %1689 = vrot.lane.b32.xlu0 %v1632, 110
    %v1690 = vpop.permute.xlu0 %1689
    %1691 = vrot.lane.b32.xlu0 %v1633, 110
    %v1692 = vpop.permute.xlu0 %1691
    %1693 = vrot.lane.b32.xlu0 %v1634, 110
    %v1694 = vpop.permute.xlu0 %1693
    %v1695 = vsel %vm141, %v1692, %v1694
    %v1696 = vsel %vm141, %v1690, %v1692
    %v1697 = vsel %vm141, %v1694, %v1690
    %1698 = vrot.lane.b32.xlu0 %v1632, 109
    %v1699 = vpop.permute.xlu0 %1698
    %1700 = vrot.lane.b32.xlu0 %v1633, 109
    %v1701 = vpop.permute.xlu0 %1700
    %1702 = vrot.lane.b32.xlu0 %v1634, 109
    %v1703 = vpop.permute.xlu0 %1702
    %v1704 = vsel %vm151, %v1701, %v1703
    %v1705 = vsel %vm151, %v1699, %v1701
    %v1706 = vsel %vm151, %v1703, %v1699
    %1707 = vmatprep.subr.mxu0 %v1642
    %1708 = vmatpush1.msra.mxu0 %v1643
    %1709 = vmatprep.subr.mxu0 %v1651
    %1710 = vmatpush1.msra.mxu0 %v1652
    %1711 = vmatprep.subr.mxu0 %v1660
    %1712 = vmatpush1.msra.mxu0 %v1661
    %1713 = vmatprep.subr.mxu0 %v1669
    %1714 = vmatpush1.msra.mxu0 %v1670
    %1715 = vmatprep.subr.mxu0 %v1633
    %1716 = vmatpush1.msra.mxu0 %v1632
    %1717 = vmatprep.subr.mxu0 %v1677
    %1718 = vmatpush1.msra.mxu0 %v1678
    %1719 = vmatprep.subr.mxu0 %v1686
    %1720 = vmatpush1.msra.mxu0 %v1687
    %1721 = vmatprep.subr.mxu0 %v1695
    %1722 = vmatpush1.msra.mxu0 %v1696
    %1723 = vmatprep.subr.mxu0 %v1704
    %1724 = vmatpush1.msra.mxu0 %v1705
    %1725 = vmatprep.subr.mxu0 0.0
    %1726 = vmatpush1.msra.mxu0 0.0
    %1727 = vmatprep.subr.mxu0 0.0
    %1728 = vmatpush1.msra.mxu0 0.0
    %1729 = vmatprep.subr.mxu0 0.0
    %1730 = vmatpush1.msra.mxu0 0.0
    %1731 = vmatprep.subr.mxu0 0.0
    %1732 = vmatpush1.msra.mxu0 0.0
    %1733 = vmatprep.subr.mxu0 0.0
    %1734 = vmatpush1.msra.mxu0 0.0
    %1735 = vmatprep.subr.mxu0 0.0
    %1736 = vmatpush1.msra.mxu0 0.0
    %1737 = vmatprep.subr.mxu0 0.0
    %1738 = vmatpush1.msra.mxu0 0.0
    %1739 = vmatprep.subr.mxu0 0.0
    %1740 = vmatpush1.msra.mxu0 0.0
    %1741 = vmatprep.subr.mxu0 0.0
    %1742 = vmatpush1.msra.mxu0 0.0
    %1743 = vmatprep.subr.mxu0 0.0
    %1744 = vmatpush1.msra.mxu0 0.0
    %1745 = vmatprep.subr.mxu0 0.0
    %1746 = vmatpush1.msra.mxu0 0.0
    %1747 = vmatprep.subr.mxu0 0.0
    %1748 = vmatpush1.msra.mxu0 0.0
    %1749 = vmatprep.subr.mxu0 0.0
    %1750 = vmatpush1.msra.mxu0 0.0
    %1751 = vmatprep.subr.mxu0 0.0
    %1752 = vmatpush1.msra.mxu0 0.0
    %1753 = vmatprep.subr.mxu0 0.0
    %1754 = vmatpush1.msra.mxu0 0.0
    %1755 = vmatprep.subr.mxu0 0.0
    %1756 = vmatpush1.msra.mxu0 0.0
    %1757 = vmatprep.subr.mxu0 0.0
    %1758 = vmatpush1.msra.mxu0 0.0
    %1759 = vmatprep.subr.mxu0 0.0
    %1760 = vmatpush1.msra.mxu0 0.0
    %1761 = vmatprep.subr.mxu0 0.0
    %1762 = vmatpush1.msra.mxu0 0.0
    %1763 = vmatprep.subr.mxu0 0.0
    %1764 = vmatpush1.msra.mxu0 0.0
    %1765 = vmatprep.subr.mxu0 0.0
    %1766 = vmatpush1.msra.mxu0 0.0
    %1767 = vmatprep.subr.mxu0 0.0
    %1768 = vmatpush1.msra.mxu0 0.0
    %1769 = vmatprep.subr.mxu0 0.0
    %1770 = vmatpush1.msra.mxu0 0.0
    %1771 = vmatprep.mubr.f32.mxu0 0.0
    %1772 = vmatmul.mubr.f32.gmra.mrb[0].mxu0 %v373
    %v1773 = vpop.f32.mrb[0].mxu0
    %v1774 = vadd.f32 0.0, %v1773
    %v1775 = vpop.f32.mrb[0].mxu0
    %v1776 = vadd.f32 0.0, %v1775
    %1777 = vdwg.mxu0
    %1778 = vmatprep.subr.mxu0 0.0
    %1779 = vmatpush1.msra.mxu0 %v1641
    %1780 = vmatprep.subr.mxu0 0.0
    %1781 = vmatpush1.msra.mxu0 %v1650
    %1782 = vmatprep.subr.mxu0 0.0
    %1783 = vmatpush1.msra.mxu0 %v1659
    %1784 = vmatprep.subr.mxu0 0.0
    %1785 = vmatpush1.msra.mxu0 %v1668
    %1786 = vmatprep.subr.mxu0 0.0
    %1787 = vmatpush1.msra.mxu0 %v1634
    %1788 = vmatprep.subr.mxu0 0.0
    %1789 = vmatpush1.msra.mxu0 %v1679
    %1790 = vmatprep.subr.mxu0 0.0
    %1791 = vmatpush1.msra.mxu0 %v1688
    %1792 = vmatprep.subr.mxu0 0.0
    %1793 = vmatpush1.msra.mxu0 %v1697
    %1794 = vmatprep.subr.mxu0 0.0
    %1795 = vmatpush1.msra.mxu0 %v1706
    %1796 = vmatprep.subr.mxu0 0.0
    %1797 = vmatpush1.msra.mxu0 0.0
    %1798 = vmatprep.subr.mxu0 0.0
    %1799 = vmatpush1.msra.mxu0 0.0
    %1800 = vmatprep.subr.mxu0 0.0
    %1801 = vmatpush1.msra.mxu0 0.0
    %1802 = vmatprep.subr.mxu0 0.0
    %1803 = vmatpush1.msra.mxu0 0.0
    %1804 = vmatprep.subr.mxu0 0.0
    %1805 = vmatpush1.msra.mxu0 0.0
    %1806 = vmatprep.subr.mxu0 0.0
    %1807 = vmatpush1.msra.mxu0 0.0
    %1808 = vmatprep.subr.mxu0 0.0
    %1809 = vmatpush1.msra.mxu0 0.0
    %1810 = vmatprep.subr.mxu0 0.0
    %1811 = vmatpush1.msra.mxu0 0.0
    %1812 = vmatprep.subr.mxu0 0.0
    %1813 = vmatpush1.msra.mxu0 0.0
    %1814 = vmatprep.subr.mxu0 0.0
    %1815 = vmatpush1.msra.mxu0 0.0
    %1816 = vmatprep.subr.mxu0 0.0
    %1817 = vmatpush1.msra.mxu0 0.0
    %1818 = vmatprep.subr.mxu0 0.0
    %1819 = vmatpush1.msra.mxu0 0.0
    %1820 = vmatprep.subr.mxu0 0.0
    %1821 = vmatpush1.msra.mxu0 0.0
    %1822 = vmatprep.subr.mxu0 0.0
    %1823 = vmatpush1.msra.mxu0 0.0
    %1824 = vmatprep.subr.mxu0 0.0
    %1825 = vmatpush1.msra.mxu0 0.0
    %1826 = vmatprep.subr.mxu0 0.0
    %1827 = vmatpush1.msra.mxu0 0.0
    %1828 = vmatprep.subr.mxu0 0.0
    %1829 = vmatpush1.msra.mxu0 0.0
    %1830 = vmatprep.subr.mxu0 0.0
    %1831 = vmatpush1.msra.mxu0 0.0
    %1832 = vmatprep.subr.mxu0 0.0
    %1833 = vmatpush1.msra.mxu0 0.0
    %1834 = vmatprep.subr.mxu0 0.0
    %1835 = vmatpush1.msra.mxu0 0.0
    %1836 = vmatprep.subr.mxu0 0.0
    %1837 = vmatpush1.msra.mxu0 0.0
    %1838 = vmatprep.subr.mxu0 0.0
    %1839 = vmatpush1.msra.mxu0 0.0
    %1840 = vmatprep.subr.mxu0 0.0
    %1841 = vmatpush1.msra.mxu0 0.0
    %1842 = vmatprep.mubr.f32.mxu0 0.0
    %1843 = vmatmul.mubr.f32.gmra.mrb[0].mxu0 %v373
    %v1844 = vpop.f32.mrb[0].mxu0
    %v1845 = vadd.f32 0.0, %v1844
    %v1846 = vpop.f32.mrb[0].mxu0
    %1847 = vdwg.mxu0
    %v1848 = vadd.f32 %v226, %v1774
    %v1849 = vadd.f32 %v228, %v1776
    %v1850 = vadd.f32 %v297, %v1845
    %v1851 = vtanh.pop %v1848
    %v1852 = vtanh.pop %v1849
    %v1853 = vtanh.pop %v1850
    %v1854 = vmul.f32 %v67, %v1851
    %v1855 = vmul.f32 %v68, %v1852
    %v1856 = vmul.f32 %v69, %v1853
    %1857 = vrot.lane.b32.xlu0 %v1854, 19
    %v1858 = vpop.permute.xlu0 %1857
    %1859 = vrot.lane.b32.xlu0 %v1855, 19
    %v1860 = vpop.permute.xlu0 %1859
    %1861 = vrot.lane.b32.xlu0 %v1856, 19
    %v1862 = vpop.permute.xlu0 %1861
    %v1863 = vsel %vm81, %v1860, %v1862
    %v1864 = vsel %vm81, %v1858, %v1860
    %v1865 = vsel %vm81, %v1862, %v1858
    %1866 = vrot.lane.b32.xlu0 %v1854, 18
    %v1867 = vpop.permute.xlu0 %1866
    %1868 = vrot.lane.b32.xlu0 %v1855, 18
    %v1869 = vpop.permute.xlu0 %1868
    %1870 = vrot.lane.b32.xlu0 %v1856, 18
    %v1871 = vpop.permute.xlu0 %1870
    %v1872 = vsel %vm91, %v1869, %v1871
    %v1873 = vsel %vm91, %v1867, %v1869
    %v1874 = vsel %vm91, %v1871, %v1867
    %1875 = vrot.lane.b32.xlu0 %v1854, 17
    %v1876 = vpop.permute.xlu0 %1875
    %1877 = vrot.lane.b32.xlu0 %v1855, 17
    %v1878 = vpop.permute.xlu0 %1877
    %1879 = vrot.lane.b32.xlu0 %v1856, 17
    %v1880 = vpop.permute.xlu0 %1879
    %v1881 = vsel %vm101, %v1878, %v1880
    %v1882 = vsel %vm101, %v1876, %v1878
    %v1883 = vsel %vm101, %v1880, %v1876
    %1884 = vrot.lane.b32.xlu0 %v1854, 1
    %v1885 = vpop.permute.xlu0 %1884
    %1886 = vrot.lane.b32.xlu0 %v1855, 1
    %v1887 = vpop.permute.xlu0 %1886
    %1888 = vrot.lane.b32.xlu0 %v1856, 1
    %v1889 = vpop.permute.xlu0 %1888
    %v1890 = vsel %vm111, %v1887, %v1889
    %v1891 = vsel %vm111, %v1885, %v1887
    %v1892 = vsel %vm111, %v1889, %v1885
    %1893 = vrot.lane.b32.xlu0 %v1854, 127
    %v1894 = vpop.permute.xlu0 %1893
    %1895 = vrot.lane.b32.xlu0 %v1855, 127
    %v1896 = vpop.permute.xlu0 %1895
    %1897 = vrot.lane.b32.xlu0 %v1856, 127
    %v1898 = vpop.permute.xlu0 %1897
    %v1899 = vsel %vm121, %v1896, %v1898
    %v1900 = vsel %vm121, %v1894, %v1896
    %v1901 = vsel %vm121, %v1898, %v1894
    %1902 = vrot.lane.b32.xlu0 %v1854, 111
    %v1903 = vpop.permute.xlu0 %1902
    %1904 = vrot.lane.b32.xlu0 %v1855, 111
    %v1905 = vpop.permute.xlu0 %1904
    %1906 = vrot.lane.b32.xlu0 %v1856, 111
    %v1907 = vpop.permute.xlu0 %1906
    %v1908 = vsel %vm131, %v1905, %v1907
    %v1909 = vsel %vm131, %v1903, %v1905
    %v1910 = vsel %vm131, %v1907, %v1903
    %1911 = vrot.lane.b32.xlu0 %v1854, 110
    %v1912 = vpop.permute.xlu0 %1911
    %1913 = vrot.lane.b32.xlu0 %v1855, 110
    %v1914 = vpop.permute.xlu0 %1913
    %1915 = vrot.lane.b32.xlu0 %v1856, 110
    %v1916 = vpop.permute.xlu0 %1915
    %v1917 = vsel %vm141, %v1914, %v1916
    %v1918 = vsel %vm141, %v1912, %v1914
    %v1919 = vsel %vm141, %v1916, %v1912
    %1920 = vrot.lane.b32.xlu0 %v1854, 109
    %v1921 = vpop.permute.xlu0 %1920
    %1922 = vrot.lane.b32.xlu0 %v1855, 109
    %v1923 = vpop.permute.xlu0 %1922
    %1924 = vrot.lane.b32.xlu0 %v1856, 109
    %v1925 = vpop.permute.xlu0 %1924
    %v1926 = vsel %vm151, %v1923, %v1925
    %v1927 = vsel %vm151, %v1921, %v1923
    %v1928 = vsel %vm151, %v1925, %v1921
    %1929 = vmatprep.subr.mxu0 %v1864
    %1930 = vmatpush1.msra.mxu0 %v1865
    %1931 = vmatprep.subr.mxu0 %v1873
    %1932 = vmatpush1.msra.mxu0 %v1874
    %1933 = vmatprep.subr.mxu0 %v1882
    %1934 = vmatpush1.msra.mxu0 %v1883
    %1935 = vmatprep.subr.mxu0 %v1891
    %1936 = vmatpush1.msra.mxu0 %v1892
    %1937 = vmatprep.subr.mxu0 %v1855
    %1938 = vmatpush1.msra.mxu0 %v1854
    %1939 = vmatprep.subr.mxu0 %v1899
    %1940 = vmatpush1.msra.mxu0 %v1900
    %1941 = vmatprep.subr.mxu0 %v1908
    %1942 = vmatpush1.msra.mxu0 %v1909
    %1943 = vmatprep.subr.mxu0 %v1917
    %1944 = vmatpush1.msra.mxu0 %v1918
    %1945 = vmatprep.subr.mxu0 %v1926
    %1946 = vmatpush1.msra.mxu0 %v1927
    %1947 = vmatprep.subr.mxu0 0.0
    %1948 = vmatpush1.msra.mxu0 0.0
    %1949 = vmatprep.subr.mxu0 0.0
    %1950 = vmatpush1.msra.mxu0 0.0
    %1951 = vmatprep.subr.mxu0 0.0
    %1952 = vmatpush1.msra.mxu0 0.0
    %1953 = vmatprep.subr.mxu0 0.0
    %1954 = vmatpush1.msra.mxu0 0.0
    %1955 = vmatprep.subr.mxu0 0.0
    %1956 = vmatpush1.msra.mxu0 0.0
    %1957 = vmatprep.subr.mxu0 0.0
    %1958 = vmatpush1.msra.mxu0 0.0
    %1959 = vmatprep.subr.mxu0 0.0
    %1960 = vmatpush1.msra.mxu0 0.0
    %1961 = vmatprep.subr.mxu0 0.0
    %1962 = vmatpush1.msra.mxu0 0.0
    %1963 = vmatprep.subr.mxu0 0.0
    %1964 = vmatpush1.msra.mxu0 0.0
    %1965 = vmatprep.subr.mxu0 0.0
    %1966 = vmatpush1.msra.mxu0 0.0
    %1967 = vmatprep.subr.mxu0 0.0
    %1968 = vmatpush1.msra.mxu0 0.0
    %1969 = vmatprep.subr.mxu0 0.0
    %1970 = vmatpush1.msra.mxu0 0.0
    %1971 = vmatprep.subr.mxu0 0.0
    %1972 = vmatpush1.msra.mxu0 0.0
    %1973 = vmatprep.subr.mxu0 0.0
    %1974 = vmatpush1.msra.mxu0 0.0
    %1975 = vmatprep.subr.mxu0 0.0
    %1976 = vmatpush1.msra.mxu0 0.0
    %1977 = vmatprep.subr.mxu0 0.0
    %1978 = vmatpush1.msra.mxu0 0.0
    %1979 = vmatprep.subr.mxu0 0.0
    %1980 = vmatpush1.msra.mxu0 0.0
    %1981 = vmatprep.subr.mxu0 0.0
    %1982 = vmatpush1.msra.mxu0 0.0
    %1983 = vmatprep.subr.mxu0 0.0
    %1984 = vmatpush1.msra.mxu0 0.0
    %1985 = vmatprep.subr.mxu0 0.0
    %1986 = vmatpush1.msra.mxu0 0.0
    %1987 = vmatprep.subr.mxu0 0.0
    %1988 = vmatpush1.msra.mxu0 0.0
    %1989 = vmatprep.subr.mxu0 0.0
    %1990 = vmatpush1.msra.mxu0 0.0
    %1991 = vmatprep.subr.mxu0 0.0
    %1992 = vmatpush1.msra.mxu0 0.0
    %1993 = vmatprep.mubr.f32.mxu0 0.0
    %1994 = vmatmul.mubr.f32.gmra.mrb[0].mxu0 %v373
    %v1995 = vpop.f32.mrb[0].mxu0
    %v1996 = vadd.f32 0.0, %v1995
    %v1997 = vpop.f32.mrb[0].mxu0
    %v1998 = vadd.f32 0.0, %v1997
    %1999 = vdwg.mxu0
    %2000 = vmatprep.subr.mxu0 0.0
    %2001 = vmatpush1.msra.mxu0 %v1863
    %2002 = vmatprep.subr.mxu0 0.0
    %2003 = vmatpush1.msra.mxu0 %v1872
    %2004 = vmatprep.subr.mxu0 0.0
    %2005 = vmatpush1.msra.mxu0 %v1881
    %2006 = vmatprep.subr.mxu0 0.0
    %2007 = vmatpush1.msra.mxu0 %v1890
    %2008 = vmatprep.subr.mxu0 0.0
    %2009 = vmatpush1.msra.mxu0 %v1856
    %2010 = vmatprep.subr.mxu0 0.0
    %2011 = vmatpush1.msra.mxu0 %v1901
    %2012 = vmatprep.subr.mxu0 0.0
    %2013 = vmatpush1.msra.mxu0 %v1910
    %2014 = vmatprep.subr.mxu0 0.0
    %2015 = vmatpush1.msra.mxu0 %v1919
    %2016 = vmatprep.subr.mxu0 0.0
    %2017 = vmatpush1.msra.mxu0 %v1928
    %2018 = vmatprep.subr.mxu0 0.0
    %2019 = vmatpush1.msra.mxu0 0.0
    %2020 = vmatprep.subr.mxu0 0.0
    %2021 = vmatpush1.msra.mxu0 0.0
    %2022 = vmatprep.subr.mxu0 0.0
    %2023 = vmatpush1.msra.mxu0 0.0
    %2024 = vmatprep.subr.mxu0 0.0
    %2025 = vmatpush1.msra.mxu0 0.0
    %2026 = vmatprep.subr.mxu0 0.0
    %2027 = vmatpush1.msra.mxu0 0.0
    %2028 = vmatprep.subr.mxu0 0.0
    %2029 = vmatpush1.msra.mxu0 0.0
    %2030 = vmatprep.subr.mxu0 0.0
    %2031 = vmatpush1.msra.mxu0 0.0
    %2032 = vmatprep.subr.mxu0 0.0
    %2033 = vmatpush1.msra.mxu0 0.0
    %2034 = vmatprep.subr.mxu0 0.0
    %2035 = vmatpush1.msra.mxu0 0.0
    %2036 = vmatprep.subr.mxu0 0.0
    %2037 = vmatpush1.msra.mxu0 0.0
    %2038 = vmatprep.subr.mxu0 0.0
    %2039 = vmatpush1.msra.mxu0 0.0
    %2040 = vmatprep.subr.mxu0 0.0
    %2041 = vmatpush1.msra.mxu0 0.0
    %2042 = vmatprep.subr.mxu0 0.0
    %2043 = vmatpush1.msra.mxu0 0.0
    %2044 = vmatprep.subr.mxu0 0.0
    %2045 = vmatpush1.msra.mxu0 0.0
    %2046 = vmatprep.subr.mxu0 0.0
    %2047 = vmatpush1.msra.mxu0 0.0
    %2048 = vmatprep.subr.mxu0 0.0
    %2049 = vmatpush1.msra.mxu0 0.0
    %2050 = vmatprep.subr.mxu0 0.0
    %2051 = vmatpush1.msra.mxu0 0.0
    %2052 = vmatprep.subr.mxu0 0.0
    %2053 = vmatpush1.msra.mxu0 0.0
    %2054 = vmatprep.subr.mxu0 0.0
    %2055 = vmatpush1.msra.mxu0 0.0
    %2056 = vmatprep.subr.mxu0 0.0
    %2057 = vmatpush1.msra.mxu0 0.0
    %2058 = vmatprep.subr.mxu0 0.0
    %2059 = vmatpush1.msra.mxu0 0.0
    %2060 = vmatprep.subr.mxu0 0.0
    %2061 = vmatpush1.msra.mxu0 0.0
    %2062 = vmatprep.subr.mxu0 0.0
    %2063 = vmatpush1.msra.mxu0 0.0
    %2064 = vmatprep.mubr.f32.mxu0 0.0
    %2065 = vmatmul.mubr.f32.gmra.mrb[0].mxu0 %v373
    %v2066 = vpop.f32.mrb[0].mxu0
    %v2067 = vadd.f32 0.0, %v2066
    %v2068 = vpop.f32.mrb[0].mxu0
    %2069 = vdwg.mxu0
    %v2070 = vadd.f32 %v226, %v1996
    %v2071 = vadd.f32 %v228, %v1998
    %v2072 = vadd.f32 %v297, %v2067
    %v2073 = vtanh.pop %v2070
    %v2074 = vtanh.pop %v2071
    %v2075 = vtanh.pop %v2072
    %v2076 = vmul.f32 %v67, %v2073
    %v2077 = vmul.f32 %v68, %v2074
    %v2078 = vmul.f32 %v69, %v2075
    %2079 = vrot.lane.b32.xlu0 %v2076, 19
    %v2080 = vpop.permute.xlu0 %2079
    %2081 = vrot.lane.b32.xlu0 %v2077, 19
    %v2082 = vpop.permute.xlu0 %2081
    %2083 = vrot.lane.b32.xlu0 %v2078, 19
    %v2084 = vpop.permute.xlu0 %2083
    %v2085 = vsel %vm81, %v2082, %v2084
    %v2086 = vsel %vm81, %v2080, %v2082
    %v2087 = vsel %vm81, %v2084, %v2080
    %2088 = vrot.lane.b32.xlu0 %v2076, 18
    %v2089 = vpop.permute.xlu0 %2088
    %2090 = vrot.lane.b32.xlu0 %v2077, 18
    %v2091 = vpop.permute.xlu0 %2090
    %2092 = vrot.lane.b32.xlu0 %v2078, 18
    %v2093 = vpop.permute.xlu0 %2092
    %v2094 = vsel %vm91, %v2091, %v2093
    %v2095 = vsel %vm91, %v2089, %v2091
    %v2096 = vsel %vm91, %v2093, %v2089
    %2097 = vrot.lane.b32.xlu0 %v2076, 17
    %v2098 = vpop.permute.xlu0 %2097
    %2099 = vrot.lane.b32.xlu0 %v2077, 17
    %v2100 = vpop.permute.xlu0 %2099
    %2101 = vrot.lane.b32.xlu0 %v2078, 17
    %v2102 = vpop.permute.xlu0 %2101
    %v2103 = vsel %vm101, %v2100, %v2102
    %v2104 = vsel %vm101, %v2098, %v2100
    %v2105 = vsel %vm101, %v2102, %v2098
    %2106 = vrot.lane.b32.xlu0 %v2076, 1
    %v2107 = vpop.permute.xlu0 %2106
    %2108 = vrot.lane.b32.xlu0 %v2077, 1
    %v2109 = vpop.permute.xlu0 %2108
    %2110 = vrot.lane.b32.xlu0 %v2078, 1
    %v2111 = vpop.permute.xlu0 %2110
    %v2112 = vsel %vm111, %v2109, %v2111
    %v2113 = vsel %vm111, %v2107, %v2109
    %v2114 = vsel %vm111, %v2111, %v2107
    %2115 = vrot.lane.b32.xlu0 %v2076, 127
    %v2116 = vpop.permute.xlu0 %2115
    %2117 = vrot.lane.b32.xlu0 %v2077, 127
    %v2118 = vpop.permute.xlu0 %2117
    %2119 = vrot.lane.b32.xlu0 %v2078, 127
    %v2120 = vpop.permute.xlu0 %2119
    %v2121 = vsel %vm121, %v2118, %v2120
    %v2122 = vsel %vm121, %v2116, %v2118
    %v2123 = vsel %vm121, %v2120, %v2116
    %2124 = vrot.lane.b32.xlu0 %v2076, 111
    %v2125 = vpop.permute.xlu0 %2124
    %2126 = vrot.lane.b32.xlu0 %v2077, 111
    %v2127 = vpop.permute.xlu0 %2126
    %2128 = vrot.lane.b32.xlu0 %v2078, 111
    %v2129 = vpop.permute.xlu0 %2128
    %v2130 = vsel %vm131, %v2127, %v2129
    %v2131 = vsel %vm131, %v2125, %v2127
    %v2132 = vsel %vm131, %v2129, %v2125
    %2133 = vrot.lane.b32.xlu0 %v2076, 110
    %v2134 = vpop.permute.xlu0 %2133
    %2135 = vrot.lane.b32.xlu0 %v2077, 110
    %v2136 = vpop.permute.xlu0 %2135
    %2137 = vrot.lane.b32.xlu0 %v2078, 110
    %v2138 = vpop.permute.xlu0 %2137
    %v2139 = vsel %vm141, %v2136, %v2138
    %v2140 = vsel %vm141, %v2134, %v2136
    %v2141 = vsel %vm141, %v2138, %v2134
    %2142 = vrot.lane.b32.xlu0 %v2076, 109
    %v2143 = vpop.permute.xlu0 %2142
    %2144 = vrot.lane.b32.xlu0 %v2077, 109
    %v2145 = vpop.permute.xlu0 %2144
    %2146 = vrot.lane.b32.xlu0 %v2078, 109
    %v2147 = vpop.permute.xlu0 %2146
    %v2148 = vsel %vm151, %v2145, %v2147
    %v2149 = vsel %vm151, %v2143, %v2145
    %v2150 = vsel %vm151, %v2147, %v2143
    %2151 = vmatprep.subr.mxu0 %v2086
    %2152 = vmatpush1.msra.mxu0 %v2087
    %2153 = vmatprep.subr.mxu0 %v2095
    %2154 = vmatpush1.msra.mxu0 %v2096
    %2155 = vmatprep.subr.mxu0 %v2104
    %2156 = vmatpush1.msra.mxu0 %v2105
    %2157 = vmatprep.subr.mxu0 %v2113
    %2158 = vmatpush1.msra.mxu0 %v2114
    %2159 = vmatprep.subr.mxu0 %v2077
    %2160 = vmatpush1.msra.mxu0 %v2076
    %2161 = vmatprep.subr.mxu0 %v2121
    %2162 = vmatpush1.msra.mxu0 %v2122
    %2163 = vmatprep.subr.mxu0 %v2130
    %2164 = vmatpush1.msra.mxu0 %v2131
    %2165 = vmatprep.subr.mxu0 %v2139
    %2166 = vmatpush1.msra.mxu0 %v2140
    %2167 = vmatprep.subr.mxu0 %v2148
    %2168 = vmatpush1.msra.mxu0 %v2149
    %2169 = vmatprep.subr.mxu0 0.0
    %2170 = vmatpush1.msra.mxu0 0.0
    %2171 = vmatprep.subr.mxu0 0.0
    %2172 = vmatpush1.msra.mxu0 0.0
    %2173 = vmatprep.subr.mxu0 0.0
    %2174 = vmatpush1.msra.mxu0 0.0
    %2175 = vmatprep.subr.mxu0 0.0
    %2176 = vmatpush1.msra.mxu0 0.0
    %2177 = vmatprep.subr.mxu0 0.0
    %2178 = vmatpush1.msra.mxu0 0.0
    %2179 = vmatprep.subr.mxu0 0.0
    %2180 = vmatpush1.msra.mxu0 0.0
    %2181 = vmatprep.subr.mxu0 0.0
    %2182 = vmatpush1.msra.mxu0 0.0
    %2183 = vmatprep.subr.mxu0 0.0
    %2184 = vmatpush1.msra.mxu0 0.0
    %2185 = vmatprep.subr.mxu0 0.0
    %2186 = vmatpush1.msra.mxu0 0.0
    %2187 = vmatprep.subr.mxu0 0.0
    %2188 = vmatpush1.msra.mxu0 0.0
    %2189 = vmatprep.subr.mxu0 0.0
    %2190 = vmatpush1.msra.mxu0 0.0
    %2191 = vmatprep.subr.mxu0 0.0
    %2192 = vmatpush1.msra.mxu0 0.0
    %2193 = vmatprep.subr.mxu0 0.0
    %2194 = vmatpush1.msra.mxu0 0.0
    %2195 = vmatprep.subr.mxu0 0.0
    %2196 = vmatpush1.msra.mxu0 0.0
    %2197 = vmatprep.subr.mxu0 0.0
    %2198 = vmatpush1.msra.mxu0 0.0
    %2199 = vmatprep.subr.mxu0 0.0
    %2200 = vmatpush1.msra.mxu0 0.0
    %2201 = vmatprep.subr.mxu0 0.0
    %2202 = vmatpush1.msra.mxu0 0.0
    %2203 = vmatprep.subr.mxu0 0.0
    %2204 = vmatpush1.msra.mxu0 0.0
    %2205 = vmatprep.subr.mxu0 0.0
    %2206 = vmatpush1.msra.mxu0 0.0
    %2207 = vmatprep.subr.mxu0 0.0
    %2208 = vmatpush1.msra.mxu0 0.0
    %2209 = vmatprep.subr.mxu0 0.0
    %2210 = vmatpush1.msra.mxu0 0.0
    %2211 = vmatprep.subr.mxu0 0.0
    %2212 = vmatpush1.msra.mxu0 0.0
    %2213 = vmatprep.subr.mxu0 0.0
    %2214 = vmatpush1.msra.mxu0 0.0
    %2215 = vmatprep.mubr.f32.mxu0 0.0
    %2216 = vmatmul.mubr.f32.gmra.mrb[0].mxu0 %v373
    %v2217 = vpop.f32.mrb[0].mxu0
    %v2218 = vadd.f32 0.0, %v2217
    %v2219 = vpop.f32.mrb[0].mxu0
    %v2220 = vadd.f32 0.0, %v2219
    %2221 = vdwg.mxu0
    %2222 = vmatprep.subr.mxu0 0.0
    %2223 = vmatpush1.msra.mxu0 %v2085
    %2224 = vmatprep.subr.mxu0 0.0
    %2225 = vmatpush1.msra.mxu0 %v2094
    %2226 = vmatprep.subr.mxu0 0.0
    %2227 = vmatpush1.msra.mxu0 %v2103
    %2228 = vmatprep.subr.mxu0 0.0
    %2229 = vmatpush1.msra.mxu0 %v2112
    %2230 = vmatprep.subr.mxu0 0.0
    %2231 = vmatpush1.msra.mxu0 %v2078
    %2232 = vmatprep.subr.mxu0 0.0
    %2233 = vmatpush1.msra.mxu0 %v2123
    %2234 = vmatprep.subr.mxu0 0.0
    %2235 = vmatpush1.msra.mxu0 %v2132
    %2236 = vmatprep.subr.mxu0 0.0
    %2237 = vmatpush1.msra.mxu0 %v2141
    %2238 = vmatprep.subr.mxu0 0.0
    %2239 = vmatpush1.msra.mxu0 %v2150
    %2240 = vmatprep.subr.mxu0 0.0
    %2241 = vmatpush1.msra.mxu0 0.0
    %2242 = vmatprep.subr.mxu0 0.0
    %2243 = vmatpush1.msra.mxu0 0.0
    %2244 = vmatprep.subr.mxu0 0.0
    %2245 = vmatpush1.msra.mxu0 0.0
    %2246 = vmatprep.subr.mxu0 0.0
    %2247 = vmatpush1.msra.mxu0 0.0
    %2248 = vmatprep.subr.mxu0 0.0
    %2249 = vmatpush1.msra.mxu0 0.0
    %2250 = vmatprep.subr.mxu0 0.0
    %2251 = vmatpush1.msra.mxu0 0.0
    %2252 = vmatprep.subr.mxu0 0.0
    %2253 = vmatpush1.msra.mxu0 0.0
    %2254 = vmatprep.subr.mxu0 0.0
    %2255 = vmatpush1.msra.mxu0 0.0
    %2256 = vmatprep.subr.mxu0 0.0
    %2257 = vmatpush1.msra.mxu0 0.0
    %2258 = vmatprep.subr.mxu0 0.0
    %2259 = vmatpush1.msra.mxu0 0.0
    %2260 = vmatprep.subr.mxu0 0.0
    %2261 = vmatpush1.msra.mxu0 0.0
    %2262 = vmatprep.subr.mxu0 0.0
    %2263 = vmatpush1.msra.mxu0 0.0
    %2264 = vmatprep.subr.mxu0 0.0
    %2265 = vmatpush1.msra.mxu0 0.0
    %2266 = vmatprep.subr.mxu0 0.0
    %2267 = vmatpush1.msra.mxu0 0.0
    %2268 = vmatprep.subr.mxu0 0.0
    %2269 = vmatpush1.msra.mxu0 0.0
    %2270 = vmatprep.subr.mxu0 0.0
    %2271 = vmatpush1.msra.mxu0 0.0
    %2272 = vmatprep.subr.mxu0 0.0
    %2273 = vmatpush1.msra.mxu0 0.0
    %2274 = vmatprep.subr.mxu0 0.0
    %2275 = vmatpush1.msra.mxu0 0.0
    %2276 = vmatprep.subr.mxu0 0.0
    %2277 = vmatpush1.msra.mxu0 0.0
    %2278 = vmatprep.subr.mxu0 0.0
    %2279 = vmatpush1.msra.mxu0 0.0
    %2280 = vmatprep.subr.mxu0 0.0
    %2281 = vmatpush1.msra.mxu0 0.0
    %2282 = vmatprep.subr.mxu0 0.0
    %2283 = vmatpush1.msra.mxu0 0.0
    %2284 = vmatprep.subr.mxu0 0.0
    %2285 = vmatpush1.msra.mxu0 0.0
    %2286 = vmatprep.mubr.f32.mxu0 0.0
    %2287 = vmatmul.mubr.f32.gmra.mrb[0].mxu0 %v373
    %v2288 = vpop.f32.mrb[0].mxu0
    %v2289 = vadd.f32 0.0, %v2288
    %v2290 = vpop.f32.mrb[0].mxu0
    %2291 = vdwg.mxu0
    %v2292 = vadd.f32 %v226, %v2218
    %v2293 = vadd.f32 %v228, %v2220
    %v2294 = vadd.f32 %v297, %v2289
    %v2295 = vtanh.pop %v2292
    %v2296 = vtanh.pop %v2293
    %v2297 = vtanh.pop %v2294
    %v2298 = vmul.f32 %v67, %v2295
    %v2299 = vmul.f32 %v68, %v2296
    %v2300 = vmul.f32 %v69, %v2297
    %2301 = vrot.lane.b32.xlu0 %v2298, 19
    %v2302 = vpop.permute.xlu0 %2301
    %2303 = vrot.lane.b32.xlu0 %v2299, 19
    %v2304 = vpop.permute.xlu0 %2303
    %2305 = vrot.lane.b32.xlu0 %v2300, 19
    %v2306 = vpop.permute.xlu0 %2305
    %v2307 = vsel %vm81, %v2304, %v2306
    %v2308 = vsel %vm81, %v2302, %v2304
    %v2309 = vsel %vm81, %v2306, %v2302
    %2310 = vrot.lane.b32.xlu0 %v2298, 18
    %v2311 = vpop.permute.xlu0 %2310
    %2312 = vrot.lane.b32.xlu0 %v2299, 18
    %v2313 = vpop.permute.xlu0 %2312
    %2314 = vrot.lane.b32.xlu0 %v2300, 18
    %v2315 = vpop.permute.xlu0 %2314
    %v2316 = vsel %vm91, %v2313, %v2315
    %v2317 = vsel %vm91, %v2311, %v2313
    %v2318 = vsel %vm91, %v2315, %v2311
    %2319 = vrot.lane.b32.xlu0 %v2298, 17
    %v2320 = vpop.permute.xlu0 %2319
    %2321 = vrot.lane.b32.xlu0 %v2299, 17
    %v2322 = vpop.permute.xlu0 %2321
    %2323 = vrot.lane.b32.xlu0 %v2300, 17
    %v2324 = vpop.permute.xlu0 %2323
    %v2325 = vsel %vm101, %v2322, %v2324
    %v2326 = vsel %vm101, %v2320, %v2322
    %v2327 = vsel %vm101, %v2324, %v2320
    %2328 = vrot.lane.b32.xlu0 %v2298, 1
    %v2329 = vpop.permute.xlu0 %2328
    %2330 = vrot.lane.b32.xlu0 %v2299, 1
    %v2331 = vpop.permute.xlu0 %2330
    %2332 = vrot.lane.b32.xlu0 %v2300, 1
    %v2333 = vpop.permute.xlu0 %2332
    %v2334 = vsel %vm111, %v2331, %v2333
    %v2335 = vsel %vm111, %v2329, %v2331
    %v2336 = vsel %vm111, %v2333, %v2329
    %2337 = vrot.lane.b32.xlu0 %v2298, 127
    %v2338 = vpop.permute.xlu0 %2337
    %2339 = vrot.lane.b32.xlu0 %v2299, 127
    %v2340 = vpop.permute.xlu0 %2339
    %2341 = vrot.lane.b32.xlu0 %v2300, 127
    %v2342 = vpop.permute.xlu0 %2341
    %v2343 = vsel %vm121, %v2340, %v2342
    %v2344 = vsel %vm121, %v2338, %v2340
    %v2345 = vsel %vm121, %v2342, %v2338
    %2346 = vrot.lane.b32.xlu0 %v2298, 111
    %v2347 = vpop.permute.xlu0 %2346
    %2348 = vrot.lane.b32.xlu0 %v2299, 111
    %v2349 = vpop.permute.xlu0 %2348
    %2350 = vrot.lane.b32.xlu0 %v2300, 111
    %v2351 = vpop.permute.xlu0 %2350
    %v2352 = vsel %vm131, %v2349, %v2351
    %v2353 = vsel %vm131, %v2347, %v2349
    %v2354 = vsel %vm131, %v2351, %v2347
    %2355 = vrot.lane.b32.xlu0 %v2298, 110
    %v2356 = vpop.permute.xlu0 %2355
    %2357 = vrot.lane.b32.xlu0 %v2299, 110
    %v2358 = vpop.permute.xlu0 %2357
    %2359 = vrot.lane.b32.xlu0 %v2300, 110
    %v2360 = vpop.permute.xlu0 %2359
    %v2361 = vsel %vm141, %v2358, %v2360
    %v2362 = vsel %vm141, %v2356, %v2358
    %v2363 = vsel %vm141, %v2360, %v2356
    %2364 = vrot.lane.b32.xlu0 %v2298, 109
    %v2365 = vpop.permute.xlu0 %2364
    %2366 = vrot.lane.b32.xlu0 %v2299, 109
    %v2367 = vpop.permute.xlu0 %2366
    %2368 = vrot.lane.b32.xlu0 %v2300, 109
    %v2369 = vpop.permute.xlu0 %2368
    %v2370 = vsel %vm151, %v2367, %v2369
    %v2371 = vsel %vm151, %v2365, %v2367
    %v2372 = vsel %vm151, %v2369, %v2365
    %2373 = vmatprep.subr.mxu0 %v2308
    %2374 = vmatpush1.msra.mxu0 %v2309
    %2375 = vmatprep.subr.mxu0 %v2317
    %2376 = vmatpush1.msra.mxu0 %v2318
    %2377 = vmatprep.subr.mxu0 %v2326
    %2378 = vmatpush1.msra.mxu0 %v2327
    %2379 = vmatprep.subr.mxu0 %v2335
    %2380 = vmatpush1.msra.mxu0 %v2336
    %2381 = vmatprep.subr.mxu0 %v2299
    %2382 = vmatpush1.msra.mxu0 %v2298
    %2383 = vmatprep.subr.mxu0 %v2343
    %2384 = vmatpush1.msra.mxu0 %v2344
    %2385 = vmatprep.subr.mxu0 %v2352
    %2386 = vmatpush1.msra.mxu0 %v2353
    %2387 = vmatprep.subr.mxu0 %v2361
    %2388 = vmatpush1.msra.mxu0 %v2362
    %2389 = vmatprep.subr.mxu0 %v2370
    %2390 = vmatpush1.msra.mxu0 %v2371
    %2391 = vmatprep.subr.mxu0 0.0
    %2392 = vmatpush1.msra.mxu0 0.0
    %2393 = vmatprep.subr.mxu0 0.0
    %2394 = vmatpush1.msra.mxu0 0.0
    %2395 = vmatprep.subr.mxu0 0.0
    %2396 = vmatpush1.msra.mxu0 0.0
    %2397 = vmatprep.subr.mxu0 0.0
    %2398 = vmatpush1.msra.mxu0 0.0
    %2399 = vmatprep.subr.mxu0 0.0
    %2400 = vmatpush1.msra.mxu0 0.0
    %2401 = vmatprep.subr.mxu0 0.0
    %2402 = vmatpush1.msra.mxu0 0.0
    %2403 = vmatprep.subr.mxu0 0.0
    %2404 = vmatpush1.msra.mxu0 0.0
    %2405 = vmatprep.subr.mxu0 0.0
    %2406 = vmatpush1.msra.mxu0 0.0
    %2407 = vmatprep.subr.mxu0 0.0
    %2408 = vmatpush1.msra.mxu0 0.0
    %2409 = vmatprep.subr.mxu0 0.0
    %2410 = vmatpush1.msra.mxu0 0.0
    %2411 = vmatprep.subr.mxu0 0.0
    %2412 = vmatpush1.msra.mxu0 0.0
    %2413 = vmatprep.subr.mxu0 0.0
    %2414 = vmatpush1.msra.mxu0 0.0
    %2415 = vmatprep.subr.mxu0 0.0
    %2416 = vmatpush1.msra.mxu0 0.0
    %2417 = vmatprep.subr.mxu0 0.0
    %2418 = vmatpush1.msra.mxu0 0.0
    %2419 = vmatprep.subr.mxu0 0.0
    %2420 = vmatpush1.msra.mxu0 0.0
    %2421 = vmatprep.subr.mxu0 0.0
    %2422 = vmatpush1.msra.mxu0 0.0
    %2423 = vmatprep.subr.mxu0 0.0
    %2424 = vmatpush1.msra.mxu0 0.0
    %2425 = vmatprep.subr.mxu0 0.0
    %2426 = vmatpush1.msra.mxu0 0.0
    %2427 = vmatprep.subr.mxu0 0.0
    %2428 = vmatpush1.msra.mxu0 0.0
    %2429 = vmatprep.subr.mxu0 0.0
    %2430 = vmatpush1.msra.mxu0 0.0
    %2431 = vmatprep.subr.mxu0 0.0
    %2432 = vmatpush1.msra.mxu0 0.0
    %2433 = vmatprep.subr.mxu0 0.0
    %2434 = vmatpush1.msra.mxu0 0.0
    %2435 = vmatprep.subr.mxu0 0.0
    %2436 = vmatpush1.msra.mxu0 0.0
    %2437 = vmatprep.mubr.f32.mxu0 0.0
    %2438 = vmatmul.mubr.f32.gmra.mrb[0].mxu0 %v373
    %v2439 = vpop.f32.mrb[0].mxu0
    %v2440 = vadd.f32 0.0, %v2439
    %v2441 = vpop.f32.mrb[0].mxu0
    %v2442 = vadd.f32 0.0, %v2441
    %2443 = vdwg.mxu0
    %2444 = vmatprep.subr.mxu0 0.0
    %2445 = vmatpush1.msra.mxu0 %v2307
    %2446 = vmatprep.subr.mxu0 0.0
    %2447 = vmatpush1.msra.mxu0 %v2316
    %2448 = vmatprep.subr.mxu0 0.0
    %2449 = vmatpush1.msra.mxu0 %v2325
    %2450 = vmatprep.subr.mxu0 0.0
    %2451 = vmatpush1.msra.mxu0 %v2334
    %2452 = vmatprep.subr.mxu0 0.0
    %2453 = vmatpush1.msra.mxu0 %v2300
    %2454 = vmatprep.subr.mxu0 0.0
    %2455 = vmatpush1.msra.mxu0 %v2345
    %2456 = vmatprep.subr.mxu0 0.0
    %2457 = vmatpush1.msra.mxu0 %v2354
    %2458 = vmatprep.subr.mxu0 0.0
    %2459 = vmatpush1.msra.mxu0 %v2363
    %2460 = vmatprep.subr.mxu0 0.0
    %2461 = vmatpush1.msra.mxu0 %v2372
    %2462 = vmatprep.subr.mxu0 0.0
    %2463 = vmatpush1.msra.mxu0 0.0
    %2464 = vmatprep.subr.mxu0 0.0
    %2465 = vmatpush1.msra.mxu0 0.0
    %2466 = vmatprep.subr.mxu0 0.0
    %2467 = vmatpush1.msra.mxu0 0.0
    %2468 = vmatprep.subr.mxu0 0.0
    %2469 = vmatpush1.msra.mxu0 0.0
    %2470 = vmatprep.subr.mxu0 0.0
    %2471 = vmatpush1.msra.mxu0 0.0
    %2472 = vmatprep.subr.mxu0 0.0
    %2473 = vmatpush1.msra.mxu0 0.0
    %2474 = vmatprep.subr.mxu0 0.0
    %2475 = vmatpush1.msra.mxu0 0.0
    %2476 = vmatprep.subr.mxu0 0.0
    %2477 = vmatpush1.msra.mxu0 0.0
    %2478 = vmatprep.subr.mxu0 0.0
    %2479 = vmatpush1.msra.mxu0 0.0
    %2480 = vmatprep.subr.mxu0 0.0
    %2481 = vmatpush1.msra.mxu0 0.0
    %2482 = vmatprep.subr.mxu0 0.0
    %2483 = vmatpush1.msra.mxu0 0.0
    %2484 = vmatprep.subr.mxu0 0.0
    %2485 = vmatpush1.msra.mxu0 0.0
    %2486 = vmatprep.subr.mxu0 0.0
    %2487 = vmatpush1.msra.mxu0 0.0
    %2488 = vmatprep.subr.mxu0 0.0
    %2489 = vmatpush1.msra.mxu0 0.0
    %2490 = vmatprep.subr.mxu0 0.0
    %2491 = vmatpush1.msra.mxu0 0.0
    %2492 = vmatprep.subr.mxu0 0.0
    %2493 = vmatpush1.msra.mxu0 0.0
    %2494 = vmatprep.subr.mxu0 0.0
    %2495 = vmatpush1.msra.mxu0 0.0
    %2496 = vmatprep.subr.mxu0 0.0
    %2497 = vmatpush1.msra.mxu0 0.0
    %2498 = vmatprep.subr.mxu0 0.0
    %2499 = vmatpush1.msra.mxu0 0.0
    %2500 = vmatprep.subr.mxu0 0.0
    %2501 = vmatpush1.msra.mxu0 0.0
    %2502 = vmatprep.subr.mxu0 0.0
    %2503 = vmatpush1.msra.mxu0 0.0
    %2504 = vmatprep.subr.mxu0 0.0
    %2505 = vmatpush1.msra.mxu0 0.0
    %2506 = vmatprep.subr.mxu0 0.0
    %2507 = vmatpush1.msra.mxu0 0.0
    %2508 = vmatprep.mubr.f32.mxu0 0.0
    %2509 = vmatmul.mubr.f32.gmra.mrb[0].mxu0 %v373
    %v2510 = vpop.f32.mrb[0].mxu0
    %v2511 = vadd.f32 0.0, %v2510
    %v2512 = vpop.f32.mrb[0].mxu0
    %2513 = vdwg.mxu0
    %v2514 = vadd.f32 %v226, %v2440
    %v2515 = vadd.f32 %v228, %v2442
    %v2516 = vadd.f32 %v297, %v2511
    %v2517 = vtanh.pop %v2514
    %v2518 = vtanh.pop %v2515
    %v2519 = vtanh.pop %v2516
    %v2520 = vmul.f32 %v67, %v2517
    %v2521 = vmul.f32 %v68, %v2518
    %v2522 = vmul.f32 %v69, %v2519
    %2523 = vrot.lane.b32.xlu0 %v2520, 19
    %v2524 = vpop.permute.xlu0 %2523
    %2525 = vrot.lane.b32.xlu0 %v2521, 19
    %v2526 = vpop.permute.xlu0 %2525
    %2527 = vrot.lane.b32.xlu0 %v2522, 19
    %v2528 = vpop.permute.xlu0 %2527
    %v2529 = vsel %vm81, %v2526, %v2528
    %v2530 = vsel %vm81, %v2524, %v2526
    %v2531 = vsel %vm81, %v2528, %v2524
    %2532 = vrot.lane.b32.xlu0 %v2520, 18
    %v2533 = vpop.permute.xlu0 %2532
    %2534 = vrot.lane.b32.xlu0 %v2521, 18
    %v2535 = vpop.permute.xlu0 %2534
    %2536 = vrot.lane.b32.xlu0 %v2522, 18
    %v2537 = vpop.permute.xlu0 %2536
    %v2538 = vsel %vm91, %v2535, %v2537
    %v2539 = vsel %vm91, %v2533, %v2535
    %v2540 = vsel %vm91, %v2537, %v2533
    %2541 = vrot.lane.b32.xlu0 %v2520, 17
    %v2542 = vpop.permute.xlu0 %2541
    %2543 = vrot.lane.b32.xlu0 %v2521, 17
    %v2544 = vpop.permute.xlu0 %2543
    %2545 = vrot.lane.b32.xlu0 %v2522, 17
    %v2546 = vpop.permute.xlu0 %2545
    %v2547 = vsel %vm101, %v2544, %v2546
    %v2548 = vsel %vm101, %v2542, %v2544
    %v2549 = vsel %vm101, %v2546, %v2542
    %2550 = vrot.lane.b32.xlu0 %v2520, 1
    %v2551 = vpop.permute.xlu0 %2550
    %2552 = vrot.lane.b32.xlu0 %v2521, 1
    %v2553 = vpop.permute.xlu0 %2552
    %2554 = vrot.lane.b32.xlu0 %v2522, 1
    %v2555 = vpop.permute.xlu0 %2554
    %v2556 = vsel %vm111, %v2553, %v2555
    %v2557 = vsel %vm111, %v2551, %v2553
    %v2558 = vsel %vm111, %v2555, %v2551
    %2559 = vrot.lane.b32.xlu0 %v2520, 127
    %v2560 = vpop.permute.xlu0 %2559
    %2561 = vrot.lane.b32.xlu0 %v2521, 127
    %v2562 = vpop.permute.xlu0 %2561
    %2563 = vrot.lane.b32.xlu0 %v2522, 127
    %v2564 = vpop.permute.xlu0 %2563
    %v2565 = vsel %vm121, %v2562, %v2564
    %v2566 = vsel %vm121, %v2560, %v2562
    %v2567 = vsel %vm121, %v2564, %v2560
    %2568 = vrot.lane.b32.xlu0 %v2520, 111
    %v2569 = vpop.permute.xlu0 %2568
    %2570 = vrot.lane.b32.xlu0 %v2521, 111
    %v2571 = vpop.permute.xlu0 %2570
    %2572 = vrot.lane.b32.xlu0 %v2522, 111
    %v2573 = vpop.permute.xlu0 %2572
    %v2574 = vsel %vm131, %v2571, %v2573
    %v2575 = vsel %vm131, %v2569, %v2571
    %v2576 = vsel %vm131, %v2573, %v2569
    %2577 = vrot.lane.b32.xlu0 %v2520, 110
    %v2578 = vpop.permute.xlu0 %2577
    %2579 = vrot.lane.b32.xlu0 %v2521, 110
    %v2580 = vpop.permute.xlu0 %2579
    %2581 = vrot.lane.b32.xlu0 %v2522, 110
    %v2582 = vpop.permute.xlu0 %2581
    %v2583 = vsel %vm141, %v2580, %v2582
    %v2584 = vsel %vm141, %v2578, %v2580
    %v2585 = vsel %vm141, %v2582, %v2578
    %2586 = vrot.lane.b32.xlu0 %v2520, 109
    %v2587 = vpop.permute.xlu0 %2586
    %2588 = vrot.lane.b32.xlu0 %v2521, 109
    %v2589 = vpop.permute.xlu0 %2588
    %2590 = vrot.lane.b32.xlu0 %v2522, 109
    %v2591 = vpop.permute.xlu0 %2590
    %v2592 = vsel %vm151, %v2589, %v2591
    %v2593 = vsel %vm151, %v2587, %v2589
    %v2594 = vsel %vm151, %v2591, %v2587
    %2595 = vmatprep.subr.mxu0 %v2530
    %2596 = vmatpush1.msra.mxu0 %v2531
    %2597 = vmatprep.subr.mxu0 %v2539
    %2598 = vmatpush1.msra.mxu0 %v2540
    %2599 = vmatprep.subr.mxu0 %v2548
    %2600 = vmatpush1.msra.mxu0 %v2549
    %2601 = vmatprep.subr.mxu0 %v2557
    %2602 = vmatpush1.msra.mxu0 %v2558
    %2603 = vmatprep.subr.mxu0 %v2521
    %2604 = vmatpush1.msra.mxu0 %v2520
    %2605 = vmatprep.subr.mxu0 %v2565
    %2606 = vmatpush1.msra.mxu0 %v2566
    %2607 = vmatprep.subr.mxu0 %v2574
    %2608 = vmatpush1.msra.mxu0 %v2575
    %2609 = vmatprep.subr.mxu0 %v2583
    %2610 = vmatpush1.msra.mxu0 %v2584
    %2611 = vmatprep.subr.mxu0 %v2592
    %2612 = vmatpush1.msra.mxu0 %v2593
    %2613 = vmatprep.subr.mxu0 0.0
    %2614 = vmatpush1.msra.mxu0 0.0
    %2615 = vmatprep.subr.mxu0 0.0
    %2616 = vmatpush1.msra.mxu0 0.0
    %2617 = vmatprep.subr.mxu0 0.0
    %2618 = vmatpush1.msra.mxu0 0.0
    %2619 = vmatprep.subr.mxu0 0.0
    %2620 = vmatpush1.msra.mxu0 0.0
    %2621 = vmatprep.subr.mxu0 0.0
    %2622 = vmatpush1.msra.mxu0 0.0
    %2623 = vmatprep.subr.mxu0 0.0
    %2624 = vmatpush1.msra.mxu0 0.0
    %2625 = vmatprep.subr.mxu0 0.0
    %2626 = vmatpush1.msra.mxu0 0.0
    %2627 = vmatprep.subr.mxu0 0.0
    %2628 = vmatpush1.msra.mxu0 0.0
    %2629 = vmatprep.subr.mxu0 0.0
    %2630 = vmatpush1.msra.mxu0 0.0
    %2631 = vmatprep.subr.mxu0 0.0
    %2632 = vmatpush1.msra.mxu0 0.0
    %2633 = vmatprep.subr.mxu0 0.0
    %2634 = vmatpush1.msra.mxu0 0.0
    %2635 = vmatprep.subr.mxu0 0.0
    %2636 = vmatpush1.msra.mxu0 0.0
    %2637 = vmatprep.subr.mxu0 0.0
    %2638 = vmatpush1.msra.mxu0 0.0
    %2639 = vmatprep.subr.mxu0 0.0
    %2640 = vmatpush1.msra.mxu0 0.0
    %2641 = vmatprep.subr.mxu0 0.0
    %2642 = vmatpush1.msra.mxu0 0.0
    %2643 = vmatprep.subr.mxu0 0.0
    %2644 = vmatpush1.msra.mxu0 0.0
    %2645 = vmatprep.subr.mxu0 0.0
    %2646 = vmatpush1.msra.mxu0 0.0
    %2647 = vmatprep.subr.mxu0 0.0
    %2648 = vmatpush1.msra.mxu0 0.0
    %2649 = vmatprep.subr.mxu0 0.0
    %2650 = vmatpush1.msra.mxu0 0.0
    %2651 = vmatprep.subr.mxu0 0.0
    %2652 = vmatpush1.msra.mxu0 0.0
    %2653 = vmatprep.subr.mxu0 0.0
    %2654 = vmatpush1.msra.mxu0 0.0
    %2655 = vmatprep.subr.mxu0 0.0
    %2656 = vmatpush1.msra.mxu0 0.0
    %2657 = vmatprep.subr.mxu0 0.0
    %2658 = vmatpush1.msra.mxu0 0.0
    %2659 = vmatprep.mubr.f32.mxu0 0.0
    %2660 = vmatmul.mubr.f32.gmra.mrb[0].mxu0 %v373
    %v2661 = vpop.f32.mrb[0].mxu0
    %v2662 = vadd.f32 0.0, %v2661
    %v2663 = vpop.f32.mrb[0].mxu0
    %v2664 = vadd.f32 0.0, %v2663
    %2665 = vdwg.mxu0
    %2666 = vmatprep.subr.mxu0 0.0
    %2667 = vmatpush1.msra.mxu0 %v2529
    %2668 = vmatprep.subr.mxu0 0.0
    %2669 = vmatpush1.msra.mxu0 %v2538
    %2670 = vmatprep.subr.mxu0 0.0
    %2671 = vmatpush1.msra.mxu0 %v2547
    %2672 = vmatprep.subr.mxu0 0.0
    %2673 = vmatpush1.msra.mxu0 %v2556
    %2674 = vmatprep.subr.mxu0 0.0
    %2675 = vmatpush1.msra.mxu0 %v2522
    %2676 = vmatprep.subr.mxu0 0.0
    %2677 = vmatpush1.msra.mxu0 %v2567
    %2678 = vmatprep.subr.mxu0 0.0
    %2679 = vmatpush1.msra.mxu0 %v2576
    %2680 = vmatprep.subr.mxu0 0.0
    %2681 = vmatpush1.msra.mxu0 %v2585
    %2682 = vmatprep.subr.mxu0 0.0
    %2683 = vmatpush1.msra.mxu0 %v2594
    %2684 = vmatprep.subr.mxu0 0.0
    %2685 = vmatpush1.msra.mxu0 0.0
    %2686 = vmatprep.subr.mxu0 0.0
    %2687 = vmatpush1.msra.mxu0 0.0
    %2688 = vmatprep.subr.mxu0 0.0
    %2689 = vmatpush1.msra.mxu0 0.0
    %2690 = vmatprep.subr.mxu0 0.0
    %2691 = vmatpush1.msra.mxu0 0.0
    %2692 = vmatprep.subr.mxu0 0.0
    %2693 = vmatpush1.msra.mxu0 0.0
    %2694 = vmatprep.subr.mxu0 0.0
    %2695 = vmatpush1.msra.mxu0 0.0
    %2696 = vmatprep.subr.mxu0 0.0
    %2697 = vmatpush1.msra.mxu0 0.0
    %2698 = vmatprep.subr.mxu0 0.0
    %2699 = vmatpush1.msra.mxu0 0.0
    %2700 = vmatprep.subr.mxu0 0.0
    %2701 = vmatpush1.msra.mxu0 0.0
    %2702 = vmatprep.subr.mxu0 0.0
    %2703 = vmatpush1.msra.mxu0 0.0
    %2704 = vmatprep.subr.mxu0 0.0
    %2705 = vmatpush1.msra.mxu0 0.0
    %2706 = vmatprep.subr.mxu0 0.0
    %2707 = vmatpush1.msra.mxu0 0.0
    %2708 = vmatprep.subr.mxu0 0.0
    %2709 = vmatpush1.msra.mxu0 0.0
    %2710 = vmatprep.subr.mxu0 0.0
    %2711 = vmatpush1.msra.mxu0 0.0
    %2712 = vmatprep.subr.mxu0 0.0
    %2713 = vmatpush1.msra.mxu0 0.0
    %2714 = vmatprep.subr.mxu0 0.0
    %2715 = vmatpush1.msra.mxu0 0.0
    %2716 = vmatprep.subr.mxu0 0.0
    %2717 = vmatpush1.msra.mxu0 0.0
    %2718 = vmatprep.subr.mxu0 0.0
    %2719 = vmatpush1.msra.mxu0 0.0
    %2720 = vmatprep.subr.mxu0 0.0
    %2721 = vmatpush1.msra.mxu0 0.0
    %2722 = vmatprep.subr.mxu0 0.0
    %2723 = vmatpush1.msra.mxu0 0.0
    %2724 = vmatprep.subr.mxu0 0.0
    %2725 = vmatpush1.msra.mxu0 0.0
    %2726 = vmatprep.subr.mxu0 0.0
    %2727 = vmatpush1.msra.mxu0 0.0
    %2728 = vmatprep.subr.mxu0 0.0
    %2729 = vmatpush1.msra.mxu0 0.0
    %2730 = vmatprep.mubr.f32.mxu0 0.0
    %2731 = vmatmul.mubr.f32.gmra.mrb[0].mxu0 %v373
    %v2732 = vpop.f32.mrb[0].mxu0
    %v2733 = vadd.f32 0.0, %v2732
    %v2734 = vpop.f32.mrb[0].mxu0
    %2735 = vdwg.mxu0
    %v2736 = vadd.f32 %v226, %v2662
    %v2737 = vadd.f32 %v228, %v2664
    %v2738 = vadd.f32 %v297, %v2733
    %v2739 = vtanh.pop %v2736
    %v2740 = vtanh.pop %v2737
    %v2741 = vtanh.pop %v2738
    %v2742 = vmul.f32 %v67, %v2739
    %v2743 = vmul.f32 %v68, %v2740
    %v2744 = vmul.f32 %v69, %v2741
    %2745 = vrot.lane.b32.xlu0 %v2742, 19
    %v2746 = vpop.permute.xlu0 %2745
    %2747 = vrot.lane.b32.xlu0 %v2743, 19
    %v2748 = vpop.permute.xlu0 %2747
    %2749 = vrot.lane.b32.xlu0 %v2744, 19
    %v2750 = vpop.permute.xlu0 %2749
    %v2751 = vsel %vm81, %v2748, %v2750
    %v2752 = vsel %vm81, %v2746, %v2748
    %v2753 = vsel %vm81, %v2750, %v2746
    %2754 = vrot.lane.b32.xlu0 %v2742, 18
    %v2755 = vpop.permute.xlu0 %2754
    %2756 = vrot.lane.b32.xlu0 %v2743, 18
    %v2757 = vpop.permute.xlu0 %2756
    %2758 = vrot.lane.b32.xlu0 %v2744, 18
    %v2759 = vpop.permute.xlu0 %2758
    %v2760 = vsel %vm91, %v2757, %v2759
    %v2761 = vsel %vm91, %v2755, %v2757
    %v2762 = vsel %vm91, %v2759, %v2755
    %2763 = vrot.lane.b32.xlu0 %v2742, 17
    %v2764 = vpop.permute.xlu0 %2763
    %2765 = vrot.lane.b32.xlu0 %v2743, 17
    %v2766 = vpop.permute.xlu0 %2765
    %2767 = vrot.lane.b32.xlu0 %v2744, 17
    %v2768 = vpop.permute.xlu0 %2767
    %v2769 = vsel %vm101, %v2766, %v2768
    %v2770 = vsel %vm101, %v2764, %v2766
    %v2771 = vsel %vm101, %v2768, %v2764
    %2772 = vrot.lane.b32.xlu0 %v2742, 1
    %v2773 = vpop.permute.xlu0 %2772
    %2774 = vrot.lane.b32.xlu0 %v2743, 1
    %v2775 = vpop.permute.xlu0 %2774
    %2776 = vrot.lane.b32.xlu0 %v2744, 1
    %v2777 = vpop.permute.xlu0 %2776
    %v2778 = vsel %vm111, %v2775, %v2777
    %v2779 = vsel %vm111, %v2773, %v2775
    %v2780 = vsel %vm111, %v2777, %v2773
    %2781 = vrot.lane.b32.xlu0 %v2742, 127
    %v2782 = vpop.permute.xlu0 %2781
    %2783 = vrot.lane.b32.xlu0 %v2743, 127
    %v2784 = vpop.permute.xlu0 %2783
    %2785 = vrot.lane.b32.xlu0 %v2744, 127
    %v2786 = vpop.permute.xlu0 %2785
    %v2787 = vsel %vm121, %v2784, %v2786
    %v2788 = vsel %vm121, %v2782, %v2784
    %v2789 = vsel %vm121, %v2786, %v2782
    %2790 = vrot.lane.b32.xlu0 %v2742, 111
    %v2791 = vpop.permute.xlu0 %2790
    %2792 = vrot.lane.b32.xlu0 %v2743, 111
    %v2793 = vpop.permute.xlu0 %2792
    %2794 = vrot.lane.b32.xlu0 %v2744, 111
    %v2795 = vpop.permute.xlu0 %2794
    %v2796 = vsel %vm131, %v2793, %v2795
    %v2797 = vsel %vm131, %v2791, %v2793
    %v2798 = vsel %vm131, %v2795, %v2791
    %2799 = vrot.lane.b32.xlu0 %v2742, 110
    %v2800 = vpop.permute.xlu0 %2799
    %2801 = vrot.lane.b32.xlu0 %v2743, 110
    %v2802 = vpop.permute.xlu0 %2801
    %2803 = vrot.lane.b32.xlu0 %v2744, 110
    %v2804 = vpop.permute.xlu0 %2803
    %v2805 = vsel %vm141, %v2802, %v2804
    %v2806 = vsel %vm141, %v2800, %v2802
    %v2807 = vsel %vm141, %v2804, %v2800
    %2808 = vrot.lane.b32.xlu0 %v2742, 109
    %v2809 = vpop.permute.xlu0 %2808
    %2810 = vrot.lane.b32.xlu0 %v2743, 109
    %v2811 = vpop.permute.xlu0 %2810
    %2812 = vrot.lane.b32.xlu0 %v2744, 109
    %v2813 = vpop.permute.xlu0 %2812
    %v2814 = vsel %vm151, %v2811, %v2813
    %v2815 = vsel %vm151, %v2809, %v2811
    %v2816 = vsel %vm151, %v2813, %v2809
    %2817 = vmatprep.subr.mxu0 %v2752
    %2818 = vmatpush1.msra.mxu0 %v2753
    %2819 = vmatprep.subr.mxu0 %v2761
    %2820 = vmatpush1.msra.mxu0 %v2762
    %2821 = vmatprep.subr.mxu0 %v2770
    %2822 = vmatpush1.msra.mxu0 %v2771
    %2823 = vmatprep.subr.mxu0 %v2779
    %2824 = vmatpush1.msra.mxu0 %v2780
    %2825 = vmatprep.subr.mxu0 %v2743
    %2826 = vmatpush1.msra.mxu0 %v2742
    %2827 = vmatprep.subr.mxu0 %v2787
    %2828 = vmatpush1.msra.mxu0 %v2788
    %2829 = vmatprep.subr.mxu0 %v2796
    %2830 = vmatpush1.msra.mxu0 %v2797
    %2831 = vmatprep.subr.mxu0 %v2805
    %2832 = vmatpush1.msra.mxu0 %v2806
    %2833 = vmatprep.subr.mxu0 %v2814
    %2834 = vmatpush1.msra.mxu0 %v2815
    %2835 = vmatprep.subr.mxu0 0.0
    %2836 = vmatpush1.msra.mxu0 0.0
    %2837 = vmatprep.subr.mxu0 0.0
    %2838 = vmatpush1.msra.mxu0 0.0
    %2839 = vmatprep.subr.mxu0 0.0
    %2840 = vmatpush1.msra.mxu0 0.0
    %2841 = vmatprep.subr.mxu0 0.0
    %2842 = vmatpush1.msra.mxu0 0.0
    %2843 = vmatprep.subr.mxu0 0.0
    %2844 = vmatpush1.msra.mxu0 0.0
    %2845 = vmatprep.subr.mxu0 0.0
    %2846 = vmatpush1.msra.mxu0 0.0
    %2847 = vmatprep.subr.mxu0 0.0
    %2848 = vmatpush1.msra.mxu0 0.0
    %2849 = vmatprep.subr.mxu0 0.0
    %2850 = vmatpush1.msra.mxu0 0.0
    %2851 = vmatprep.subr.mxu0 0.0
    %2852 = vmatpush1.msra.mxu0 0.0
    %2853 = vmatprep.subr.mxu0 0.0
    %2854 = vmatpush1.msra.mxu0 0.0
    %2855 = vmatprep.subr.mxu0 0.0
    %2856 = vmatpush1.msra.mxu0 0.0
    %2857 = vmatprep.subr.mxu0 0.0
    %2858 = vmatpush1.msra.mxu0 0.0
    %2859 = vmatprep.subr.mxu0 0.0
    %2860 = vmatpush1.msra.mxu0 0.0
    %2861 = vmatprep.subr.mxu0 0.0
    %2862 = vmatpush1.msra.mxu0 0.0
    %2863 = vmatprep.subr.mxu0 0.0
    %2864 = vmatpush1.msra.mxu0 0.0
    %2865 = vmatprep.subr.mxu0 0.0
    %2866 = vmatpush1.msra.mxu0 0.0
    %2867 = vmatprep.subr.mxu0 0.0
    %2868 = vmatpush1.msra.mxu0 0.0
    %2869 = vmatprep.subr.mxu0 0.0
    %2870 = vmatpush1.msra.mxu0 0.0
    %2871 = vmatprep.subr.mxu0 0.0
    %2872 = vmatpush1.msra.mxu0 0.0
    %2873 = vmatprep.subr.mxu0 0.0
    %2874 = vmatpush1.msra.mxu0 0.0
    %2875 = vmatprep.subr.mxu0 0.0
    %2876 = vmatpush1.msra.mxu0 0.0
    %2877 = vmatprep.subr.mxu0 0.0
    %2878 = vmatpush1.msra.mxu0 0.0
    %2879 = vmatprep.subr.mxu0 0.0
    %2880 = vmatpush1.msra.mxu0 0.0
    %2881 = vmatprep.mubr.f32.mxu0 0.0
    %2882 = vmatmul.mubr.f32.gmra.mrb[0].mxu0 %v373
    %v2883 = vpop.f32.mrb[0].mxu0
    %v2884 = vadd.f32 0.0, %v2883
    %v2885 = vpop.f32.mrb[0].mxu0
    %v2886 = vadd.f32 0.0, %v2885
    %2887 = vdwg.mxu0
    %2888 = vmatprep.subr.mxu0 0.0
    %2889 = vmatpush1.msra.mxu0 %v2751
    %2890 = vmatprep.subr.mxu0 0.0
    %2891 = vmatpush1.msra.mxu0 %v2760
    %2892 = vmatprep.subr.mxu0 0.0
    %2893 = vmatpush1.msra.mxu0 %v2769
    %2894 = vmatprep.subr.mxu0 0.0
    %2895 = vmatpush1.msra.mxu0 %v2778
    %2896 = vmatprep.subr.mxu0 0.0
    %2897 = vmatpush1.msra.mxu0 %v2744
    %2898 = vmatprep.subr.mxu0 0.0
    %2899 = vmatpush1.msra.mxu0 %v2789
    %2900 = vmatprep.subr.mxu0 0.0
    %2901 = vmatpush1.msra.mxu0 %v2798
    %2902 = vmatprep.subr.mxu0 0.0
    %2903 = vmatpush1.msra.mxu0 %v2807
    %2904 = vmatprep.subr.mxu0 0.0
    %2905 = vmatpush1.msra.mxu0 %v2816
    %2906 = vmatprep.subr.mxu0 0.0
    %2907 = vmatpush1.msra.mxu0 0.0
    %2908 = vmatprep.subr.mxu0 0.0
    %2909 = vmatpush1.msra.mxu0 0.0
    %2910 = vmatprep.subr.mxu0 0.0
    %2911 = vmatpush1.msra.mxu0 0.0
    %2912 = vmatprep.subr.mxu0 0.0
    %2913 = vmatpush1.msra.mxu0 0.0
    %2914 = vmatprep.subr.mxu0 0.0
    %2915 = vmatpush1.msra.mxu0 0.0
    %2916 = vmatprep.subr.mxu0 0.0
    %2917 = vmatpush1.msra.mxu0 0.0
    %2918 = vmatprep.subr.mxu0 0.0
    %2919 = vmatpush1.msra.mxu0 0.0
    %2920 = vmatprep.subr.mxu0 0.0
    %2921 = vmatpush1.msra.mxu0 0.0
    %2922 = vmatprep.subr.mxu0 0.0
    %2923 = vmatpush1.msra.mxu0 0.0
    %2924 = vmatprep.subr.mxu0 0.0
    %2925 = vmatpush1.msra.mxu0 0.0
    %2926 = vmatprep.subr.mxu0 0.0
    %2927 = vmatpush1.msra.mxu0 0.0
    %2928 = vmatprep.subr.mxu0 0.0
    %2929 = vmatpush1.msra.mxu0 0.0
    %2930 = vmatprep.subr.mxu0 0.0
    %2931 = vmatpush1.msra.mxu0 0.0
    %2932 = vmatprep.subr.mxu0 0.0
    %2933 = vmatpush1.msra.mxu0 0.0
    %2934 = vmatprep.subr.mxu0 0.0
    %2935 = vmatpush1.msra.mxu0 0.0
    %2936 = vmatprep.subr.mxu0 0.0
    %2937 = vmatpush1.msra.mxu0 0.0
    %2938 = vmatprep.subr.mxu0 0.0
    %2939 = vmatpush1.msra.mxu0 0.0
    %2940 = vmatprep.subr.mxu0 0.0
    %2941 = vmatpush1.msra.mxu0 0.0
    %2942 = vmatprep.subr.mxu0 0.0
    %2943 = vmatpush1.msra.mxu0 0.0
    %2944 = vmatprep.subr.mxu0 0.0
    %2945 = vmatpush1.msra.mxu0 0.0
    %2946 = vmatprep.subr.mxu0 0.0
    %2947 = vmatpush1.msra.mxu0 0.0
    %2948 = vmatprep.subr.mxu0 0.0
    %2949 = vmatpush1.msra.mxu0 0.0
    %2950 = vmatprep.subr.mxu0 0.0
    %2951 = vmatpush1.msra.mxu0 0.0
    %2952 = vmatprep.mubr.f32.mxu0 0.0
    %2953 = vmatmul.mubr.f32.gmra.mrb[0].mxu0 %v373
    %v2954 = vpop.f32.mrb[0].mxu0
    %v2955 = vadd.f32 0.0, %v2954
    %v2956 = vpop.f32.mrb[0].mxu0
    %2957 = vdwg.mxu0
    %v2958 = vadd.f32 %v226, %v2884
    %v2959 = vadd.f32 %v228, %v2886
    %v2960 = vadd.f32 %v297, %v2955
    %v2961 = vtanh.pop %v2958
    %v2962 = vtanh.pop %v2959
    %v2963 = vtanh.pop %v2960
    %v2964 = vmul.f32 %v67, %v2961
    %v2965 = vmul.f32 %v68, %v2962
    %v2966 = vmul.f32 %v69, %v2963
    %2967 = vrot.lane.b32.xlu0 %v2964, 19
    %v2968 = vpop.permute.xlu0 %2967
    %2969 = vrot.lane.b32.xlu0 %v2965, 19
    %v2970 = vpop.permute.xlu0 %2969
    %2971 = vrot.lane.b32.xlu0 %v2966, 19
    %v2972 = vpop.permute.xlu0 %2971
    %v2973 = vsel %vm81, %v2970, %v2972
    %v2974 = vsel %vm81, %v2968, %v2970
    %v2975 = vsel %vm81, %v2972, %v2968
    %2976 = vrot.lane.b32.xlu0 %v2964, 18
    %v2977 = vpop.permute.xlu0 %2976
    %2978 = vrot.lane.b32.xlu0 %v2965, 18
    %v2979 = vpop.permute.xlu0 %2978
    %2980 = vrot.lane.b32.xlu0 %v2966, 18
    %v2981 = vpop.permute.xlu0 %2980
    %v2982 = vsel %vm91, %v2979, %v2981
    %v2983 = vsel %vm91, %v2977, %v2979
    %v2984 = vsel %vm91, %v2981, %v2977
    %2985 = vrot.lane.b32.xlu0 %v2964, 17
    %v2986 = vpop.permute.xlu0 %2985
    %2987 = vrot.lane.b32.xlu0 %v2965, 17
    %v2988 = vpop.permute.xlu0 %2987
    %2989 = vrot.lane.b32.xlu0 %v2966, 17
    %v2990 = vpop.permute.xlu0 %2989
    %v2991 = vsel %vm101, %v2988, %v2990
    %v2992 = vsel %vm101, %v2986, %v2988
    %v2993 = vsel %vm101, %v2990, %v2986
    %2994 = vrot.lane.b32.xlu0 %v2964, 1
    %v2995 = vpop.permute.xlu0 %2994
    %2996 = vrot.lane.b32.xlu0 %v2965, 1
    %v2997 = vpop.permute.xlu0 %2996
    %2998 = vrot.lane.b32.xlu0 %v2966, 1
    %v2999 = vpop.permute.xlu0 %2998
    %v3000 = vsel %vm111, %v2997, %v2999
    %v3001 = vsel %vm111, %v2995, %v2997
    %v3002 = vsel %vm111, %v2999, %v2995
    %3003 = vrot.lane.b32.xlu0 %v2964, 127
    %v3004 = vpop.permute.xlu0 %3003
    %3005 = vrot.lane.b32.xlu0 %v2965, 127
    %v3006 = vpop.permute.xlu0 %3005
    %3007 = vrot.lane.b32.xlu0 %v2966, 127
    %v3008 = vpop.permute.xlu0 %3007
    %v3009 = vsel %vm121, %v3006, %v3008
    %v3010 = vsel %vm121, %v3004, %v3006
    %v3011 = vsel %vm121, %v3008, %v3004
    %3012 = vrot.lane.b32.xlu0 %v2964, 111
    %v3013 = vpop.permute.xlu0 %3012
    %3014 = vrot.lane.b32.xlu0 %v2965, 111
    %v3015 = vpop.permute.xlu0 %3014
    %3016 = vrot.lane.b32.xlu0 %v2966, 111
    %v3017 = vpop.permute.xlu0 %3016
    %v3018 = vsel %vm131, %v3015, %v3017
    %v3019 = vsel %vm131, %v3013, %v3015
    %v3020 = vsel %vm131, %v3017, %v3013
    %3021 = vrot.lane.b32.xlu0 %v2964, 110
    %v3022 = vpop.permute.xlu0 %3021
    %3023 = vrot.lane.b32.xlu0 %v2965, 110
    %v3024 = vpop.permute.xlu0 %3023
    %3025 = vrot.lane.b32.xlu0 %v2966, 110
    %v3026 = vpop.permute.xlu0 %3025
    %v3027 = vsel %vm141, %v3024, %v3026
    %v3028 = vsel %vm141, %v3022, %v3024
    %v3029 = vsel %vm141, %v3026, %v3022
    %3030 = vrot.lane.b32.xlu0 %v2964, 109
    %v3031 = vpop.permute.xlu0 %3030
    %3032 = vrot.lane.b32.xlu0 %v2965, 109
    %v3033 = vpop.permute.xlu0 %3032
    %3034 = vrot.lane.b32.xlu0 %v2966, 109
    %v3035 = vpop.permute.xlu0 %3034
    %v3036 = vsel %vm151, %v3033, %v3035
    %v3037 = vsel %vm151, %v3031, %v3033
    %v3038 = vsel %vm151, %v3035, %v3031
    %3039 = vmatprep.subr.mxu0 %v2974
    %3040 = vmatpush1.msra.mxu0 %v2975
    %3041 = vmatprep.subr.mxu0 %v2983
    %3042 = vmatpush1.msra.mxu0 %v2984
    %3043 = vmatprep.subr.mxu0 %v2992
    %3044 = vmatpush1.msra.mxu0 %v2993
    %3045 = vmatprep.subr.mxu0 %v3001
    %3046 = vmatpush1.msra.mxu0 %v3002
    %3047 = vmatprep.subr.mxu0 %v2965
    %3048 = vmatpush1.msra.mxu0 %v2964
    %3049 = vmatprep.subr.mxu0 %v3009
    %3050 = vmatpush1.msra.mxu0 %v3010
    %3051 = vmatprep.subr.mxu0 %v3018
    %3052 = vmatpush1.msra.mxu0 %v3019
    %3053 = vmatprep.subr.mxu0 %v3027
    %3054 = vmatpush1.msra.mxu0 %v3028
    %3055 = vmatprep.subr.mxu0 %v3036
    %3056 = vmatpush1.msra.mxu0 %v3037
    %3057 = vmatprep.subr.mxu0 0.0
    %3058 = vmatpush1.msra.mxu0 0.0
    %3059 = vmatprep.subr.mxu0 0.0
    %3060 = vmatpush1.msra.mxu0 0.0
    %3061 = vmatprep.subr.mxu0 0.0
    %3062 = vmatpush1.msra.mxu0 0.0
    %3063 = vmatprep.subr.mxu0 0.0
    %3064 = vmatpush1.msra.mxu0 0.0
    %3065 = vmatprep.subr.mxu0 0.0
    %3066 = vmatpush1.msra.mxu0 0.0
    %3067 = vmatprep.subr.mxu0 0.0
    %3068 = vmatpush1.msra.mxu0 0.0
    %3069 = vmatprep.subr.mxu0 0.0
    %3070 = vmatpush1.msra.mxu0 0.0
    %3071 = vmatprep.subr.mxu0 0.0
    %3072 = vmatpush1.msra.mxu0 0.0
    %3073 = vmatprep.subr.mxu0 0.0
    %3074 = vmatpush1.msra.mxu0 0.0
    %3075 = vmatprep.subr.mxu0 0.0
    %3076 = vmatpush1.msra.mxu0 0.0
    %3077 = vmatprep.subr.mxu0 0.0
    %3078 = vmatpush1.msra.mxu0 0.0
    %3079 = vmatprep.subr.mxu0 0.0
    %3080 = vmatpush1.msra.mxu0 0.0
    %3081 = vmatprep.subr.mxu0 0.0
    %3082 = vmatpush1.msra.mxu0 0.0
    %3083 = vmatprep.subr.mxu0 0.0
    %3084 = vmatpush1.msra.mxu0 0.0
    %3085 = vmatprep.subr.mxu0 0.0
    %3086 = vmatpush1.msra.mxu0 0.0
    %3087 = vmatprep.subr.mxu0 0.0
    %3088 = vmatpush1.msra.mxu0 0.0
    %3089 = vmatprep.subr.mxu0 0.0
    %3090 = vmatpush1.msra.mxu0 0.0
    %3091 = vmatprep.subr.mxu0 0.0
    %3092 = vmatpush1.msra.mxu0 0.0
    %3093 = vmatprep.subr.mxu0 0.0
    %3094 = vmatpush1.msra.mxu0 0.0
    %3095 = vmatprep.subr.mxu0 0.0
    %3096 = vmatpush1.msra.mxu0 0.0
    %3097 = vmatprep.subr.mxu0 0.0
    %3098 = vmatpush1.msra.mxu0 0.0
    %3099 = vmatprep.subr.mxu0 0.0
    %3100 = vmatpush1.msra.mxu0 0.0
    %3101 = vmatprep.subr.mxu0 0.0
    %3102 = vmatpush1.msra.mxu0 0.0
    %3103 = vmatprep.mubr.f32.mxu0 0.0
    %3104 = vmatmul.mubr.f32.gmra.mrb[0].mxu0 %v373
    %v3105 = vpop.f32.mrb[0].mxu0
    %v3106 = vadd.f32 0.0, %v3105
    %v3107 = vpop.f32.mrb[0].mxu0
    %v3108 = vadd.f32 0.0, %v3107
    %3109 = vdwg.mxu0
    %3110 = vmatprep.subr.mxu0 0.0
    %3111 = vmatpush1.msra.mxu0 %v2973
    %3112 = vmatprep.subr.mxu0 0.0
    %3113 = vmatpush1.msra.mxu0 %v2982
    %3114 = vmatprep.subr.mxu0 0.0
    %3115 = vmatpush1.msra.mxu0 %v2991
    %3116 = vmatprep.subr.mxu0 0.0
    %3117 = vmatpush1.msra.mxu0 %v3000
    %3118 = vmatprep.subr.mxu0 0.0
    %3119 = vmatpush1.msra.mxu0 %v2966
    %3120 = vmatprep.subr.mxu0 0.0
    %3121 = vmatpush1.msra.mxu0 %v3011
    %3122 = vmatprep.subr.mxu0 0.0
    %3123 = vmatpush1.msra.mxu0 %v3020
    %3124 = vmatprep.subr.mxu0 0.0
    %3125 = vmatpush1.msra.mxu0 %v3029
    %3126 = vmatprep.subr.mxu0 0.0
    %3127 = vmatpush1.msra.mxu0 %v3038
    %3128 = vmatprep.subr.mxu0 0.0
    %3129 = vmatpush1.msra.mxu0 0.0
    %3130 = vmatprep.subr.mxu0 0.0
    %3131 = vmatpush1.msra.mxu0 0.0
    %3132 = vmatprep.subr.mxu0 0.0
    %3133 = vmatpush1.msra.mxu0 0.0
    %3134 = vmatprep.subr.mxu0 0.0
    %3135 = vmatpush1.msra.mxu0 0.0
    %3136 = vmatprep.subr.mxu0 0.0
    %3137 = vmatpush1.msra.mxu0 0.0
    %3138 = vmatprep.subr.mxu0 0.0
    %3139 = vmatpush1.msra.mxu0 0.0
    %3140 = vmatprep.subr.mxu0 0.0
    %3141 = vmatpush1.msra.mxu0 0.0
    %3142 = vmatprep.subr.mxu0 0.0
    %3143 = vmatpush1.msra.mxu0 0.0
    %3144 = vmatprep.subr.mxu0 0.0
    %3145 = vmatpush1.msra.mxu0 0.0
    %3146 = vmatprep.subr.mxu0 0.0
    %3147 = vmatpush1.msra.mxu0 0.0
    %3148 = vmatprep.subr.mxu0 0.0
    %3149 = vmatpush1.msra.mxu0 0.0
    %3150 = vmatprep.subr.mxu0 0.0
    %3151 = vmatpush1.msra.mxu0 0.0
    %3152 = vmatprep.subr.mxu0 0.0
    %3153 = vmatpush1.msra.mxu0 0.0
    %3154 = vmatprep.subr.mxu0 0.0
    %3155 = vmatpush1.msra.mxu0 0.0
    %3156 = vmatprep.subr.mxu0 0.0
    %3157 = vmatpush1.msra.mxu0 0.0
    %3158 = vmatprep.subr.mxu0 0.0
    %3159 = vmatpush1.msra.mxu0 0.0
    %3160 = vmatprep.subr.mxu0 0.0
    %3161 = vmatpush1.msra.mxu0 0.0
    %3162 = vmatprep.subr.mxu0 0.0
    %3163 = vmatpush1.msra.mxu0 0.0
    %3164 = vmatprep.subr.mxu0 0.0
    %3165 = vmatpush1.msra.mxu0 0.0
    %3166 = vmatprep.subr.mxu0 0.0
    %3167 = vmatpush1.msra.mxu0 0.0
    %3168 = vmatprep.subr.mxu0 0.0
    %3169 = vmatpush1.msra.mxu0 0.0
    %3170 = vmatprep.subr.mxu0 0.0
    %3171 = vmatpush1.msra.mxu0 0.0
    %3172 = vmatprep.subr.mxu0 0.0
    %3173 = vmatpush1.msra.mxu0 0.0
    %3174 = vmatprep.mubr.f32.mxu0 0.0
    %3175 = vmatmul.mubr.f32.gmra.mrb[0].mxu0 %v373
    %v3176 = vpop.f32.mrb[0].mxu0
    %v3177 = vadd.f32 0.0, %v3176
    %v3178 = vpop.f32.mrb[0].mxu0
    %3179 = vdwg.mxu0
    %v3180 = vadd.f32 %v226, %v3106
    %v3181 = vadd.f32 %v228, %v3108
    %v3182 = vadd.f32 %v297, %v3177
    %v3183 = vtanh.pop %v3180
    %v3184 = vtanh.pop %v3181
    %v3185 = vtanh.pop %v3182
    %v3186 = vmul.f32 %v67, %v3183
    %v3187 = vmul.f32 %v68, %v3184
    %v3188 = vmul.f32 %v69, %v3185
    %3189 = vst [vmem:[#allocation10] sm:$0xff] %v3186
    %3190 = vst [vmem:[#allocation10 + $0x8] sm:$0xff] %v3187
    %3191 = vst [vmem:[#allocation10 + $0x10] sm:$0xff] %v3188
    // Predicated region
    $region34: #{tpu_custom_call.1} parent=1 // pred_check
      _
    $region35: #{tpu_custom_call.1} parent=1 // pred_check_branch
      %3193 = sbr.rel (0) target = $region37
    $region36: #{tpu_custom_call.1} parent=1 // pred_region
      %s3195 = ssub.s32 384, 384
      %3196 = vsyncadd [#allocation4], %s3195
      %s3198 = sshll.u32 [#allocation10], 4
      %s3199 = int_to_ptr.vmem [resolvable:$true] %s3198
      %3201 = dma.vmem_to_hbm [thread:$0]  %s3199, 384, %s4, [#allocation4]
    $region37: #{tpu_custom_call.1} parent=1 // pred_fallthru
      _
    // Predicated region
    $region38: #{tpu_custom_call.1} parent=1 // pred_check
      _
    $region39: #{tpu_custom_call.1} parent=1 // pred_check_branch
      %3203 = sbr.rel (0) target = $region41
    $region40: #{tpu_custom_call.1} parent=1 // pred_region
      %3204 = dma.done [#allocation4], 384
    $region41: #{tpu_custom_call.1} parent=1 // pred_fallthru
      _
    %3205 = vsyncpa [#allocation3], 1
    %3206 = vsyncpa [#allocation6], 1
    %3207 = vsyncpa [#allocation9], 1
    %3208 = vsyncpa [#allocation4], 1

</llo_original>
